<compile_context>
chip_gen: v7x
topology: tpu7x:2x2x1
jax: 0.10.0
libtpu: 0.0.40
codegen_flags: <defaults>
</compile_context>

<pallas_src>
import jax
import jax.numpy as jnp
from jax.experimental import pallas as pl
from jax.experimental.pallas import tpu as pltpu

NEG_SLOPE = 0.01      # PyTorch nn.LeakyReLU default
RHO = 0.975           # FactorLoss default


def _leaky_relu(x):
    return jnp.where(x >= 0, x, NEG_SLOPE * x)


def flow_factor_kernel(x_ref,
                       an_loc_ref, an_scale_ref,
                       w0_ref, b0_ref,
                       s_wh_ref, s_bh_ref, t_wh_ref, t_bh_ref,
                       s_w2_ref, s_b2_ref, t_w2_ref, t_b2_ref,
                       pt_ref, pb_ref,
                       z_ref, loss_ref,
                       h0_s, h1_s, ld_s):
    """One grid step == one coupling block of one flow.

    grid = (n_flow, n_blocks), both 'arbitrary'.
    Carried state: h0_s / h1_s (current halves), ld_s (coupling logdet), z_ref (full [2B, C]
    carry between flows; resident because its index_map is constant).
    """
    f = pl.program_id(0)
    b = pl.program_id(1)
    n_flow = pl.num_programs(0)
    n_blocks = pl.num_programs(1)

    n2b = x_ref.shape[0]
    bsz = n2b // 2
    half = h0_s.shape[1]
    hdim = s_wh_ref.shape[-1]
    depth = s_wh_ref.shape[0]

    # ---------------- flow prologue: seed carry, VectorActNorm, split halves --------------
    @pl.when(b == 0)
    def _():
        @pl.when(f == 0)
        def _():
            ld_s[...] = jnp.zeros_like(ld_s)
            z_ref[...] = x_ref[...]              # seed the inter-flow carry with the input
        # ActNorm (height = width = 1); its data-independent logdet is added on the host.
        xa = an_scale_ref[...] * (z_ref[...] + an_loc_ref[...])       # [2B, C] f32
        h0_s[...] = xa[:, :half]
        h1_s[...] = xa[:, half:]

    # -------- alternating chunk order: torch.cat(torch.chunk(x, 2)[::-1]) on odd blocks ----
    @pl.when(b % 2 == 1)
    def _():
        t0 = h0_s[...]
        t1 = h1_s[...]
        h0_s[...] = t1
        h1_s[...] = t0

    # ---------------- coupling block b: s/t MLPs ------------------------------------------
    # First layer fused (shared input, no zero padding); hidden/output layers are split
    # per-path 128-wide bf16 dots (no zero-padded block-diagonal weights).
    xab = h0_s[...].astype(jnp.bfloat16)
    hcat = jnp.dot(xab, w0_ref[...], preferred_element_type=jnp.float32) + b0_ref[...]
    hcat = _leaky_relu(hcat)
    hs = hcat[:, :hdim]
    ht = hcat[:, hdim:]
    for d in range(depth):
        hs = _leaky_relu(jnp.dot(hs.astype(jnp.bfloat16), s_wh_ref[d],
                                 preferred_element_type=jnp.float32) + s_bh_ref[d])
        ht = _leaky_relu(jnp.dot(ht.astype(jnp.bfloat16), t_wh_ref[d],
                                 preferred_element_type=jnp.float32) + t_bh_ref[d])
    s = jnp.tanh(jnp.dot(hs.astype(jnp.bfloat16), s_w2_ref[...],
                         preferred_element_type=jnp.float32) + s_b2_ref[...])
    t = jnp.dot(ht.astype(jnp.bfloat16), t_w2_ref[...],
                preferred_element_type=jnp.float32) + t_b2_ref[...]

    h1_s[...] = h1_s[...] * jnp.exp(s) + t                       # f32 affine coupling
    ld_s[...] = ld_s[...] + jnp.sum(s, axis=1, keepdims=True)    # coupling logdet

    # ---------------- flow epilogue: Shuffle; last flow also emits the fused loss ----------
    @pl.when(b == n_blocks - 1)
    def _():
        # Channel permutation as cat(h0, h1) @ P without the concat. precision=HIGHEST so
        # the reorder of the f32 activations is exact (DEFAULT would round through bf16).
        xsh = (jnp.dot(h0_s[...], pt_ref[...],
                       preferred_element_type=jnp.float32,
                       precision=jax.lax.Precision.HIGHEST)
               + jnp.dot(h1_s[...], pb_ref[...],
                         preferred_element_type=jnp.float32,
                         precision=jax.lax.Precision.HIGHEST))
        z_ref[...] = xsh

        @pl.when(f == n_flow - 1)
        def _():
            # fused FactorLoss (factors == 0 -> factor masks (1.0, 0.0))
            z1 = xsh[:bsz, :]                    # factor-0 samples
            z2 = xsh[bsz:, :]                    # factor-1 samples
            nll1 = 0.5 * jnp.sum(z1 * z1, axis=1, keepdims=True)                         # [B,1]
            d0 = z2[:, :half] - RHO * z1[:, :half]
            nll2_0 = (0.5 / (1.0 - RHO * RHO)) * jnp.sum(d0 * d0, axis=1, keepdims=True)  # [B,1]
            z2b = z2[:, half:]
            nll2_1 = 0.5 * jnp.sum(z2b * z2b, axis=1, keepdims=True)                      # [B,1]
            # -mean(logdet1) - mean(logdet2) == -sum(coupling logdet over 2B rows)/B
            # (the data-independent ActNorm logdet constant is added on the host)
            total = (jnp.sum(nll1 + nll2_0 + nll2_1, axis=0, keepdims=True)
                     - jnp.sum(ld_s[...], axis=0, keepdims=True))                         # [1,1]
            loss_ref[...] = total * (1.0 / bsz)


def glow_factor_forward(x2b, params):
    """Both factor passes of VectorTransformer/FactorTransformer + FactorLoss, one call."""
    (an_loc, an_scale, w0, b0, s_wh, s_bh, t_wh, t_bh,
     s_w2, s_b2, t_w2, t_b2, perm_top, perm_bot) = params

    n2b, C = x2b.shape
    half = C // 2
    n_flow, n_blocks = w0.shape[0], w0.shape[1]
    H = w0.shape[-1] // 2
    depth = s_wh.shape[2]

    in_specs = [
        pl.BlockSpec((n2b, C), lambda f, b: (0, 0)),                            # x (resident)
        pl.BlockSpec((None, 1, C), lambda f, b: (f, 0, 0)),                     # an_loc
        pl.BlockSpec((None, 1, C), lambda f, b: (f, 0, 0)),                     # an_scale
        pl.BlockSpec((None, None, half, 2 * H), lambda f, b: (f, b, 0, 0)),     # w0 (fused s|t)
        pl.BlockSpec((None, None, 1, 2 * H), lambda f, b: (f, b, 0, 0)),        # b0
        pl.BlockSpec((None, None, depth, H, H), lambda f, b: (f, b, 0, 0, 0)),  # s_wh
        pl.BlockSpec((None, None, depth, 1, H), lambda f, b: (f, b, 0, 0, 0)),  # s_bh
        pl.BlockSpec((None, None, depth, H, H), lambda f, b: (f, b, 0, 0, 0)),  # t_wh
        pl.BlockSpec((None, None, depth, 1, H), lambda f, b: (f, b, 0, 0, 0)),  # t_bh
        pl.BlockSpec((None, None, H, half), lambda f, b: (f, b, 0, 0)),         # s_w2
        pl.BlockSpec((None, None, 1, half), lambda f, b: (f, b, 0, 0)),         # s_b2
        pl.BlockSpec((None, None, H, half), lambda f, b: (f, b, 0, 0)),         # t_w2
        pl.BlockSpec((None, None, 1, half), lambda f, b: (f, b, 0, 0)),         # t_b2
        pl.BlockSpec((None, half, C), lambda f, b: (f, 0, 0)),                  # perm_top
        pl.BlockSpec((None, half, C), lambda f, b: (f, 0, 0)),                  # perm_bot
    ]
    out_specs = (
        pl.BlockSpec((n2b, C), lambda f, b: (0, 0)),     # z   (resident carry, written per flow)
        pl.BlockSpec((1, 1), lambda f, b: (0, 0)),       # loss (written at the final step)
    )
    scratch_shapes = [
        pltpu.VMEM((n2b, half), jnp.float32),            # h0 (apply half)
        pltpu.VMEM((n2b, half), jnp.float32),            # h1 (transform half)
        pltpu.VMEM((n2b, 1), jnp.float32),               # running coupling logdet
    ]

    # advisory cost hint for XLA scheduling around the custom call
    mm_flops = n_flow * (
        n_blocks * (2 * n2b * half * (2 * H)
                    + depth * 2 * (2 * n2b * H * H)
                    + 2 * (2 * n2b * H * half))
        + 2 * (2 * n2b * half * C))
    transcendentals = n_flow * n_blocks * 2 * n2b * half        # exp + tanh per block
    operands = (x2b, an_loc, an_scale, w0, b0, s_wh, s_bh, t_wh, t_bh,
                s_w2, s_b2, t_w2, t_b2, perm_top, perm_bot)
    bytes_accessed = int(sum(a.size * a.dtype.itemsize for a in operands)) + n2b * C * 4 + 4

    z, loss = pl.pallas_call(
        flow_factor_kernel,
        out_shape=(jax.ShapeDtypeStruct((n2b, C), jnp.float32),
                   jax.ShapeDtypeStruct((1, 1), jnp.float32)),
        grid=(n_flow, n_blocks),
        in_specs=in_specs,
        out_specs=out_specs,
        scratch_shapes=scratch_shapes,
        compiler_params=pltpu.CompilerParams(
            dimension_semantics=("arbitrary", "arbitrary"),
            vmem_limit_bytes=32 * 1024 * 1024),
        cost_estimate=pl.CostEstimate(flops=mm_flops,
                                      transcendentals=transcendentals,
                                      bytes_accessed=bytes_accessed),
    )(*operands)
    return z, loss


def factor_trainer_forward(inputs, params, an_logdet):
    """FactorTrainer.forward(inputs, reverse=False, return_loss=True)."""
    B = inputs.shape[0]
    C = inputs.shape[2]
    half = C // 2
    # stack factor-0 / factor-1 samples into one [2B, C] batch (== .squeeze() of [B, C, 1, 1]).
    # Stacking additional micro-batches here (raising M toward 128-256) is the main
    # remaining throughput lever; the kernel accepts arbitrary 2B.
    x2b = jnp.concatenate([inputs[:, 0].reshape(B, C),
                           inputs[:, 1].reshape(B, C)], axis=0)
    z, loss = glow_factor_forward(x2b, params)
    # add the data-independent ActNorm logdet contribution (-mean over both passes)
    loss = loss[0, 0] - 2.0 * an_logdet
    z_ss_factor = {}
    for k in (0, 1):
        zk = z[k * B:(k + 1) * B]
        # FactorTransformer: chunk into n_factors = 2 pieces, restore [:, :, None, None]
        z_ss_factor[k] = (zk[:, :half, None, None], zk[:, half:, None, None])
    return z_ss_factor, loss


def init_params(key, n_flow, n_blocks, depth, C, H):
    half = C // 2
    ks = jax.random.split(key, 16)

    def nrm(k, shape, scale):
        return jax.random.normal(k, shape, jnp.float32) * scale

    an_loc = nrm(ks[0], (n_flow, 1, C), 0.05)
    an_scale = jnp.exp(nrm(ks[1], (n_flow, 1, C), 0.1))

    s_w0 = nrm(ks[2], (n_flow, n_blocks, half, H), half ** -0.5)
    s_b0 = nrm(ks[3], (n_flow, n_blocks, 1, H), 0.01)
    s_wh = nrm(ks[4], (n_flow, n_blocks, depth, H, H), H ** -0.5)
    s_bh = nrm(ks[5], (n_flow, n_blocks, depth, 1, H), 0.01)
    s_w2 = nrm(ks[6], (n_flow, n_blocks, H, half), H ** -0.5)
    s_b2 = nrm(ks[7], (n_flow, n_blocks, 1, half), 0.01)

    t_w0 = nrm(ks[8], (n_flow, n_blocks, half, H), half ** -0.5)
    t_b0 = nrm(ks[9], (n_flow, n_blocks, 1, H), 0.01)
    t_wh = nrm(ks[10], (n_flow, n_blocks, depth, H, H), H ** -0.5)
    t_bh = nrm(ks[11], (n_flow, n_blocks, depth, 1, H), 0.01)
    t_w2 = nrm(ks[12], (n_flow, n_blocks, H, half), H ** -0.5)
    t_b2 = nrm(ks[13], (n_flow, n_blocks, 1, half), 0.01)

    # Only the shared-input first layer is fused (no zero padding); hidden/output layers
    # stay per-path so no zero weights are DMA'd or pushed through the MXU.
    w0 = jnp.concatenate([s_w0, t_w0], axis=-1).astype(jnp.bfloat16)   # [F, Bk, half, 2H]
    b0 = jnp.concatenate([s_b0, t_b0], axis=-1)                        # [F, Bk, 1, 2H] f32

    s_wh = s_wh.astype(jnp.bfloat16)
    t_wh = t_wh.astype(jnp.bfloat16)
    s_w2 = s_w2.astype(jnp.bfloat16)
    t_w2 = t_w2.astype(jnp.bfloat16)

    # Shuffle: per-flow channel permutation as a matmul; split P into top/bottom halves so
    # the kernel never has to concatenate (h0, h1). Kept in f32 (0/1 entries).
    eye = jnp.eye(C, dtype=jnp.float32)
    perms = []
    for f in range(n_flow):
        idx = jax.random.permutation(jax.random.fold_in(ks[14], f), C)
        perms.append(eye[idx].T)                       # (x @ P)[:, j] == x[:, idx[j]]
    perm = jnp.stack(perms, axis=0)                    # [F, C, C]
    perm_top = perm[:, :half, :]                       # [F, half, C]
    perm_bot = perm[:, half:, :]                       # [F, half, C]

    # data-independent ActNorm logdet (height = width = 1): constant, applied on the host
    an_logdet = jnp.sum(jnp.log(jnp.abs(an_scale)))

    params = (an_loc, an_scale, w0, b0, s_wh, s_bh, t_wh, t_bh,
              s_w2, s_b2, t_w2, t_b2, perm_top, perm_bot)
    return params, an_logdet


if __name__ == "__main__":
    # config: in_channel=256, n_flow=2, hidden_dim=128, hidden_depth=1, n_factors=2
    B, C, H, DEPTH, N_FLOW, N_BLOCKS = 8, 256, 128, 1, 2, 2

    key = jax.random.PRNGKey(0)
    k_in, k_par = jax.random.split(key)

    # FactorTrainer input: inputs[:, k] -> [B, C, 1, 1] per factor index k in {0, 1}
    inputs = jax.random.normal(k_in, (B, 2, C, 1, 1), jnp.float32)
    params, an_logdet = init_params(k_par, N_FLOW, N_BLOCKS, DEPTH, C, H)

    z_ss_factor, loss = factor_trainer_forward(inputs, params, an_logdet)
    jax.block_until_ready(loss)
    for k in (0, 1):
        jax.block_until_ready(z_ss_factor[k][0])
        jax.block_until_ready(z_ss_factor[k][1])

    assert z_ss_factor[0][0].shape == (B, C // 2, 1, 1)
    assert z_ss_factor[1][1].shape == (B, C // 2, 1, 1)
    assert bool(jnp.isfinite(loss))
    assert bool(jnp.all(jnp.isfinite(z_ss_factor[0][0])))
    assert bool(jnp.all(jnp.isfinite(z_ss_factor[1][1])))

    print("KERNEL_OK")
</pallas_src>

<mosaic_0001>
module attributes {stable_mosaic.version = 11 : i64} {
  func.func @flow_factor_kernel(%arg0: i32, %arg1: i32, %arg2: memref<16x256xf32, #tpu.memory_space<vmem>>, %arg3: memref<1x1x256xf32, #tpu.memory_space<vmem>>, %arg4: memref<1x1x256xf32, #tpu.memory_space<vmem>>, %arg5: memref<1x1x128x256xbf16, #tpu.memory_space<vmem>>, %arg6: memref<1x1x1x256xf32, #tpu.memory_space<vmem>>, %arg7: memref<1x1x1x128x128xbf16, #tpu.memory_space<vmem>>, %arg8: memref<1x1x1x1x128xf32, #tpu.memory_space<vmem>>, %arg9: memref<1x1x1x128x128xbf16, #tpu.memory_space<vmem>>, %arg10: memref<1x1x1x1x128xf32, #tpu.memory_space<vmem>>, %arg11: memref<1x1x128x128xbf16, #tpu.memory_space<vmem>>, %arg12: memref<1x1x1x128xf32, #tpu.memory_space<vmem>>, %arg13: memref<1x1x128x128xbf16, #tpu.memory_space<vmem>>, %arg14: memref<1x1x1x128xf32, #tpu.memory_space<vmem>>, %arg15: memref<1x128x256xf32, #tpu.memory_space<vmem>>, %arg16: memref<1x128x256xf32, #tpu.memory_space<vmem>>, %arg17: memref<16x256xf32, #tpu.memory_space<vmem>>, %arg18: memref<1x1xf32, #tpu.memory_space<vmem>>, %arg19: memref<16x128xf32, #tpu.memory_space<vmem>>, %arg20: memref<16x128xf32, #tpu.memory_space<vmem>>, %arg21: memref<16x1xf32, #tpu.memory_space<vmem>>) attributes {dimension_semantics = [#tpu.dimension_semantics<arbitrary>, #tpu.dimension_semantics<arbitrary>], iteration_bounds = array<i64: 2, 2>, scalar_prefetch = 0 : i64, scratch_operands = 3 : i64, tpu.core_type = #tpu.core_type<tc>, window_params = [{pipeline_mode = #tpu.pipeline_mode<synchronous>, transform_indices = @transform_0, window_bounds = array<i64: 16, 256>}, {transform_indices = @transform_1, window_bounds = array<i64: 1, 1, 256>}, {transform_indices = @transform_2, window_bounds = array<i64: 1, 1, 256>}, {transform_indices = @transform_3, window_bounds = array<i64: 1, 1, 128, 256>}, {transform_indices = @transform_4, window_bounds = array<i64: 1, 1, 1, 256>}, {transform_indices = @transform_5, window_bounds = array<i64: 1, 1, 1, 128, 128>}, {transform_indices = @transform_6, window_bounds = array<i64: 1, 1, 1, 1, 128>}, {transform_indices = @transform_7, window_bounds = array<i64: 1, 1, 1, 128, 128>}, {transform_indices = @transform_8, window_bounds = array<i64: 1, 1, 1, 1, 128>}, {transform_indices = @transform_9, window_bounds = array<i64: 1, 1, 128, 128>}, {transform_indices = @transform_10, window_bounds = array<i64: 1, 1, 1, 128>}, {transform_indices = @transform_11, window_bounds = array<i64: 1, 1, 128, 128>}, {transform_indices = @transform_12, window_bounds = array<i64: 1, 1, 1, 128>}, {transform_indices = @transform_13, window_bounds = array<i64: 1, 128, 256>}, {transform_indices = @transform_14, window_bounds = array<i64: 1, 128, 256>}, {pipeline_mode = #tpu.pipeline_mode<synchronous>, transform_indices = @transform_15, window_bounds = array<i64: 16, 256>}, {pipeline_mode = #tpu.pipeline_mode<synchronous>, transform_indices = @transform_16, window_bounds = array<i64: 1, 1>}]} {
    %c0_i32 = arith.constant 0 : i32
    %0 = arith.cmpi eq, %arg1, %c0_i32 : i32
    %1 = arith.extui %0 : i1 to i32
    %c0_i32_0 = arith.constant 0 : i32
    %2 = arith.cmpi ne, %1, %c0_i32_0 : i32
    scf.if %2 {
      %c0_i32_73 = arith.constant 0 : i32
      %88 = arith.cmpi eq, %arg0, %c0_i32_73 : i32
      %89 = arith.extui %88 : i1 to i32
      %c0_i32_74 = arith.constant 0 : i32
      %90 = arith.cmpi ne, %89, %c0_i32_74 : i32
      scf.if %90 {
        %cst_87 = arith.constant 0.000000e+00 : f32
        %104 = vector.broadcast %cst_87 : f32 to vector<16x1xf32>
        %c0_88 = arith.constant 0 : index
        %c0_89 = arith.constant 0 : index
        %105 = vector.load %arg21[%c0_88, %c0_89] : memref<16x1xf32, #tpu.memory_space<vmem>>, vector<16x1xf32>
        tpu.vector_store %arg21[%c0_88, %c0_89], %104 {strides = array<i32>} : memref<16x1xf32, #tpu.memory_space<vmem>>, vector<16x1xf32>,
        %c0_90 = arith.constant 0 : index
        %c0_91 = arith.constant 0 : index
        %106 = vector.load %arg2[%c0_90, %c0_91] : memref<16x256xf32, #tpu.memory_space<vmem>>, vector<16x256xf32>
        %c0_92 = arith.constant 0 : index
        %c0_93 = arith.constant 0 : index
        %107 = vector.load %arg17[%c0_92, %c0_93] : memref<16x256xf32, #tpu.memory_space<vmem>>, vector<16x256xf32>
        tpu.vector_store %arg17[%c0_92, %c0_93], %106 {strides = array<i32>} : memref<16x256xf32, #tpu.memory_space<vmem>>, vector<16x256xf32>,
      } else {
      }
      %c0_75 = arith.constant 0 : index
      %c0_76 = arith.constant 0 : index
      %c0_77 = arith.constant 0 : index
      %91 = vector.load %arg4[%c0_75, %c0_76, %c0_77] : memref<1x1x256xf32, #tpu.memory_space<vmem>>, vector<1x1x256xf32>
      %92 = vector.shape_cast %91 : vector<1x1x256xf32> to vector<1x256xf32>
      %c0_78 = arith.constant 0 : index
      %c0_79 = arith.constant 0 : index
      %93 = vector.load %arg17[%c0_78, %c0_79] : memref<16x256xf32, #tpu.memory_space<vmem>>, vector<16x256xf32>
      %c0_80 = arith.constant 0 : index
      %c0_81 = arith.constant 0 : index
      %c0_82 = arith.constant 0 : index
      %94 = vector.load %arg3[%c0_80, %c0_81, %c0_82] : memref<1x1x256xf32, #tpu.memory_space<vmem>>, vector<1x1x256xf32>
      %95 = vector.shape_cast %94 : vector<1x1x256xf32> to vector<1x256xf32>
      %96 = vector.broadcast %95 : vector<1x256xf32> to vector<16x256xf32>
      %97 = arith.addf %93, %96 : vector<16x256xf32>
      %98 = vector.broadcast %92 : vector<1x256xf32> to vector<16x256xf32>
      %99 = arith.mulf %98, %97 : vector<16x256xf32>
      %100 = vector.extract_strided_slice %99 {offsets = [0, 0], sizes = [16, 128], strides = [1, 1]} : vector<16x256xf32> to vector<16x128xf32>
      %c0_83 = arith.constant 0 : index
      %c0_84 = arith.constant 0 : index
      %101 = vector.load %arg19[%c0_83, %c0_84] : memref<16x128xf32, #tpu.memory_space<vmem>>, vector<16x128xf32>
      tpu.vector_store %arg19[%c0_83, %c0_84], %100 {strides = array<i32>} : memref<16x128xf32, #tpu.memory_space<vmem>>, vector<16x128xf32>,
      %102 = vector.extract_strided_slice %99 {offsets = [0, 128], sizes = [16, 128], strides = [1, 1]} : vector<16x256xf32> to vector<16x128xf32>
      %c0_85 = arith.constant 0 : index
      %c0_86 = arith.constant 0 : index
      %103 = vector.load %arg20[%c0_85, %c0_86] : memref<16x128xf32, #tpu.memory_space<vmem>>, vector<16x128xf32>
      tpu.vector_store %arg20[%c0_85, %c0_86], %102 {strides = array<i32>} : memref<16x128xf32, #tpu.memory_space<vmem>>, vector<16x128xf32>,
    } else {
    }
    %c2_i32 = arith.constant 2 : i32
    %c0_i32_1 = arith.constant 0 : i32
    %3 = arith.cmpi eq, %c2_i32, %c0_i32_1 : i32
    %c1_i32 = arith.constant 1 : i32
    %4 = arith.select %3, %c1_i32, %c2_i32 : i32
    %5 = arith.remsi %arg1, %4 : i32
    %c0_i32_2 = arith.constant 0 : i32
    %6 = arith.cmpi ne, %5, %c0_i32_2 : i32
    %c0_i32_3 = arith.constant 0 : i32
    %7 = arith.cmpi slt, %5, %c0_i32_3 : i32
    %c0_i32_4 = arith.constant 0 : i32
    %8 = arith.cmpi slt, %4, %c0_i32_4 : i32
    %9 = arith.xori %7, %8 : i1
    %10 = arith.andi %9, %6 : i1
    %11 = arith.addi %5, %4 : i32
    %12 = arith.select %10, %11, %5 : i32
    %c1_i32_5 = arith.constant 1 : i32
    %13 = arith.cmpi eq, %12, %c1_i32_5 : i32
    %14 = arith.extui %13 : i1 to i32
    %c0_i32_6 = arith.constant 0 : i32
    %15 = arith.cmpi ne, %14, %c0_i32_6 : i32
    scf.if %15 {
      %c0_73 = arith.constant 0 : index
      %c0_74 = arith.constant 0 : index
      %88 = vector.load %arg19[%c0_73, %c0_74] : memref<16x128xf32, #tpu.memory_space<vmem>>, vector<16x128xf32>
      %c0_75 = arith.constant 0 : index
      %c0_76 = arith.constant 0 : index
      %89 = vector.load %arg20[%c0_75, %c0_76] : memref<16x128xf32, #tpu.memory_space<vmem>>, vector<16x128xf32>
      %c0_77 = arith.constant 0 : index
      %c0_78 = arith.constant 0 : index
      %90 = vector.load %arg19[%c0_77, %c0_78] : memref<16x128xf32, #tpu.memory_space<vmem>>, vector<16x128xf32>
      tpu.vector_store %arg19[%c0_77, %c0_78], %89 {strides = array<i32>} : memref<16x128xf32, #tpu.memory_space<vmem>>, vector<16x128xf32>,
      %c0_79 = arith.constant 0 : index
      %c0_80 = arith.constant 0 : index
      %91 = vector.load %arg20[%c0_79, %c0_80] : memref<16x128xf32, #tpu.memory_space<vmem>>, vector<16x128xf32>
      tpu.vector_store %arg20[%c0_79, %c0_80], %88 {strides = array<i32>} : memref<16x128xf32, #tpu.memory_space<vmem>>, vector<16x128xf32>,
    } else {
    }
    %c0 = arith.constant 0 : index
    %c0_7 = arith.constant 0 : index
    %16 = vector.load %arg19[%c0, %c0_7] : memref<16x128xf32, #tpu.memory_space<vmem>>, vector<16x128xf32>
    %17 = arith.truncf %16 : vector<16x128xf32> to vector<16x128xbf16>
    %c0_8 = arith.constant 0 : index
    %c0_9 = arith.constant 0 : index
    %c0_10 = arith.constant 0 : index
    %c0_11 = arith.constant 0 : index
    %18 = vector.load %arg5[%c0_8, %c0_9, %c0_10, %c0_11] : memref<1x1x128x256xbf16, #tpu.memory_space<vmem>>, vector<1x1x128x256xbf16>
    %19 = vector.shape_cast %18 : vector<1x1x128x256xbf16> to vector<128x256xbf16>
    %cst = arith.constant dense<0.000000e+00> : vector<16x256xf32>
    %20 = tpu.matmul %17, %19, %cst {dimension_numbers = #tpu.dot_dimension_numbers<[1], [0], [0], [1], [0, 0, 1, 1], [], []>} : vector<16x128xbf16>, vector<128x256xbf16>, vector<16x256xf32> -> vector<16x256xf32>
    %c0_12 = arith.constant 0 : index
    %c0_13 = arith.constant 0 : index
    %c0_14 = arith.constant 0 : index
    %c0_15 = arith.constant 0 : index
    %21 = vector.load %arg6[%c0_12, %c0_13, %c0_14, %c0_15] : memref<1x1x1x256xf32, #tpu.memory_space<vmem>>, vector<1x1x1x256xf32>
    %22 = vector.shape_cast %21 : vector<1x1x1x256xf32> to vector<1x256xf32>
    %23 = vector.broadcast %22 : vector<1x256xf32> to vector<16x256xf32>
    %24 = arith.addf %20, %23 : vector<16x256xf32>
    %cst_16 = arith.constant 0.000000e+00 : f32
    %25 = vector.broadcast %cst_16 : f32 to vector<16x256xf32>
    %26 = arith.cmpf oge, %24, %25 : vector<16x256xf32>
    %cst_17 = arith.constant 0.00999999977 : f32
    %27 = vector.broadcast %cst_17 : f32 to vector<16x256xf32>
    %28 = arith.mulf %27, %24 : vector<16x256xf32>
    %29 = arith.select %26, %24, %28 : vector<16x256xi1>, vector<16x256xf32>
    %30 = vector.extract_strided_slice %29 {offsets = [0, 0], sizes = [16, 128], strides = [1, 1]} : vector<16x256xf32> to vector<16x128xf32>
    %31 = vector.extract_strided_slice %29 {offsets = [0, 128], sizes = [16, 128], strides = [1, 1]} : vector<16x256xf32> to vector<16x128xf32>
    %32 = arith.truncf %30 : vector<16x128xf32> to vector<16x128xbf16>
    %c0_18 = arith.constant 0 : index
    %c0_19 = arith.constant 0 : index
    %c0_20 = arith.constant 0 : index
    %c0_21 = arith.constant 0 : index
    %c0_22 = arith.constant 0 : index
    %33 = vector.load %arg7[%c0_18, %c0_19, %c0_20, %c0_21, %c0_22] : memref<1x1x1x128x128xbf16, #tpu.memory_space<vmem>>, vector<1x1x1x128x128xbf16>
    %34 = vector.shape_cast %33 : vector<1x1x1x128x128xbf16> to vector<128x128xbf16>
    %cst_23 = arith.constant dense<0.000000e+00> : vector<16x128xf32>
    %35 = tpu.matmul %32, %34, %cst_23 {dimension_numbers = #tpu.dot_dimension_numbers<[1], [0], [0], [1], [0, 0, 1, 1], [], []>} : vector<16x128xbf16>, vector<128x128xbf16>, vector<16x128xf32> -> vector<16x128xf32>
    %c0_24 = arith.constant 0 : index
    %c0_25 = arith.constant 0 : index
    %c0_26 = arith.constant 0 : index
    %c0_27 = arith.constant 0 : index
    %c0_28 = arith.constant 0 : index
    %36 = vector.load %arg8[%c0_24, %c0_25, %c0_26, %c0_27, %c0_28] : memref<1x1x1x1x128xf32, #tpu.memory_space<vmem>>, vector<1x1x1x1x128xf32>
    %37 = vector.shape_cast %36 : vector<1x1x1x1x128xf32> to vector<1x128xf32>
    %38 = vector.broadcast %37 : vector<1x128xf32> to vector<16x128xf32>
    %39 = arith.addf %35, %38 : vector<16x128xf32>
    %cst_29 = arith.constant 0.000000e+00 : f32
    %40 = vector.broadcast %cst_29 : f32 to vector<16x128xf32>
    %41 = arith.cmpf oge, %39, %40 : vector<16x128xf32>
    %cst_30 = arith.constant 0.00999999977 : f32
    %42 = vector.broadcast %cst_30 : f32 to vector<16x128xf32>
    %43 = arith.mulf %42, %39 : vector<16x128xf32>
    %44 = arith.select %41, %39, %43 : vector<16x128xi1>, vector<16x128xf32>
    %45 = arith.truncf %31 : vector<16x128xf32> to vector<16x128xbf16>
    %c0_31 = arith.constant 0 : index
    %c0_32 = arith.constant 0 : index
    %c0_33 = arith.constant 0 : index
    %c0_34 = arith.constant 0 : index
    %c0_35 = arith.constant 0 : index
    %46 = vector.load %arg9[%c0_31, %c0_32, %c0_33, %c0_34, %c0_35] : memref<1x1x1x128x128xbf16, #tpu.memory_space<vmem>>, vector<1x1x1x128x128xbf16>
    %47 = vector.shape_cast %46 : vector<1x1x1x128x128xbf16> to vector<128x128xbf16>
    %cst_36 = arith.constant dense<0.000000e+00> : vector<16x128xf32>
    %48 = tpu.matmul %45, %47, %cst_36 {dimension_numbers = #tpu.dot_dimension_numbers<[1], [0], [0], [1], [0, 0, 1, 1], [], []>} : vector<16x128xbf16>, vector<128x128xbf16>, vector<16x128xf32> -> vector<16x128xf32>
    %c0_37 = arith.constant 0 : index
    %c0_38 = arith.constant 0 : index
    %c0_39 = arith.constant 0 : index
    %c0_40 = arith.constant 0 : index
    %c0_41 = arith.constant 0 : index
    %49 = vector.load %arg10[%c0_37, %c0_38, %c0_39, %c0_40, %c0_41] : memref<1x1x1x1x128xf32, #tpu.memory_space<vmem>>, vector<1x1x1x1x128xf32>
    %50 = vector.shape_cast %49 : vector<1x1x1x1x128xf32> to vector<1x128xf32>
    %51 = vector.broadcast %50 : vector<1x128xf32> to vector<16x128xf32>
    %52 = arith.addf %48, %51 : vector<16x128xf32>
    %cst_42 = arith.constant 0.000000e+00 : f32
    %53 = vector.broadcast %cst_42 : f32 to vector<16x128xf32>
    %54 = arith.cmpf oge, %52, %53 : vector<16x128xf32>
    %cst_43 = arith.constant 0.00999999977 : f32
    %55 = vector.broadcast %cst_43 : f32 to vector<16x128xf32>
    %56 = arith.mulf %55, %52 : vector<16x128xf32>
    %57 = arith.select %54, %52, %56 : vector<16x128xi1>, vector<16x128xf32>
    %58 = arith.truncf %44 : vector<16x128xf32> to vector<16x128xbf16>
    %c0_44 = arith.constant 0 : index
    %c0_45 = arith.constant 0 : index
    %c0_46 = arith.constant 0 : index
    %c0_47 = arith.constant 0 : index
    %59 = vector.load %arg11[%c0_44, %c0_45, %c0_46, %c0_47] : memref<1x1x128x128xbf16, #tpu.memory_space<vmem>>, vector<1x1x128x128xbf16>
    %60 = vector.shape_cast %59 : vector<1x1x128x128xbf16> to vector<128x128xbf16>
    %cst_48 = arith.constant dense<0.000000e+00> : vector<16x128xf32>
    %61 = tpu.matmul %58, %60, %cst_48 {dimension_numbers = #tpu.dot_dimension_numbers<[1], [0], [0], [1], [0, 0, 1, 1], [], []>} : vector<16x128xbf16>, vector<128x128xbf16>, vector<16x128xf32> -> vector<16x128xf32>
    %c0_49 = arith.constant 0 : index
    %c0_50 = arith.constant 0 : index
    %c0_51 = arith.constant 0 : index
    %c0_52 = arith.constant 0 : index
    %62 = vector.load %arg12[%c0_49, %c0_50, %c0_51, %c0_52] : memref<1x1x1x128xf32, #tpu.memory_space<vmem>>, vector<1x1x1x128xf32>
    %63 = vector.shape_cast %62 : vector<1x1x1x128xf32> to vector<1x128xf32>
    %64 = vector.broadcast %63 : vector<1x128xf32> to vector<16x128xf32>
    %65 = arith.addf %61, %64 : vector<16x128xf32>
    %66 = math.tanh %65 : vector<16x128xf32>
    %67 = arith.truncf %57 : vector<16x128xf32> to vector<16x128xbf16>
    %c0_53 = arith.constant 0 : index
    %c0_54 = arith.constant 0 : index
    %c0_55 = arith.constant 0 : index
    %c0_56 = arith.constant 0 : index
    %68 = vector.load %arg13[%c0_53, %c0_54, %c0_55, %c0_56] : memref<1x1x128x128xbf16, #tpu.memory_space<vmem>>, vector<1x1x128x128xbf16>
    %69 = vector.shape_cast %68 : vector<1x1x128x128xbf16> to vector<128x128xbf16>
    %cst_57 = arith.constant dense<0.000000e+00> : vector<16x128xf32>
    %70 = tpu.matmul %67, %69, %cst_57 {dimension_numbers = #tpu.dot_dimension_numbers<[1], [0], [0], [1], [0, 0, 1, 1], [], []>} : vector<16x128xbf16>, vector<128x128xbf16>, vector<16x128xf32> -> vector<16x128xf32>
    %c0_58 = arith.constant 0 : index
    %c0_59 = arith.constant 0 : index
    %c0_60 = arith.constant 0 : index
    %c0_61 = arith.constant 0 : index
    %71 = vector.load %arg14[%c0_58, %c0_59, %c0_60, %c0_61] : memref<1x1x1x128xf32, #tpu.memory_space<vmem>>, vector<1x1x1x128xf32>
    %72 = vector.shape_cast %71 : vector<1x1x1x128xf32> to vector<1x128xf32>
    %73 = vector.broadcast %72 : vector<1x128xf32> to vector<16x128xf32>
    %74 = arith.addf %70, %73 : vector<16x128xf32>
    %c0_62 = arith.constant 0 : index
    %c0_63 = arith.constant 0 : index
    %75 = vector.load %arg20[%c0_62, %c0_63] : memref<16x128xf32, #tpu.memory_space<vmem>>, vector<16x128xf32>
    %76 = math.exp %66 : vector<16x128xf32>
    %77 = arith.mulf %75, %76 : vector<16x128xf32>
    %78 = arith.addf %77, %74 : vector<16x128xf32>
    %c0_64 = arith.constant 0 : index
    %c0_65 = arith.constant 0 : index
    %79 = vector.load %arg20[%c0_64, %c0_65] : memref<16x128xf32, #tpu.memory_space<vmem>>, vector<16x128xf32>
    tpu.vector_store %arg20[%c0_64, %c0_65], %78 {strides = array<i32>} : memref<16x128xf32, #tpu.memory_space<vmem>>, vector<16x128xf32>,
    %c0_66 = arith.constant 0 : index
    %c0_67 = arith.constant 0 : index
    %80 = vector.load %arg21[%c0_66, %c0_67] : memref<16x1xf32, #tpu.memory_space<vmem>>, vector<16x1xf32>
    %cst_68 = arith.constant dense<0.000000e+00> : vector<16xf32>
    %81 = vector.multi_reduction <add>, %66, %cst_68 [1] : vector<16x128xf32> to vector<16xf32>
    %82 = vector.shape_cast %81 : vector<16xf32> to vector<16x1xf32>
    %83 = arith.addf %80, %82 : vector<16x1xf32>
    %c0_69 = arith.constant 0 : index
    %c0_70 = arith.constant 0 : index
    %84 = vector.load %arg21[%c0_69, %c0_70] : memref<16x1xf32, #tpu.memory_space<vmem>>, vector<16x1xf32>
    tpu.vector_store %arg21[%c0_69, %c0_70], %83 {strides = array<i32>} : memref<16x1xf32, #tpu.memory_space<vmem>>, vector<16x1xf32>,
    %c1_i32_71 = arith.constant 1 : i32
    %85 = arith.cmpi eq, %arg1, %c1_i32_71 : i32
    %86 = arith.extui %85 : i1 to i32
    %c0_i32_72 = arith.constant 0 : i32
    %87 = arith.cmpi ne, %86, %c0_i32_72 : i32
    scf.if %87 {
      %c0_73 = arith.constant 0 : index
      %c0_74 = arith.constant 0 : index
      %88 = vector.load %arg19[%c0_73, %c0_74] : memref<16x128xf32, #tpu.memory_space<vmem>>, vector<16x128xf32>
      %c0_75 = arith.constant 0 : index
      %c0_76 = arith.constant 0 : index
      %c0_77 = arith.constant 0 : index
      %89 = vector.load %arg15[%c0_75, %c0_76, %c0_77] : memref<1x128x256xf32, #tpu.memory_space<vmem>>, vector<1x128x256xf32>
      %90 = vector.shape_cast %89 : vector<1x128x256xf32> to vector<128x256xf32>
      %cst_78 = arith.constant dense<0.000000e+00> : vector<16x256xf32>
      %91 = tpu.matmul %88, %90, %cst_78 {dimension_numbers = #tpu.dot_dimension_numbers<[1], [0], [0], [1], [0, 0, 1, 1], [], []>, precision = #tpu.contract_precision<fp32>} : vector<16x128xf32>, vector<128x256xf32>, vector<16x256xf32> -> vector<16x256xf32>
      %c0_79 = arith.constant 0 : index
      %c0_80 = arith.constant 0 : index
      %92 = vector.load %arg20[%c0_79, %c0_80] : memref<16x128xf32, #tpu.memory_space<vmem>>, vector<16x128xf32>
      %c0_81 = arith.constant 0 : index
      %c0_82 = arith.constant 0 : index
      %c0_83 = arith.constant 0 : index
      %93 = vector.load %arg16[%c0_81, %c0_82, %c0_83] : memref<1x128x256xf32, #tpu.memory_space<vmem>>, vector<1x128x256xf32>
      %94 = vector.shape_cast %93 : vector<1x128x256xf32> to vector<128x256xf32>
      %cst_84 = arith.constant dense<0.000000e+00> : vector<16x256xf32>
      %95 = tpu.matmul %92, %94, %cst_84 {dimension_numbers = #tpu.dot_dimension_numbers<[1], [0], [0], [1], [0, 0, 1, 1], [], []>, precision = #tpu.contract_precision<fp32>} : vector<16x128xf32>, vector<128x256xf32>, vector<16x256xf32> -> vector<16x256xf32>
      %96 = arith.addf %91, %95 : vector<16x256xf32>
      %c0_85 = arith.constant 0 : index
      %c0_86 = arith.constant 0 : index
      %97 = vector.load %arg17[%c0_85, %c0_86] : memref<16x256xf32, #tpu.memory_space<vmem>>, vector<16x256xf32>
      tpu.vector_store %arg17[%c0_85, %c0_86], %96 {strides = array<i32>} : memref<16x256xf32, #tpu.memory_space<vmem>>, vector<16x256xf32>,
      %c1_i32_87 = arith.constant 1 : i32
      %98 = arith.cmpi eq, %arg0, %c1_i32_87 : i32
      %99 = arith.extui %98 : i1 to i32
      %c0_i32_88 = arith.constant 0 : i32
      %100 = arith.cmpi ne, %99, %c0_i32_88 : i32
      scf.if %100 {
        %101 = vector.extract_strided_slice %96 {offsets = [0, 0], sizes = [8, 256], strides = [1, 1]} : vector<16x256xf32> to vector<8x256xf32>
        %102 = vector.extract_strided_slice %96 {offsets = [8, 0], sizes = [8, 256], strides = [1, 1]} : vector<16x256xf32> to vector<8x256xf32>
        %103 = arith.mulf %101, %101 : vector<8x256xf32>
        %cst_89 = arith.constant dense<0.000000e+00> : vector<8xf32>
        %104 = vector.multi_reduction <add>, %103, %cst_89 [1] : vector<8x256xf32> to vector<8xf32>
        %105 = vector.shape_cast %104 : vector<8xf32> to vector<8x1xf32>
        %cst_90 = arith.constant 5.000000e-01 : f32
        %106 = vector.broadcast %cst_90 : f32 to vector<8x1xf32>
        %107 = arith.mulf %106, %105 : vector<8x1xf32>
        %108 = vector.extract_strided_slice %102 {offsets = [0, 0], sizes = [8, 128], strides = [1, 1]} : vector<8x256xf32> to vector<8x128xf32>
        %109 = vector.extract_strided_slice %101 {offsets = [0, 0], sizes = [8, 128], strides = [1, 1]} : vector<8x256xf32> to vector<8x128xf32>
        %cst_91 = arith.constant 9.750000e-01 : f32
        %110 = vector.broadcast %cst_91 : f32 to vector<8x128xf32>
        %111 = arith.mulf %110, %109 : vector<8x128xf32>
        %112 = arith.subf %108, %111 : vector<8x128xf32>
        %113 = arith.mulf %112, %112 : vector<8x128xf32>
        %cst_92 = arith.constant dense<0.000000e+00> : vector<8xf32>
        %114 = vector.multi_reduction <add>, %113, %cst_92 [1] : vector<8x128xf32> to vector<8xf32>
        %115 = vector.shape_cast %114 : vector<8xf32> to vector<8x1xf32>
        %cst_93 = arith.constant 10.1265821 : f32
        %116 = vector.broadcast %cst_93 : f32 to vector<8x1xf32>
        %117 = arith.mulf %116, %115 : vector<8x1xf32>
        %118 = vector.extract_strided_slice %102 {offsets = [0, 128], sizes = [8, 128], strides = [1, 1]} : vector<8x256xf32> to vector<8x128xf32>
        %119 = arith.mulf %118, %118 : vector<8x128xf32>
        %cst_94 = arith.constant dense<0.000000e+00> : vector<8xf32>
        %120 = vector.multi_reduction <add>, %119, %cst_94 [1] : vector<8x128xf32> to vector<8xf32>
        %121 = vector.shape_cast %120 : vector<8xf32> to vector<8x1xf32>
        %cst_95 = arith.constant 5.000000e-01 : f32
        %122 = vector.broadcast %cst_95 : f32 to vector<8x1xf32>
        %123 = arith.mulf %122, %121 : vector<8x1xf32>
        %124 = arith.addf %107, %117 : vector<8x1xf32>
        %125 = arith.addf %124, %123 : vector<8x1xf32>
        %cst_96 = arith.constant dense<0.000000e+00> : vector<1xf32>
        %126 = vector.multi_reduction <add>, %125, %cst_96 [0] : vector<8x1xf32> to vector<1xf32>
        %127 = vector.shape_cast %126 : vector<1xf32> to vector<1x1xf32>
        %c0_97 = arith.constant 0 : index
        %c0_98 = arith.constant 0 : index
        %128 = vector.load %arg21[%c0_97, %c0_98] : memref<16x1xf32, #tpu.memory_space<vmem>>, vector<16x1xf32>
        %cst_99 = arith.constant dense<0.000000e+00> : vector<1xf32>
        %129 = vector.multi_reduction <add>, %128, %cst_99 [0] : vector<16x1xf32> to vector<1xf32>
        %130 = vector.shape_cast %129 : vector<1xf32> to vector<1x1xf32>
        %131 = arith.subf %127, %130 : vector<1x1xf32>
        %cst_100 = arith.constant 1.250000e-01 : f32
        %132 = vector.broadcast %cst_100 : f32 to vector<1x1xf32>
        %133 = arith.mulf %131, %132 : vector<1x1xf32>
        %c0_101 = arith.constant 0 : index
        %c0_102 = arith.constant 0 : index
        %134 = vector.load %arg18[%c0_101, %c0_102] : memref<1x1xf32, #tpu.memory_space<vmem>>, vector<1x1xf32>
        tpu.vector_store %arg18[%c0_101, %c0_102], %133 {strides = array<i32>} : memref<1x1xf32, #tpu.memory_space<vmem>>, vector<1x1xf32>,
      } else {
      }
    } else {
    }
    return
  }
  func.func @transform_0(%arg0: i32, %arg1: i32) -> (i32, i32) {
    %c0_i32 = arith.constant 0 : i32
    %c0_i32_0 = arith.constant 0 : i32
    %c0_i32_1 = arith.constant 0 : i32
    return %c0_i32, %c0_i32_0 : i32, i32
  }
  func.func @transform_1(%arg0: i32, %arg1: i32) -> (i32, i32, i32) {
    %c0_i32 = arith.constant 0 : i32
    %c0_i32_0 = arith.constant 0 : i32
    %c0_i32_1 = arith.constant 0 : i32
    return %arg0, %c0_i32, %c0_i32_0 : i32, i32, i32
  }
  func.func @transform_2(%arg0: i32, %arg1: i32) -> (i32, i32, i32) {
    %c0_i32 = arith.constant 0 : i32
    %c0_i32_0 = arith.constant 0 : i32
    %c0_i32_1 = arith.constant 0 : i32
    return %arg0, %c0_i32, %c0_i32_0 : i32, i32, i32
  }
  func.func @transform_3(%arg0: i32, %arg1: i32) -> (i32, i32, i32, i32) {
    %c0_i32 = arith.constant 0 : i32
    %c0_i32_0 = arith.constant 0 : i32
    %c0_i32_1 = arith.constant 0 : i32
    return %arg0, %arg1, %c0_i32, %c0_i32_0 : i32, i32, i32, i32
  }
  func.func @transform_4(%arg0: i32, %arg1: i32) -> (i32, i32, i32, i32) {
    %c0_i32 = arith.constant 0 : i32
    %c0_i32_0 = arith.constant 0 : i32
    %c0_i32_1 = arith.constant 0 : i32
    return %arg0, %arg1, %c0_i32, %c0_i32_0 : i32, i32, i32, i32
  }
  func.func @transform_5(%arg0: i32, %arg1: i32) -> (i32, i32, i32, i32, i32) {
    %c0_i32 = arith.constant 0 : i32
    %c0_i32_0 = arith.constant 0 : i32
    %c0_i32_1 = arith.constant 0 : i32
    %c0_i32_2 = arith.constant 0 : i32
    return %arg0, %arg1, %c0_i32, %c0_i32_0, %c0_i32_1 : i32, i32, i32, i32, i32
  }
  func.func @transform_6(%arg0: i32, %arg1: i32) -> (i32, i32, i32, i32, i32) {
    %c0_i32 = arith.constant 0 : i32
    %c0_i32_0 = arith.constant 0 : i32
    %c0_i32_1 = arith.constant 0 : i32
    %c0_i32_2 = arith.constant 0 : i32
    return %arg0, %arg1, %c0_i32, %c0_i32_0, %c0_i32_1 : i32, i32, i32, i32, i32
  }
  func.func @transform_7(%arg0: i32, %arg1: i32) -> (i32, i32, i32, i32, i32) {
    %c0_i32 = arith.constant 0 : i32
    %c0_i32_0 = arith.constant 0 : i32
    %c0_i32_1 = arith.constant 0 : i32
    %c0_i32_2 = arith.constant 0 : i32
    return %arg0, %arg1, %c0_i32, %c0_i32_0, %c0_i32_1 : i32, i32, i32, i32, i32
  }
  func.func @transform_8(%arg0: i32, %arg1: i32) -> (i32, i32, i32, i32, i32) {
    %c0_i32 = arith.constant 0 : i32
    %c0_i32_0 = arith.constant 0 : i32
    %c0_i32_1 = arith.constant 0 : i32
    %c0_i32_2 = arith.constant 0 : i32
    return %arg0, %arg1, %c0_i32, %c0_i32_0, %c0_i32_1 : i32, i32, i32, i32, i32
  }
  func.func @transform_9(%arg0: i32, %arg1: i32) -> (i32, i32, i32, i32) {
    %c0_i32 = arith.constant 0 : i32
    %c0_i32_0 = arith.constant 0 : i32
    %c0_i32_1 = arith.constant 0 : i32
    return %arg0, %arg1, %c0_i32, %c0_i32_0 : i32, i32, i32, i32
  }
  func.func @transform_10(%arg0: i32, %arg1: i32) -> (i32, i32, i32, i32) {
    %c0_i32 = arith.constant 0 : i32
    %c0_i32_0 = arith.constant 0 : i32
    %c0_i32_1 = arith.constant 0 : i32
    return %arg0, %arg1, %c0_i32, %c0_i32_0 : i32, i32, i32, i32
  }
  func.func @transform_11(%arg0: i32, %arg1: i32) -> (i32, i32, i32, i32) {
    %c0_i32 = arith.constant 0 : i32
    %c0_i32_0 = arith.constant 0 : i32
    %c0_i32_1 = arith.constant 0 : i32
    return %arg0, %arg1, %c0_i32, %c0_i32_0 : i32, i32, i32, i32
  }
  func.func @transform_12(%arg0: i32, %arg1: i32) -> (i32, i32, i32, i32) {
    %c0_i32 = arith.constant 0 : i32
    %c0_i32_0 = arith.constant 0 : i32
    %c0_i32_1 = arith.constant 0 : i32
    return %arg0, %arg1, %c0_i32, %c0_i32_0 : i32, i32, i32, i32
  }
  func.func @transform_13(%arg0: i32, %arg1: i32) -> (i32, i32, i32) {
    %c0_i32 = arith.constant 0 : i32
    %c0_i32_0 = arith.constant 0 : i32
    %c0_i32_1 = arith.constant 0 : i32
    return %arg0, %c0_i32, %c0_i32_0 : i32, i32, i32
  }
  func.func @transform_14(%arg0: i32, %arg1: i32) -> (i32, i32, i32) {
    %c0_i32 = arith.constant 0 : i32
    %c0_i32_0 = arith.constant 0 : i32
    %c0_i32_1 = arith.constant 0 : i32
    return %arg0, %c0_i32, %c0_i32_0 : i32, i32, i32
  }
  func.func @transform_15(%arg0: i32, %arg1: i32) -> (i32, i32) {
    %c0_i32 = arith.constant 0 : i32
    %c0_i32_0 = arith.constant 0 : i32
    %c0_i32_1 = arith.constant 0 : i32
    return %c0_i32, %c0_i32_0 : i32, i32
  }
  func.func @transform_16(%arg0: i32, %arg1: i32) -> (i32, i32) {
    %c0_i32 = arith.constant 0 : i32
    %c0_i32_0 = arith.constant 0 : i32
    %c0_i32_1 = arith.constant 0 : i32
    return %c0_i32, %c0_i32_0 : i32, i32
  }
}

</mosaic_0001>

<llo_original>
// kernel: tpu_custom_call.1
$region0: #{tpu_custom_call.1}
  #allocation0 [shape = 'u32[]', space=smem, size = 0x4, offset = 0x4, fixed_abs, tag = 'smem constant byte address 0x4 - core index']
  #allocation1 [shape = 'u32[144,128]{1,0:T(1,128)}', space=vmem, size = 0x12000, scoped, tag = 'internal scratch']
  #allocation2 [shape = 'f32[16,128]{1,0:T(8,128)}', space=vmem, size = 0x2000, scoped, tag = 'scratch operand']
  #allocation3 [shape = 'f32[16,128]{1,0:T(8,128)}', space=vmem, size = 0x2000, scoped, tag = 'scratch operand']
  #allocation4 [shape = 'f32[16,1]{1,0:T(8,128)}', space=vmem, size = 0x2000, scoped, tag = 'scratch operand']
  %s0 = inlined_call_operand.hbm [shape: f32[16,256], index: 0, kind: input, shape index: {}]
  %s1 = inlined_call_operand.hbm [shape: f32[2,1,256], index: 1, kind: input, shape index: {}]
  %s2 = inlined_call_operand.vmem [shape: f32[2,1,256], index: 2, kind: input, shape index: {}]
  %s3 = inlined_call_operand.hbm [shape: bf16[2,2,128,256], index: 3, kind: input, shape index: {}]
  %s4 = inlined_call_operand.vmem [shape: f32[2,2,1,256], index: 4, kind: input, shape index: {}]
  %s5 = inlined_call_operand.hbm [shape: bf16[2,2,1,128,128], index: 5, kind: input, shape index: {}]
  %s6 = inlined_call_operand.vmem [shape: f32[2,2,1,1,128], index: 6, kind: input, shape index: {}]
  %s7 = inlined_call_operand.hbm [shape: bf16[2,2,1,128,128], index: 7, kind: input, shape index: {}]
  %s8 = inlined_call_operand.vmem [shape: f32[2,2,1,1,128], index: 8, kind: input, shape index: {}]
  %s9 = inlined_call_operand.hbm [shape: bf16[2,2,128,128], index: 9, kind: input, shape index: {}]
  %s10 = inlined_call_operand.vmem [shape: f32[2,2,1,128], index: 10, kind: input, shape index: {}]
  %s11 = inlined_call_operand.hbm [shape: bf16[2,2,128,128], index: 11, kind: input, shape index: {}]
  %s12 = inlined_call_operand.vmem [shape: f32[2,2,1,128], index: 12, kind: input, shape index: {}]
  %s13 = inlined_call_operand.hbm [shape: f32[2,128,256], index: 13, kind: input, shape index: {}]
  %s14 = inlined_call_operand.hbm [shape: f32[2,128,256], index: 14, kind: input, shape index: {}]
  %s15 = inlined_call_operand.hbm [shape: f32[16,256], index: 15, kind: output, shape index: {0}]
  %s16 = inlined_call_operand.hbm [shape: f32[1,1], index: 16, kind: output, shape index: {1}]
  %17 = xla_tuple %s15, %s16
  %s18 = sld [smem:[#allocation0]]
  $region157: #{tpu_custom_call.1} parent=0
    _
  %s20 = ssub.s32 1, %s18
  %s21 = scalar_select 0, %s20, %s18
  $region1: #{tpu_custom_call.1} parent=0
    #allocation5 [shape = 'u8[16384]{0}', space=vmem, size = 0x4000, scoped, tag = 'input window, operand 0, single buffered']
    #allocation6 [shape = 's32[2]{0}', space=sflag, size = 0x8, scoped, tag = 'scoped memory for tpu_custom_call.1']
    #allocation7 [shape = 's32[2]{0}', space=sflag, size = 0x8, scoped, tag = 'scoped memory for tpu_custom_call.1']
    #allocation8 [shape = 'u8[2048]{0}', space=vmem, size = 0x800, scoped, tag = 'input window, operand 1']
    #allocation9 [shape = 's32[2]{0}', space=sflag, size = 0x8, scoped, tag = 'scoped memory for tpu_custom_call.1']
    #allocation10 [shape = 'u8[131072]{0}', space=vmem, size = 0x20000, scoped, tag = 'input window, operand 3']
    #allocation11 [shape = 'u8[65536]{0}', space=vmem, size = 0x10000, scoped, tag = 'input window, operand 5']
    #allocation12 [shape = 's32[2]{0}', space=sflag, size = 0x8, scoped, tag = 'scoped memory for tpu_custom_call.1']
    #allocation13 [shape = 'u8[65536]{0}', space=vmem, size = 0x10000, scoped, tag = 'input window, operand 7']
    #allocation14 [shape = 'u8[65536]{0}', space=vmem, size = 0x10000, scoped, tag = 'input window, operand 9']
    #allocation15 [shape = 's32[2]{0}', space=sflag, size = 0x8, scoped, tag = 'scoped memory for tpu_custom_call.1']
    #allocation16 [shape = 'u8[65536]{0}', space=vmem, size = 0x10000, scoped, tag = 'input window, operand 11']
    #allocation17 [shape = 'u8[262144]{0}', space=vmem, size = 0x40000, scoped, tag = 'input window, operand 13']
    #allocation18 [shape = 's32[2]{0}', space=sflag, size = 0x8, scoped, tag = 'scoped memory for tpu_custom_call.1']
    #allocation19 [shape = 'u8[262144]{0}', space=vmem, size = 0x40000, scoped, tag = 'input window, operand 14']
    #allocation20 [shape = 'u8[16384]{0}', space=vmem, size = 0x4000, scoped, tag = 'output window, operand 0, single buffered']
    #allocation21 [shape = 'u8[512]{0}', space=vmem, size = 0x400, scoped, tag = 'output window, operand 1, single buffered']
    #allocation22 [shape = 's32[1]{0}', space=sflag, size = 0x4, scoped, tag = 'scoped memory for tpu_custom_call.1']
    %22 = vsyncpa [#allocation6], 0
    %23 = vsyncpa [#allocation9], 0
    %s24 = scalar_lea.sflag [#allocation9], 1
    %25 = vsyncpa %s24, 0
    %26 = vsyncpa [#allocation12], 0
    %s27 = scalar_lea.sflag [#allocation12], 1
    %28 = vsyncpa %s27, 0
    %29 = vsyncpa [#allocation15], 0
    %s30 = scalar_lea.sflag [#allocation15], 1
    %31 = vsyncpa %s30, 0
    %32 = vsyncpa [#allocation18], 0
    %s33 = scalar_lea.sflag [#allocation18], 1
    %34 = vsyncpa %s33, 0
    %35 = vsyncpa [#allocation7], 0
    %36 = vsyncpa [#allocation22], 0
    loop: start=0, step=1, limit=6
    $region2: #{tpu_custom_call.1} parent=1 // loop_pre_header
      _
    $region3: #{tpu_custom_call.1} parent=1 // loop_header
      %s38 = sphi 0, %s42
      %p39 = scmp.ge.s32.totalorder %s38, 6
      %s45 = sphi 0, %s57
      %s46 = sphi 0, %s53
      %s47 = sphi 0, %s45
      %s48 = sphi 0, %s46
      %s49 = sphi 0, %s47
      %s50 = sphi 0, %s48
      %s58 = sphi 0, %s58
      %s60 = sphi 0, %s58
      %s61 = sphi 0, %s60
      %s75 = sphi 0, %s61
      %s81 = sphi 0, %s83
      %s84 = sphi 0, %s81
      %s85 = sphi 0, %s84
      %s101 = sphi 0, %s85
      %s107 = sphi 0, %s109
      %s110 = sphi 0, %s107
      %s111 = sphi 0, %s110
      %s127 = sphi 0, %s111
      %s135 = sphi 0, %s137
      %s138 = sphi 0, %s135
      %s139 = sphi 0, %s138
      %s155 = sphi 0, %s139
      %s163 = sphi 0, %s165
      %s166 = sphi 0, %s163
      %s167 = sphi 0, %s166
      %s183 = sphi 0, %s167
      %s191 = sphi 0, %s193
      %s194 = sphi 0, %s191
      %s195 = sphi 0, %s194
      %s211 = sphi 0, %s195
      %s219 = sphi 0, %s221
      %s222 = sphi 0, %s219
      %s223 = sphi 0, %s222
      %s239 = sphi 0, %s223
      %s247 = sphi 0, %s249
      %s250 = sphi 0, %s247
      %s251 = sphi 0, %s250
      %s267 = sphi 0, %s251
      %s275 = sphi 0, %s277
      %s278 = sphi 0, %s275
      %s279 = sphi 0, %s278
      %s295 = sphi 0, %s279
      %s303 = sphi 0, %s305
      %s306 = sphi 0, %s303
      %s307 = sphi 0, %s306
      %s323 = sphi 0, %s307
      %s331 = sphi 0, %s333
      %s334 = sphi 0, %s331
      %s335 = sphi 0, %s334
      %s351 = sphi 0, %s335
      %s359 = sphi 0, %s361
      %s362 = sphi 0, %s359
      %s363 = sphi 0, %s362
      %s379 = sphi 0, %s363
      %s387 = sphi 0, %s389
      %s390 = sphi 0, %s387
      %s391 = sphi 0, %s390
      %s407 = sphi 0, %s391
      %s413 = sphi 0, %s415
      %s416 = sphi 0, %s413
      %s417 = sphi 0, %s416
      %s433 = sphi 0, %s417
      %s439 = sphi 0, %s441
      %s442 = sphi 0, %s439
      %s443 = sphi 0, %s442
      %s459 = sphi 0, %s443
      %s463 = sphi 0, %s463
      %s465 = sphi 0, %s463
      %s466 = sphi 0, %s465
      %s480 = sphi 0, %s466
      %s484 = sphi 0, %s484
      %s486 = sphi 0, %s484
      %s487 = sphi 0, %s486
      %s501 = sphi 0, %s487
    $region4: #{tpu_custom_call.1} parent=1 // loop_header_branch
      %41 = sbr.rel (%p39) target = $region8
    $region5: #{tpu_custom_call.1} parent=1 // loop_body
      %s43 = ssub.s32 %s38, 1
      %s44 = ssub.s32 %s38, 2
      %s51 = sadd.s32 1, %s46
      %p52 = scmp.ge.s32.totalorder %s51, 2
      %s53 = scalar_select %p52, 0, %s51
      %s54 = sadd.s32 1, %s45
      %s55 = scalar_select %p52, %s54, %s45
      %p56 = scmp.ge.s32.totalorder %s55, 2
      %s57 = scalar_select %p56, 0, %s55
      %s59 = sadd.s32 %s58, 1
      %p62 = scmp.eq.s32.totalorder %s38, 3
      %p63 = scmp.ne.s32.totalorder %s58, %s60
      %p64 = scmp.eq.s32.totalorder %s38, 0
      %p65 = por %p63, %p64
      %p66 = scmp.ne.s32.totalorder %s58, %s60
      %p67 = scmp.eq.s32.totalorder %s43, 3
      %p68 = por %p66, %p67
      %p69 = scmp.ne.s32.totalorder %s60, %s61
      %p70 = scmp.eq.s32.totalorder %s43, 0
      %p71 = por %p69, %p70
      %p72 = scmp.ne.s32.totalorder %s60, %s61
      %p73 = scmp.eq.s32.totalorder %s44, 3
      %p74 = por %p72, %p73
      %p76 = scmp.ne.s32.totalorder %s61, %s75
      %p77 = scmp.eq.s32.totalorder %s44, 0
      %p78 = por %p76, %p77
      %s79 = ssub.s32 %s45, %s57
      %p80 = scmp.eq.s32.totalorder %s79, 0
      %s82 = sadd.s32 %s81, 1
      %s83 = scalar_select %p80, %s81, %s82
      %p86 = pneg %p80
      %p87 = scmp.eq.s32.totalorder %s38, 3
      %p88 = por %p86, %p87
      %p89 = scmp.ne.s32.totalorder %s81, %s84
      %p90 = scmp.eq.s32.totalorder %s38, 0
      %p91 = por %p89, %p90
      %p92 = scmp.ne.s32.totalorder %s81, %s84
      %p93 = scmp.eq.s32.totalorder %s43, 3
      %p94 = por %p92, %p93
      %p95 = scmp.ne.s32.totalorder %s84, %s85
      %p96 = scmp.eq.s32.totalorder %s43, 0
      %p97 = por %p95, %p96
      %p98 = scmp.ne.s32.totalorder %s84, %s85
      %p99 = scmp.eq.s32.totalorder %s44, 3
      %p100 = por %p98, %p99
      %p102 = scmp.ne.s32.totalorder %s85, %s101
      %p103 = scmp.eq.s32.totalorder %s44, 0
      %p104 = por %p102, %p103
      %s105 = ssub.s32 %s45, %s57
      %p106 = scmp.eq.s32.totalorder %s105, 0
      %s108 = sadd.s32 %s107, 1
      %s109 = scalar_select %p106, %s107, %s108
      %p112 = pneg %p106
      %p113 = scmp.eq.s32.totalorder %s38, 3
      %p114 = por %p112, %p113
      %p115 = scmp.ne.s32.totalorder %s107, %s110
      %p116 = scmp.eq.s32.totalorder %s38, 0
      %p117 = por %p115, %p116
      %p118 = scmp.ne.s32.totalorder %s107, %s110
      %p119 = scmp.eq.s32.totalorder %s43, 3
      %p120 = por %p118, %p119
      %p121 = scmp.ne.s32.totalorder %s110, %s111
      %p122 = scmp.eq.s32.totalorder %s43, 0
      %p123 = por %p121, %p122
      %p124 = scmp.ne.s32.totalorder %s110, %s111
      %p125 = scmp.eq.s32.totalorder %s44, 3
      %p126 = por %p124, %p125
      %p128 = scmp.ne.s32.totalorder %s111, %s127
      %p129 = scmp.eq.s32.totalorder %s44, 0
      %p130 = por %p128, %p129
      %s131 = ssub.s32 %s45, %s57
      %s132 = ssub.s32 %s46, %s53
      %s133 = sor.u32 %s131, %s132
      %p134 = scmp.eq.s32.totalorder %s133, 0
      %s136 = sadd.s32 %s135, 1
      %s137 = scalar_select %p134, %s135, %s136
      %p140 = pneg %p134
      %p141 = scmp.eq.s32.totalorder %s38, 3
      %p142 = por %p140, %p141
      %p143 = scmp.ne.s32.totalorder %s135, %s138
      %p144 = scmp.eq.s32.totalorder %s38, 0
      %p145 = por %p143, %p144
      %p146 = scmp.ne.s32.totalorder %s135, %s138
      %p147 = scmp.eq.s32.totalorder %s43, 3
      %p148 = por %p146, %p147
      %p149 = scmp.ne.s32.totalorder %s138, %s139
      %p150 = scmp.eq.s32.totalorder %s43, 0
      %p151 = por %p149, %p150
      %p152 = scmp.ne.s32.totalorder %s138, %s139
      %p153 = scmp.eq.s32.totalorder %s44, 3
      %p154 = por %p152, %p153
      %p156 = scmp.ne.s32.totalorder %s139, %s155
      %p157 = scmp.eq.s32.totalorder %s44, 0
      %p158 = por %p156, %p157
      %s159 = ssub.s32 %s45, %s57
      %s160 = ssub.s32 %s46, %s53
      %s161 = sor.u32 %s159, %s160
      %p162 = scmp.eq.s32.totalorder %s161, 0
      %s164 = sadd.s32 %s163, 1
      %s165 = scalar_select %p162, %s163, %s164
      %p168 = pneg %p162
      %p169 = scmp.eq.s32.totalorder %s38, 3
      %p170 = por %p168, %p169
      %p171 = scmp.ne.s32.totalorder %s163, %s166
      %p172 = scmp.eq.s32.totalorder %s38, 0
      %p173 = por %p171, %p172
      %p174 = scmp.ne.s32.totalorder %s163, %s166
      %p175 = scmp.eq.s32.totalorder %s43, 3
      %p176 = por %p174, %p175
      %p177 = scmp.ne.s32.totalorder %s166, %s167
      %p178 = scmp.eq.s32.totalorder %s43, 0
      %p179 = por %p177, %p178
      %p180 = scmp.ne.s32.totalorder %s166, %s167
      %p181 = scmp.eq.s32.totalorder %s44, 3
      %p182 = por %p180, %p181
      %p184 = scmp.ne.s32.totalorder %s167, %s183
      %p185 = scmp.eq.s32.totalorder %s44, 0
      %p186 = por %p184, %p185
      %s187 = ssub.s32 %s45, %s57
      %s188 = ssub.s32 %s46, %s53
      %s189 = sor.u32 %s187, %s188
      %p190 = scmp.eq.s32.totalorder %s189, 0
      %s192 = sadd.s32 %s191, 1
      %s193 = scalar_select %p190, %s191, %s192
      %p196 = pneg %p190
      %p197 = scmp.eq.s32.totalorder %s38, 3
      %p198 = por %p196, %p197
      %p199 = scmp.ne.s32.totalorder %s191, %s194
      %p200 = scmp.eq.s32.totalorder %s38, 0
      %p201 = por %p199, %p200
      %p202 = scmp.ne.s32.totalorder %s191, %s194
      %p203 = scmp.eq.s32.totalorder %s43, 3
      %p204 = por %p202, %p203
      %p205 = scmp.ne.s32.totalorder %s194, %s195
      %p206 = scmp.eq.s32.totalorder %s43, 0
      %p207 = por %p205, %p206
      %p208 = scmp.ne.s32.totalorder %s194, %s195
      %p209 = scmp.eq.s32.totalorder %s44, 3
      %p210 = por %p208, %p209
      %p212 = scmp.ne.s32.totalorder %s195, %s211
      %p213 = scmp.eq.s32.totalorder %s44, 0
      %p214 = por %p212, %p213
      %s215 = ssub.s32 %s45, %s57
      %s216 = ssub.s32 %s46, %s53
      %s217 = sor.u32 %s215, %s216
      %p218 = scmp.eq.s32.totalorder %s217, 0
      %s220 = sadd.s32 %s219, 1
      %s221 = scalar_select %p218, %s219, %s220
      %p224 = pneg %p218
      %p225 = scmp.eq.s32.totalorder %s38, 3
      %p226 = por %p224, %p225
      %p227 = scmp.ne.s32.totalorder %s219, %s222
      %p228 = scmp.eq.s32.totalorder %s38, 0
      %p229 = por %p227, %p228
      %p230 = scmp.ne.s32.totalorder %s219, %s222
      %p231 = scmp.eq.s32.totalorder %s43, 3
      %p232 = por %p230, %p231
      %p233 = scmp.ne.s32.totalorder %s222, %s223
      %p234 = scmp.eq.s32.totalorder %s43, 0
      %p235 = por %p233, %p234
      %p236 = scmp.ne.s32.totalorder %s222, %s223
      %p237 = scmp.eq.s32.totalorder %s44, 3
      %p238 = por %p236, %p237
      %p240 = scmp.ne.s32.totalorder %s223, %s239
      %p241 = scmp.eq.s32.totalorder %s44, 0
      %p242 = por %p240, %p241
      %s243 = ssub.s32 %s45, %s57
      %s244 = ssub.s32 %s46, %s53
      %s245 = sor.u32 %s243, %s244
      %p246 = scmp.eq.s32.totalorder %s245, 0
      %s248 = sadd.s32 %s247, 1
      %s249 = scalar_select %p246, %s247, %s248
      %p252 = pneg %p246
      %p253 = scmp.eq.s32.totalorder %s38, 3
      %p254 = por %p252, %p253
      %p255 = scmp.ne.s32.totalorder %s247, %s250
      %p256 = scmp.eq.s32.totalorder %s38, 0
      %p257 = por %p255, %p256
      %p258 = scmp.ne.s32.totalorder %s247, %s250
      %p259 = scmp.eq.s32.totalorder %s43, 3
      %p260 = por %p258, %p259
      %p261 = scmp.ne.s32.totalorder %s250, %s251
      %p262 = scmp.eq.s32.totalorder %s43, 0
      %p263 = por %p261, %p262
      %p264 = scmp.ne.s32.totalorder %s250, %s251
      %p265 = scmp.eq.s32.totalorder %s44, 3
      %p266 = por %p264, %p265
      %p268 = scmp.ne.s32.totalorder %s251, %s267
      %p269 = scmp.eq.s32.totalorder %s44, 0
      %p270 = por %p268, %p269
      %s271 = ssub.s32 %s45, %s57
      %s272 = ssub.s32 %s46, %s53
      %s273 = sor.u32 %s271, %s272
      %p274 = scmp.eq.s32.totalorder %s273, 0
      %s276 = sadd.s32 %s275, 1
      %s277 = scalar_select %p274, %s275, %s276
      %p280 = pneg %p274
      %p281 = scmp.eq.s32.totalorder %s38, 3
      %p282 = por %p280, %p281
      %p283 = scmp.ne.s32.totalorder %s275, %s278
      %p284 = scmp.eq.s32.totalorder %s38, 0
      %p285 = por %p283, %p284
      %p286 = scmp.ne.s32.totalorder %s275, %s278
      %p287 = scmp.eq.s32.totalorder %s43, 3
      %p288 = por %p286, %p287
      %p289 = scmp.ne.s32.totalorder %s278, %s279
      %p290 = scmp.eq.s32.totalorder %s43, 0
      %p291 = por %p289, %p290
      %p292 = scmp.ne.s32.totalorder %s278, %s279
      %p293 = scmp.eq.s32.totalorder %s44, 3
      %p294 = por %p292, %p293
      %p296 = scmp.ne.s32.totalorder %s279, %s295
      %p297 = scmp.eq.s32.totalorder %s44, 0
      %p298 = por %p296, %p297
      %s299 = ssub.s32 %s45, %s57
      %s300 = ssub.s32 %s46, %s53
      %s301 = sor.u32 %s299, %s300
      %p302 = scmp.eq.s32.totalorder %s301, 0
      %s304 = sadd.s32 %s303, 1
      %s305 = scalar_select %p302, %s303, %s304
      %p308 = pneg %p302
      %p309 = scmp.eq.s32.totalorder %s38, 3
      %p310 = por %p308, %p309
      %p311 = scmp.ne.s32.totalorder %s303, %s306
      %p312 = scmp.eq.s32.totalorder %s38, 0
      %p313 = por %p311, %p312
      %p314 = scmp.ne.s32.totalorder %s303, %s306
      %p315 = scmp.eq.s32.totalorder %s43, 3
      %p316 = por %p314, %p315
      %p317 = scmp.ne.s32.totalorder %s306, %s307
      %p318 = scmp.eq.s32.totalorder %s43, 0
      %p319 = por %p317, %p318
      %p320 = scmp.ne.s32.totalorder %s306, %s307
      %p321 = scmp.eq.s32.totalorder %s44, 3
      %p322 = por %p320, %p321
      %p324 = scmp.ne.s32.totalorder %s307, %s323
      %p325 = scmp.eq.s32.totalorder %s44, 0
      %p326 = por %p324, %p325
      %s327 = ssub.s32 %s45, %s57
      %s328 = ssub.s32 %s46, %s53
      %s329 = sor.u32 %s327, %s328
      %p330 = scmp.eq.s32.totalorder %s329, 0
      %s332 = sadd.s32 %s331, 1
      %s333 = scalar_select %p330, %s331, %s332
      %p336 = pneg %p330
      %p337 = scmp.eq.s32.totalorder %s38, 3
      %p338 = por %p336, %p337
      %p339 = scmp.ne.s32.totalorder %s331, %s334
      %p340 = scmp.eq.s32.totalorder %s38, 0
      %p341 = por %p339, %p340
      %p342 = scmp.ne.s32.totalorder %s331, %s334
      %p343 = scmp.eq.s32.totalorder %s43, 3
      %p344 = por %p342, %p343
      %p345 = scmp.ne.s32.totalorder %s334, %s335
      %p346 = scmp.eq.s32.totalorder %s43, 0
      %p347 = por %p345, %p346
      %p348 = scmp.ne.s32.totalorder %s334, %s335
      %p349 = scmp.eq.s32.totalorder %s44, 3
      %p350 = por %p348, %p349
      %p352 = scmp.ne.s32.totalorder %s335, %s351
      %p353 = scmp.eq.s32.totalorder %s44, 0
      %p354 = por %p352, %p353
      %s355 = ssub.s32 %s45, %s57
      %s356 = ssub.s32 %s46, %s53
      %s357 = sor.u32 %s355, %s356
      %p358 = scmp.eq.s32.totalorder %s357, 0
      %s360 = sadd.s32 %s359, 1
      %s361 = scalar_select %p358, %s359, %s360
      %p364 = pneg %p358
      %p365 = scmp.eq.s32.totalorder %s38, 3
      %p366 = por %p364, %p365
      %p367 = scmp.ne.s32.totalorder %s359, %s362
      %p368 = scmp.eq.s32.totalorder %s38, 0
      %p369 = por %p367, %p368
      %p370 = scmp.ne.s32.totalorder %s359, %s362
      %p371 = scmp.eq.s32.totalorder %s43, 3
      %p372 = por %p370, %p371
      %p373 = scmp.ne.s32.totalorder %s362, %s363
      %p374 = scmp.eq.s32.totalorder %s43, 0
      %p375 = por %p373, %p374
      %p376 = scmp.ne.s32.totalorder %s362, %s363
      %p377 = scmp.eq.s32.totalorder %s44, 3
      %p378 = por %p376, %p377
      %p380 = scmp.ne.s32.totalorder %s363, %s379
      %p381 = scmp.eq.s32.totalorder %s44, 0
      %p382 = por %p380, %p381
      %s383 = ssub.s32 %s45, %s57
      %s384 = ssub.s32 %s46, %s53
      %s385 = sor.u32 %s383, %s384
      %p386 = scmp.eq.s32.totalorder %s385, 0
      %s388 = sadd.s32 %s387, 1
      %s389 = scalar_select %p386, %s387, %s388
      %p392 = pneg %p386
      %p393 = scmp.eq.s32.totalorder %s38, 3
      %p394 = por %p392, %p393
      %p395 = scmp.ne.s32.totalorder %s387, %s390
      %p396 = scmp.eq.s32.totalorder %s38, 0
      %p397 = por %p395, %p396
      %p398 = scmp.ne.s32.totalorder %s387, %s390
      %p399 = scmp.eq.s32.totalorder %s43, 3
      %p400 = por %p398, %p399
      %p401 = scmp.ne.s32.totalorder %s390, %s391
      %p402 = scmp.eq.s32.totalorder %s43, 0
      %p403 = por %p401, %p402
      %p404 = scmp.ne.s32.totalorder %s390, %s391
      %p405 = scmp.eq.s32.totalorder %s44, 3
      %p406 = por %p404, %p405
      %p408 = scmp.ne.s32.totalorder %s391, %s407
      %p409 = scmp.eq.s32.totalorder %s44, 0
      %p410 = por %p408, %p409
      %s411 = ssub.s32 %s45, %s57
      %p412 = scmp.eq.s32.totalorder %s411, 0
      %s414 = sadd.s32 %s413, 1
      %s415 = scalar_select %p412, %s413, %s414
      %p418 = pneg %p412
      %p419 = scmp.eq.s32.totalorder %s38, 3
      %p420 = por %p418, %p419
      %p421 = scmp.ne.s32.totalorder %s413, %s416
      %p422 = scmp.eq.s32.totalorder %s38, 0
      %p423 = por %p421, %p422
      %p424 = scmp.ne.s32.totalorder %s413, %s416
      %p425 = scmp.eq.s32.totalorder %s43, 3
      %p426 = por %p424, %p425
      %p427 = scmp.ne.s32.totalorder %s416, %s417
      %p428 = scmp.eq.s32.totalorder %s43, 0
      %p429 = por %p427, %p428
      %p430 = scmp.ne.s32.totalorder %s416, %s417
      %p431 = scmp.eq.s32.totalorder %s44, 3
      %p432 = por %p430, %p431
      %p434 = scmp.ne.s32.totalorder %s417, %s433
      %p435 = scmp.eq.s32.totalorder %s44, 0
      %p436 = por %p434, %p435
      %s437 = ssub.s32 %s45, %s57
      %p438 = scmp.eq.s32.totalorder %s437, 0
      %s440 = sadd.s32 %s439, 1
      %s441 = scalar_select %p438, %s439, %s440
      %p444 = pneg %p438
      %p445 = scmp.eq.s32.totalorder %s38, 3
      %p446 = por %p444, %p445
      %p447 = scmp.ne.s32.totalorder %s439, %s442
      %p448 = scmp.eq.s32.totalorder %s38, 0
      %p449 = por %p447, %p448
      %p450 = scmp.ne.s32.totalorder %s439, %s442
      %p451 = scmp.eq.s32.totalorder %s43, 3
      %p452 = por %p450, %p451
      %p453 = scmp.ne.s32.totalorder %s442, %s443
      %p454 = scmp.eq.s32.totalorder %s43, 0
      %p455 = por %p453, %p454
      %p456 = scmp.ne.s32.totalorder %s442, %s443
      %p457 = scmp.eq.s32.totalorder %s44, 3
      %p458 = por %p456, %p457
      %p460 = scmp.ne.s32.totalorder %s443, %s459
      %p461 = scmp.eq.s32.totalorder %s44, 0
      %p462 = por %p460, %p461
      %s464 = sadd.s32 %s463, 1
      %p467 = scmp.eq.s32.totalorder %s38, 3
      %p468 = scmp.ne.s32.totalorder %s463, %s465
      %p469 = scmp.eq.s32.totalorder %s38, 0
      %p470 = por %p468, %p469
      %p471 = scmp.ne.s32.totalorder %s463, %s465
      %p472 = scmp.eq.s32.totalorder %s43, 3
      %p473 = por %p471, %p472
      %p474 = scmp.ne.s32.totalorder %s465, %s466
      %p475 = scmp.eq.s32.totalorder %s43, 0
      %p476 = por %p474, %p475
      %p477 = scmp.ne.s32.totalorder %s465, %s466
      %p478 = scmp.eq.s32.totalorder %s44, 3
      %p479 = por %p477, %p478
      %p481 = scmp.ne.s32.totalorder %s466, %s480
      %p482 = scmp.eq.s32.totalorder %s44, 0
      %p483 = por %p481, %p482
      %s485 = sadd.s32 %s484, 1
      %p488 = scmp.eq.s32.totalorder %s38, 3
      %p489 = scmp.ne.s32.totalorder %s484, %s486
      %p490 = scmp.eq.s32.totalorder %s38, 0
      %p491 = por %p489, %p490
      %p492 = scmp.ne.s32.totalorder %s484, %s486
      %p493 = scmp.eq.s32.totalorder %s43, 3
      %p494 = por %p492, %p493
      %p495 = scmp.ne.s32.totalorder %s486, %s487
      %p496 = scmp.eq.s32.totalorder %s43, 0
      %p497 = por %p495, %p496
      %p498 = scmp.ne.s32.totalorder %s486, %s487
      %p499 = scmp.eq.s32.totalorder %s44, 3
      %p500 = por %p498, %p499
      %p502 = scmp.ne.s32.totalorder %s487, %s501
      %p503 = scmp.eq.s32.totalorder %s44, 0
      %p504 = por %p502, %p503
      %p505 = scmp.le.s32.totalorder 1, %s38
      %p506 = scmp.lt.s32.totalorder %s38, 5
      %p507 = pnand %p505, %p506
      %p508 = pneg %p507
      // Predicated region
      $region9: #{tpu_custom_call.1} parent=5 // pred_check
        _
      $region10: #{tpu_custom_call.1} parent=5 // pred_check_branch
        %510 = sbr.rel (%p507) target = $region12
      $region11: #{tpu_custom_call.1} parent=5 // pred_region
        %s511 = ssub.s32 %s38, 1
        // Predicated region
        $region13: #{tpu_custom_call.1} parent=11 // pred_check
          %p512 = pneg %p71
        $region14: #{tpu_custom_call.1} parent=11 // pred_check_branch
          %514 = sbr.rel (%p512) target = $region16
        $region15: #{tpu_custom_call.1} parent=11 // pred_region
          %s516 = ssub.s32 512, 512
          %517 = vsyncadd [#allocation6], %s516
          %s518 = sshll.u32 [#allocation5], 4
          %s519 = int_to_ptr.vmem [resolvable:$true] %s518
          %524 = dma.hbm_to_vmem [thread:$0]  %s0, 512, %s519, [#allocation6], 256, 256, 16
        $region16: #{tpu_custom_call.1} parent=11 // pred_fallthru
          _
      $region12: #{tpu_custom_call.1} parent=5 // pred_fallthru
        _
      %p525 = scmp.lt.s32.totalorder %s38, 4
      // Predicated region
      $region17: #{tpu_custom_call.1} parent=5 // pred_check
        %p526 = pneg %p525
      $region18: #{tpu_custom_call.1} parent=5 // pred_check_branch
        %528 = sbr.rel (%p526) target = $region20
      $region19: #{tpu_custom_call.1} parent=5 // pred_region
        // Predicated region
        $region21: #{tpu_custom_call.1} parent=19 // pred_check
          %p529 = pneg %p91
        $region22: #{tpu_custom_call.1} parent=19 // pred_check_branch
          %531 = sbr.rel (%p529) target = $region24
        $region23: #{tpu_custom_call.1} parent=19 // pred_region
          %s532 = sand.u32 %s38, 1
          %s533 = scalar_lea.sflag [#allocation9], %s532
          %s534 = sand.u32 %s81, 1
          %s535 = smul.addr %s534, 2
          %s536 = scalar_lea.vmem [#allocation8], %s535
          %s538 = ssub.s32 32, 32
          %539 = vsyncadd %s533, %s538
          %s540 = smul.addr %s45, 2
          %s541 = smul.addr %s540, 16
          %s542 = scalar_lea.hbm %s1, %s541
          %s544 = sshll.u32 %s536, 4
          %s545 = int_to_ptr.vmem [resolvable:$true] %s544
          %547 = dma.hbm_to_vmem [thread:$0]  %s542, 32, %s545, %s533
        $region24: #{tpu_custom_call.1} parent=19 // pred_fallthru
          _
        // Predicated region
        $region25: #{tpu_custom_call.1} parent=19 // pred_check
          %p548 = pneg %p117
        $region26: #{tpu_custom_call.1} parent=19 // pred_check_branch
          %550 = sbr.rel (%p548) target = $region28
        $region27: #{tpu_custom_call.1} parent=19 // pred_region
          %p551 = scmp.lt.s32.totalorder %s45, 1
          %s552 = scalar_select %p551, %s45, 1
          %s553 = smul.addr %s552, 2
          %s554 = scalar_lea.vmem %s2, %s553
        $region28: #{tpu_custom_call.1} parent=19 // pred_fallthru
          _
        // Predicated region
        $region29: #{tpu_custom_call.1} parent=19 // pred_check
          %p555 = pneg %p145
        $region30: #{tpu_custom_call.1} parent=19 // pred_check_branch
          %557 = sbr.rel (%p555) target = $region32
        $region31: #{tpu_custom_call.1} parent=19 // pred_region
          %s558 = sand.u32 %s38, 1
          %s559 = scalar_lea.sflag [#allocation9], %s558
          %s560 = sand.u32 %s135, 1
          %s561 = smul.addr %s560, 128
          %s562 = scalar_lea.vmem [#allocation10], %s561
          %s564 = ssub.s32 2048, 2048
          %565 = vsyncadd %s559, %s564
          %s566 = smul.addr %s46, 32
          %s567 = smul.addr %s45, 64
          %s568 = sadd.s32 %s566, %s567
          %s569 = smul.addr %s568, 64
          %s570 = scalar_lea.hbm %s3, %s569
          %s571 = sshll.u32 %s562, 4
          %s572 = int_to_ptr.vmem [resolvable:$true] %s571
          %577 = dma.hbm_to_vmem [thread:$0]  %s570, 2048, %s572, %s559, 128, 128, 8
        $region32: #{tpu_custom_call.1} parent=19 // pred_fallthru
          _
        // Predicated region
        $region33: #{tpu_custom_call.1} parent=19 // pred_check
          %p578 = pneg %p173
        $region34: #{tpu_custom_call.1} parent=19 // pred_check_branch
          %580 = sbr.rel (%p578) target = $region36
        $region35: #{tpu_custom_call.1} parent=19 // pred_region
          %p581 = scmp.lt.s32.totalorder %s45, 1
          %s582 = scalar_select %p581, %s45, 1
          %p583 = scmp.lt.s32.totalorder %s46, 1
          %s584 = scalar_select %p583, %s46, 1
          %s585 = smul.addr %s584, 2
          %s586 = smul.addr %s582, 4
          %s587 = sadd.s32 %s585, %s586
          %s588 = scalar_lea.vmem %s4, %s587
        $region36: #{tpu_custom_call.1} parent=19 // pred_fallthru
          _
        // Predicated region
        $region37: #{tpu_custom_call.1} parent=19 // pred_check
          %p589 = pneg %p201
        $region38: #{tpu_custom_call.1} parent=19 // pred_check_branch
          %591 = sbr.rel (%p589) target = $region40
        $region39: #{tpu_custom_call.1} parent=19 // pred_region
          %s592 = sand.u32 %s38, 1
          %s593 = scalar_lea.sflag [#allocation12], %s592
          %s594 = sand.u32 %s191, 1
          %s595 = smul.addr %s594, 64
          %s596 = scalar_lea.vmem [#allocation11], %s595
          %s598 = ssub.s32 1024, 1024
          %599 = vsyncadd %s593, %s598
          %s600 = smul.addr %s46, 16
          %s601 = smul.addr %s45, 32
          %s602 = sadd.s32 %s600, %s601
          %s603 = smul.addr %s602, 64
          %s604 = scalar_lea.hbm %s5, %s603
          %s605 = sshll.u32 %s596, 4
          %s606 = int_to_ptr.vmem [resolvable:$true] %s605
          %611 = dma.hbm_to_vmem [thread:$0]  %s604, 1024, %s606, %s593, 64, 64, 4
        $region40: #{tpu_custom_call.1} parent=19 // pred_fallthru
          _
        // Predicated region
        $region41: #{tpu_custom_call.1} parent=19 // pred_check
          %p612 = pneg %p229
        $region42: #{tpu_custom_call.1} parent=19 // pred_check_branch
          %614 = sbr.rel (%p612) target = $region44
        $region43: #{tpu_custom_call.1} parent=19 // pred_region
          %p615 = scmp.lt.s32.totalorder %s45, 1
          %s616 = scalar_select %p615, %s45, 1
          %p617 = scmp.lt.s32.totalorder %s46, 1
          %s618 = scalar_select %p617, %s46, 1
          %s619 = smul.addr %s616, 2
          %s620 = sadd.s32 %s618, %s619
          %s621 = scalar_lea.vmem %s6, %s620
        $region44: #{tpu_custom_call.1} parent=19 // pred_fallthru
          _
        // Predicated region
        $region45: #{tpu_custom_call.1} parent=19 // pred_check
          %p622 = pneg %p257
        $region46: #{tpu_custom_call.1} parent=19 // pred_check_branch
          %624 = sbr.rel (%p622) target = $region48
        $region47: #{tpu_custom_call.1} parent=19 // pred_region
          %s625 = sand.u32 %s38, 1
          %s626 = scalar_lea.sflag [#allocation12], %s625
          %s627 = sand.u32 %s247, 1
          %s628 = smul.addr %s627, 64
          %s629 = scalar_lea.vmem [#allocation13], %s628
          %s631 = ssub.s32 1024, 1024
          %632 = vsyncadd %s626, %s631
          %s633 = smul.addr %s46, 16
          %s634 = smul.addr %s45, 32
          %s635 = sadd.s32 %s633, %s634
          %s636 = smul.addr %s635, 64
          %s637 = scalar_lea.hbm %s7, %s636
          %s638 = sshll.u32 %s629, 4
          %s639 = int_to_ptr.vmem [resolvable:$true] %s638
          %644 = dma.hbm_to_vmem [thread:$0]  %s637, 1024, %s639, %s626, 64, 64, 4
        $region48: #{tpu_custom_call.1} parent=19 // pred_fallthru
          _
        // Predicated region
        $region49: #{tpu_custom_call.1} parent=19 // pred_check
          %p645 = pneg %p285
        $region50: #{tpu_custom_call.1} parent=19 // pred_check_branch
          %647 = sbr.rel (%p645) target = $region52
        $region51: #{tpu_custom_call.1} parent=19 // pred_region
          %p648 = scmp.lt.s32.totalorder %s45, 1
          %s649 = scalar_select %p648, %s45, 1
          %p650 = scmp.lt.s32.totalorder %s46, 1
          %s651 = scalar_select %p650, %s46, 1
          %s652 = smul.addr %s649, 2
          %s653 = sadd.s32 %s651, %s652
          %s654 = scalar_lea.vmem %s8, %s653
        $region52: #{tpu_custom_call.1} parent=19 // pred_fallthru
          _
        // Predicated region
        $region53: #{tpu_custom_call.1} parent=19 // pred_check
          %p655 = pneg %p313
        $region54: #{tpu_custom_call.1} parent=19 // pred_check_branch
          %657 = sbr.rel (%p655) target = $region56
        $region55: #{tpu_custom_call.1} parent=19 // pred_region
          %s658 = sand.u32 %s38, 1
          %s659 = scalar_lea.sflag [#allocation15], %s658
          %s660 = sand.u32 %s303, 1
          %s661 = smul.addr %s660, 64
          %s662 = scalar_lea.vmem [#allocation14], %s661
          %s664 = ssub.s32 1024, 1024
          %665 = vsyncadd %s659, %s664
          %s666 = smul.addr %s46, 16
          %s667 = smul.addr %s45, 32
          %s668 = sadd.s32 %s666, %s667
          %s669 = smul.addr %s668, 64
          %s670 = scalar_lea.hbm %s9, %s669
          %s671 = sshll.u32 %s662, 4
          %s672 = int_to_ptr.vmem [resolvable:$true] %s671
          %677 = dma.hbm_to_vmem [thread:$0]  %s670, 1024, %s672, %s659, 64, 64, 4
        $region56: #{tpu_custom_call.1} parent=19 // pred_fallthru
          _
        // Predicated region
        $region57: #{tpu_custom_call.1} parent=19 // pred_check
          %p678 = pneg %p341
        $region58: #{tpu_custom_call.1} parent=19 // pred_check_branch
          %680 = sbr.rel (%p678) target = $region60
        $region59: #{tpu_custom_call.1} parent=19 // pred_region
          %p681 = scmp.lt.s32.totalorder %s45, 1
          %s682 = scalar_select %p681, %s45, 1
          %p683 = scmp.lt.s32.totalorder %s46, 1
          %s684 = scalar_select %p683, %s46, 1
          %s685 = smul.addr %s682, 2
          %s686 = sadd.s32 %s684, %s685
          %s687 = scalar_lea.vmem %s10, %s686
        $region60: #{tpu_custom_call.1} parent=19 // pred_fallthru
          _
        // Predicated region
        $region61: #{tpu_custom_call.1} parent=19 // pred_check
          %p688 = pneg %p369
        $region62: #{tpu_custom_call.1} parent=19 // pred_check_branch
          %690 = sbr.rel (%p688) target = $region64
        $region63: #{tpu_custom_call.1} parent=19 // pred_region
          %s691 = sand.u32 %s38, 1
          %s692 = scalar_lea.sflag [#allocation15], %s691
          %s693 = sand.u32 %s359, 1
          %s694 = smul.addr %s693, 64
          %s695 = scalar_lea.vmem [#allocation16], %s694
          %s697 = ssub.s32 1024, 1024
          %698 = vsyncadd %s692, %s697
          %s699 = smul.addr %s46, 16
          %s700 = smul.addr %s45, 32
          %s701 = sadd.s32 %s699, %s700
          %s702 = smul.addr %s701, 64
          %s703 = scalar_lea.hbm %s11, %s702
          %s704 = sshll.u32 %s695, 4
          %s705 = int_to_ptr.vmem [resolvable:$true] %s704
          %710 = dma.hbm_to_vmem [thread:$0]  %s703, 1024, %s705, %s692, 64, 64, 4
        $region64: #{tpu_custom_call.1} parent=19 // pred_fallthru
          _
        // Predicated region
        $region65: #{tpu_custom_call.1} parent=19 // pred_check
          %p711 = pneg %p397
        $region66: #{tpu_custom_call.1} parent=19 // pred_check_branch
          %713 = sbr.rel (%p711) target = $region68
        $region67: #{tpu_custom_call.1} parent=19 // pred_region
          %p714 = scmp.lt.s32.totalorder %s45, 1
          %s715 = scalar_select %p714, %s45, 1
          %p716 = scmp.lt.s32.totalorder %s46, 1
          %s717 = scalar_select %p716, %s46, 1
          %s718 = smul.addr %s715, 2
          %s719 = sadd.s32 %s717, %s718
          %s720 = scalar_lea.vmem %s12, %s719
        $region68: #{tpu_custom_call.1} parent=19 // pred_fallthru
          _
        // Predicated region
        $region69: #{tpu_custom_call.1} parent=19 // pred_check
          %p721 = pneg %p423
        $region70: #{tpu_custom_call.1} parent=19 // pred_check_branch
          %723 = sbr.rel (%p721) target = $region72
        $region71: #{tpu_custom_call.1} parent=19 // pred_region
          %s724 = sand.u32 %s38, 1
          %s725 = scalar_lea.sflag [#allocation18], %s724
          %s726 = sand.u32 %s413, 1
          %s727 = smul.addr %s726, 256
          %s728 = scalar_lea.vmem [#allocation17], %s727
          %s730 = ssub.s32 4096, 4096
          %731 = vsyncadd %s725, %s730
          %s732 = smul.addr %s45, 32
          %s733 = smul.addr %s732, 128
          %s734 = scalar_lea.hbm %s13, %s733
          %s735 = sshll.u32 %s728, 4
          %s736 = int_to_ptr.vmem [resolvable:$true] %s735
          %741 = dma.hbm_to_vmem [thread:$0]  %s734, 4096, %s736, %s725, 256, 256, 16
        $region72: #{tpu_custom_call.1} parent=19 // pred_fallthru
          _
        // Predicated region
        $region73: #{tpu_custom_call.1} parent=19 // pred_check
          %p742 = pneg %p449
        $region74: #{tpu_custom_call.1} parent=19 // pred_check_branch
          %744 = sbr.rel (%p742) target = $region76
        $region75: #{tpu_custom_call.1} parent=19 // pred_region
          %s745 = sand.u32 %s38, 1
          %s746 = scalar_lea.sflag [#allocation18], %s745
          %s747 = sand.u32 %s439, 1
          %s748 = smul.addr %s747, 256
          %s749 = scalar_lea.vmem [#allocation19], %s748
          %s751 = ssub.s32 4096, 4096
          %752 = vsyncadd %s746, %s751
          %s753 = smul.addr %s45, 32
          %s754 = smul.addr %s753, 128
          %s755 = scalar_lea.hbm %s14, %s754
          %s756 = sshll.u32 %s749, 4
          %s757 = int_to_ptr.vmem [resolvable:$true] %s756
          %762 = dma.hbm_to_vmem [thread:$0]  %s755, 4096, %s757, %s746, 256, 256, 16
        $region76: #{tpu_custom_call.1} parent=19 // pred_fallthru
          _
      $region20: #{tpu_custom_call.1} parent=5 // pred_fallthru
        _
      %p763 = scmp.le.s32.totalorder 1, %s38
      %p764 = scmp.lt.s32.totalorder %s38, 5
      %p765 = pnand %p763, %p764
      %p766 = pneg %p765
      // Predicated region
      $region77: #{tpu_custom_call.1} parent=5 // pred_check
        _
      $region78: #{tpu_custom_call.1} parent=5 // pred_check_branch
        %768 = sbr.rel (%p765) target = $region80
      $region79: #{tpu_custom_call.1} parent=5 // pred_region
        %s769 = ssub.s32 %s38, 1
        // Predicated region
        $region81: #{tpu_custom_call.1} parent=79 // pred_check
          %p770 = pneg %p71
        $region82: #{tpu_custom_call.1} parent=79 // pred_check_branch
          %772 = sbr.rel (%p770) target = $region84
        $region83: #{tpu_custom_call.1} parent=79 // pred_region
          %773 = dma.done [#allocation6], 512
        $region84: #{tpu_custom_call.1} parent=79 // pred_fallthru
          _
        %s774 = sand.u32 %s43, 1
        %s775 = scalar_lea.sflag [#allocation9], %s774
        %s776 = sand.u32 %s84, 1
        %s777 = smul.addr %s776, 2
        %s778 = scalar_lea.vmem [#allocation8], %s777
        // Predicated region
        $region85: #{tpu_custom_call.1} parent=79 // pred_check
          %p779 = pneg %p97
        $region86: #{tpu_custom_call.1} parent=79 // pred_check_branch
          %781 = sbr.rel (%p779) target = $region88
        $region87: #{tpu_custom_call.1} parent=79 // pred_region
          %782 = dma.done %s775, 32
        $region88: #{tpu_custom_call.1} parent=79 // pred_fallthru
          _
        %s783 = sand.u32 %s43, 1
        %s784 = scalar_lea.sflag [#allocation9], %s783
        %s785 = sand.u32 %s138, 1
        %s786 = smul.addr %s785, 128
        %s787 = scalar_lea.vmem [#allocation10], %s786
        // Predicated region
        $region89: #{tpu_custom_call.1} parent=79 // pred_check
          %p788 = pneg %p151
        $region90: #{tpu_custom_call.1} parent=79 // pred_check_branch
          %790 = sbr.rel (%p788) target = $region92
        $region91: #{tpu_custom_call.1} parent=79 // pred_region
          %791 = dma.done %s784, 2048
        $region92: #{tpu_custom_call.1} parent=79 // pred_fallthru
          _
        %s792 = sand.u32 %s43, 1
        %s793 = scalar_lea.sflag [#allocation12], %s792
        %s794 = sand.u32 %s194, 1
        %s795 = smul.addr %s794, 64
        %s796 = scalar_lea.vmem [#allocation11], %s795
        // Predicated region
        $region93: #{tpu_custom_call.1} parent=79 // pred_check
          %p797 = pneg %p207
        $region94: #{tpu_custom_call.1} parent=79 // pred_check_branch
          %799 = sbr.rel (%p797) target = $region96
        $region95: #{tpu_custom_call.1} parent=79 // pred_region
          %800 = dma.done %s793, 1024
        $region96: #{tpu_custom_call.1} parent=79 // pred_fallthru
          _
        %s801 = sand.u32 %s43, 1
        %s802 = scalar_lea.sflag [#allocation12], %s801
        %s803 = sand.u32 %s250, 1
        %s804 = smul.addr %s803, 64
        %s805 = scalar_lea.vmem [#allocation13], %s804
        // Predicated region
        $region97: #{tpu_custom_call.1} parent=79 // pred_check
          %p806 = pneg %p263
        $region98: #{tpu_custom_call.1} parent=79 // pred_check_branch
          %808 = sbr.rel (%p806) target = $region100
        $region99: #{tpu_custom_call.1} parent=79 // pred_region
          %809 = dma.done %s802, 1024
        $region100: #{tpu_custom_call.1} parent=79 // pred_fallthru
          _
        %s810 = sand.u32 %s43, 1
        %s811 = scalar_lea.sflag [#allocation15], %s810
        %s812 = sand.u32 %s306, 1
        %s813 = smul.addr %s812, 64
        %s814 = scalar_lea.vmem [#allocation14], %s813
        // Predicated region
        $region101: #{tpu_custom_call.1} parent=79 // pred_check
          %p815 = pneg %p319
        $region102: #{tpu_custom_call.1} parent=79 // pred_check_branch
          %817 = sbr.rel (%p815) target = $region104
        $region103: #{tpu_custom_call.1} parent=79 // pred_region
          %818 = dma.done %s811, 1024
        $region104: #{tpu_custom_call.1} parent=79 // pred_fallthru
          _
        %s819 = sand.u32 %s43, 1
        %s820 = scalar_lea.sflag [#allocation15], %s819
        %s821 = sand.u32 %s362, 1
        %s822 = smul.addr %s821, 64
        %s823 = scalar_lea.vmem [#allocation16], %s822
        // Predicated region
        $region105: #{tpu_custom_call.1} parent=79 // pred_check
          %p824 = pneg %p375
        $region106: #{tpu_custom_call.1} parent=79 // pred_check_branch
          %826 = sbr.rel (%p824) target = $region108
        $region107: #{tpu_custom_call.1} parent=79 // pred_region
          %827 = dma.done %s820, 1024
        $region108: #{tpu_custom_call.1} parent=79 // pred_fallthru
          _
        %s828 = sand.u32 %s43, 1
        %s829 = scalar_lea.sflag [#allocation18], %s828
        %s830 = sand.u32 %s416, 1
        %s831 = smul.addr %s830, 256
        %s832 = scalar_lea.vmem [#allocation17], %s831
        // Predicated region
        $region109: #{tpu_custom_call.1} parent=79 // pred_check
          %p833 = pneg %p429
        $region110: #{tpu_custom_call.1} parent=79 // pred_check_branch
          %835 = sbr.rel (%p833) target = $region112
        $region111: #{tpu_custom_call.1} parent=79 // pred_region
          %836 = dma.done %s829, 4096
        $region112: #{tpu_custom_call.1} parent=79 // pred_fallthru
          _
        %s837 = sand.u32 %s43, 1
        %s838 = scalar_lea.sflag [#allocation18], %s837
        %s839 = sand.u32 %s442, 1
        %s840 = smul.addr %s839, 256
        %s841 = scalar_lea.vmem [#allocation19], %s840
        // Predicated region
        $region113: #{tpu_custom_call.1} parent=79 // pred_check
          %p842 = pneg %p455
        $region114: #{tpu_custom_call.1} parent=79 // pred_check_branch
          %844 = sbr.rel (%p842) target = $region116
        $region115: #{tpu_custom_call.1} parent=79 // pred_region
          %845 = dma.done %s838, 4096
        $region116: #{tpu_custom_call.1} parent=79 // pred_fallthru
          _
        %p846 = pneg %p71
        %p847 = pneg %p68
        %s848 = sand.u32 %s43, 1
        %s849 = scalar_lea.sflag [#allocation9], %s848
        %s850 = sand.u32 %s84, 1
        %s851 = smul.addr %s850, 2
        %s852 = scalar_lea.vmem [#allocation8], %s851
        %p853 = pneg %p97
        %p854 = pneg %p94
        %p855 = scmp.lt.s32.totalorder %s47, 1
        %s856 = scalar_select %p855, %s47, 1
        %s857 = smul.addr %s856, 2
        %s858 = scalar_lea.vmem %s2, %s857
        %p859 = pneg %p123
        %p860 = pneg %p120
        %s861 = sand.u32 %s43, 1
        %s862 = scalar_lea.sflag [#allocation9], %s861
        %s863 = sand.u32 %s138, 1
        %s864 = smul.addr %s863, 128
        %s865 = scalar_lea.vmem [#allocation10], %s864
        %p866 = pneg %p151
        %p867 = pneg %p148
        %p868 = scmp.lt.s32.totalorder %s47, 1
        %s869 = scalar_select %p868, %s47, 1
        %p870 = scmp.lt.s32.totalorder %s48, 1
        %s871 = scalar_select %p870, %s48, 1
        %s872 = smul.addr %s871, 2
        %s873 = smul.addr %s869, 4
        %s874 = sadd.s32 %s872, %s873
        %s875 = scalar_lea.vmem %s4, %s874
        %p876 = pneg %p179
        %p877 = pneg %p176
        %s878 = sand.u32 %s43, 1
        %s879 = scalar_lea.sflag [#allocation12], %s878
        %s880 = sand.u32 %s194, 1
        %s881 = smul.addr %s880, 64
        %s882 = scalar_lea.vmem [#allocation11], %s881
        %p883 = pneg %p207
        %p884 = pneg %p204
        %p885 = scmp.lt.s32.totalorder %s47, 1
        %s886 = scalar_select %p885, %s47, 1
        %p887 = scmp.lt.s32.totalorder %s48, 1
        %s888 = scalar_select %p887, %s48, 1
        %s889 = smul.addr %s886, 2
        %s890 = sadd.s32 %s888, %s889
        %s891 = scalar_lea.vmem %s6, %s890
        %p892 = pneg %p235
        %p893 = pneg %p232
        %s894 = sand.u32 %s43, 1
        %s895 = scalar_lea.sflag [#allocation12], %s894
        %s896 = sand.u32 %s250, 1
        %s897 = smul.addr %s896, 64
        %s898 = scalar_lea.vmem [#allocation13], %s897
        %p899 = pneg %p263
        %p900 = pneg %p260
        %p901 = scmp.lt.s32.totalorder %s47, 1
        %s902 = scalar_select %p901, %s47, 1
        %p903 = scmp.lt.s32.totalorder %s48, 1
        %s904 = scalar_select %p903, %s48, 1
        %s905 = smul.addr %s902, 2
        %s906 = sadd.s32 %s904, %s905
        %s907 = scalar_lea.vmem %s8, %s906
        %p908 = pneg %p291
        %p909 = pneg %p288
        %s910 = sand.u32 %s43, 1
        %s911 = scalar_lea.sflag [#allocation15], %s910
        %s912 = sand.u32 %s306, 1
        %s913 = smul.addr %s912, 64
        %s914 = scalar_lea.vmem [#allocation14], %s913
        %p915 = pneg %p319
        %p916 = pneg %p316
        %p917 = scmp.lt.s32.totalorder %s47, 1
        %s918 = scalar_select %p917, %s47, 1
        %p919 = scmp.lt.s32.totalorder %s48, 1
        %s920 = scalar_select %p919, %s48, 1
        %s921 = smul.addr %s918, 2
        %s922 = sadd.s32 %s920, %s921
        %s923 = scalar_lea.vmem %s10, %s922
        %p924 = pneg %p347
        %p925 = pneg %p344
        %s926 = sand.u32 %s43, 1
        %s927 = scalar_lea.sflag [#allocation15], %s926
        %s928 = sand.u32 %s362, 1
        %s929 = smul.addr %s928, 64
        %s930 = scalar_lea.vmem [#allocation16], %s929
        %p931 = pneg %p375
        %p932 = pneg %p372
        %p933 = scmp.lt.s32.totalorder %s47, 1
        %s934 = scalar_select %p933, %s47, 1
        %p935 = scmp.lt.s32.totalorder %s48, 1
        %s936 = scalar_select %p935, %s48, 1
        %s937 = smul.addr %s934, 2
        %s938 = sadd.s32 %s936, %s937
        %s939 = scalar_lea.vmem %s12, %s938
        %p940 = pneg %p403
        %p941 = pneg %p400
        %s942 = sand.u32 %s43, 1
        %s943 = scalar_lea.sflag [#allocation18], %s942
        %s944 = sand.u32 %s416, 1
        %s945 = smul.addr %s944, 256
        %s946 = scalar_lea.vmem [#allocation17], %s945
        %p947 = pneg %p429
        %p948 = pneg %p426
        %s949 = sand.u32 %s43, 1
        %s950 = scalar_lea.sflag [#allocation18], %s949
        %s951 = sand.u32 %s442, 1
        %s952 = smul.addr %s951, 256
        %s953 = scalar_lea.vmem [#allocation19], %s952
        %p954 = pneg %p455
        %p955 = pneg %p452
        %p956 = pneg %p476
        %p957 = pneg %p473
        %p958 = pneg %p497
        %p959 = pneg %p494
        %p960 = scmp.lt.s32.totalorder %s47, 1
        %s961 = scalar_select %p960, %s47, 1
        %s962 = smul.addr %s961, 2
        %s963 = scalar_lea.vmem %s2, %s962
        %p964 = scmp.lt.s32.totalorder %s47, 1
        %s965 = scalar_select %p964, %s47, 1
        %p966 = scmp.lt.s32.totalorder %s48, 1
        %s967 = scalar_select %p966, %s48, 1
        %s968 = smul.addr %s967, 2
        %s969 = smul.addr %s965, 4
        %s970 = sadd.s32 %s968, %s969
        %s971 = scalar_lea.vmem %s4, %s970
        %p972 = scmp.lt.s32.totalorder %s47, 1
        %s973 = scalar_select %p972, %s47, 1
        %p974 = scmp.lt.s32.totalorder %s48, 1
        %s975 = scalar_select %p974, %s48, 1
        %s976 = smul.addr %s973, 2
        %s977 = sadd.s32 %s975, %s976
        %s978 = scalar_lea.vmem %s6, %s977
        %p979 = scmp.lt.s32.totalorder %s47, 1
        %s980 = scalar_select %p979, %s47, 1
        %p981 = scmp.lt.s32.totalorder %s48, 1
        %s982 = scalar_select %p981, %s48, 1
        %s983 = smul.addr %s980, 2
        %s984 = sadd.s32 %s982, %s983
        %s985 = scalar_lea.vmem %s8, %s984
        %p986 = scmp.lt.s32.totalorder %s47, 1
        %s987 = scalar_select %p986, %s47, 1
        %p988 = scmp.lt.s32.totalorder %s48, 1
        %s989 = scalar_select %p988, %s48, 1
        %s990 = smul.addr %s987, 2
        %s991 = sadd.s32 %s989, %s990
        %s992 = scalar_lea.vmem %s10, %s991
        %p993 = scmp.lt.s32.totalorder %s47, 1
        %s994 = scalar_select %p993, %s47, 1
        %p995 = scmp.lt.s32.totalorder %s48, 1
        %s996 = scalar_select %p995, %s48, 1
        %s997 = smul.addr %s994, 2
        %s998 = sadd.s32 %s996, %s997
        %s999 = scalar_lea.vmem %s12, %s998
        %p1001 = scmp.eq.s32.totalorder %s48, 0
        // Predicated region
        $region117: #{tpu_custom_call.1} parent=79 // pred_check
          %p1002 = pneg %p1001
        $region118: #{tpu_custom_call.1} parent=79 // pred_check_branch
          %1004 = sbr.rel (%p1002) target = $region120
        $region119: #{tpu_custom_call.1} parent=79 // pred_region
          %p1005 = scmp.eq.s32.totalorder %s47, 0
          // Predicated region
          $region121: #{tpu_custom_call.1} parent=119 // pred_check
            %p1006 = pneg %p1005
          $region122: #{tpu_custom_call.1} parent=119 // pred_check_branch
            %1008 = sbr.rel (%p1006) target = $region124
          $region123: #{tpu_custom_call.1} parent=119 // pred_region
            %vm1009 = vcmask 7168
            %1010 = vst.msk [vmem:[#allocation4] sm:$0xff] %vm1009, 0.0
            %1011 = vst.msk [vmem:[#allocation4 + $0x8] sm:$0xff] %vm1009, 0.0
            %v1012 = vld [vmem:[#allocation5] sm:$0xff]
            %v1013 = vld [vmem:[#allocation5 + $0x8] sm:$0xff]
            %v1014 = vld [vmem:[#allocation5 + $0x10] sm:$0xff]
            %v1015 = vld [vmem:[#allocation5 + $0x18] sm:$0xff]
            %1016 = vst [vmem:[#allocation20] sm:$0xff] %v1012
            %1017 = vst [vmem:[#allocation20 + $0x8] sm:$0xff] %v1013
            %1018 = vst [vmem:[#allocation20 + $0x10] sm:$0xff] %v1014
            %1019 = vst [vmem:[#allocation20 + $0x18] sm:$0xff] %v1015
          $region124: #{tpu_custom_call.1} parent=119 // pred_fallthru
            _
          %v1020 = vld [vmem:[%s963] sm:$0x3]
          %v1021 = vld [vmem:[#allocation20] sm:$0xff]
          %v1022 = vld [vmem:[#allocation20 + $0x8] sm:$0xff]
          %v1023 = vld [vmem:[#allocation20 + $0x10] sm:$0xff]
          %v1024 = vld [vmem:[#allocation20 + $0x18] sm:$0xff]
          %v1025 = vld [vmem:[%s778] sm:$0x3]
          %v1027 = vlaneseq
          %v1028 = vshrl.u32 %v1027, 7
          %v1029 = vsub.s32 0, %v1028
          %v1030 = vrot.slane %v1025, %v1029
          %v1031 = vlaneseq
          %v1032 = vshrl.u32 %v1031, 7
          %v1033 = vsub.s32 1, %v1032
          %v1034 = vrot.slane %v1025, %v1033
          %v1037 = vadd.f32 %v1021, %v1030
          %v1038 = vadd.f32 %v1022, %v1034
          %v1039 = vadd.f32 %v1023, %v1030
          %v1040 = vadd.f32 %v1024, %v1034
          %v1042 = vlaneseq
          %v1043 = vshrl.u32 %v1042, 7
          %v1044 = vsub.s32 0, %v1043
          %v1045 = vrot.slane %v1020, %v1044
          %v1046 = vlaneseq
          %v1047 = vshrl.u32 %v1046, 7
          %v1048 = vsub.s32 1, %v1047
          %v1049 = vrot.slane %v1020, %v1048
          %v1052 = vmul.f32 %v1045, %v1037
          %v1053 = vmul.f32 %v1049, %v1038
          %v1054 = vmul.f32 %v1045, %v1039
          %v1055 = vmul.f32 %v1049, %v1040
          %1056 = vst [vmem:[#allocation2] sm:$0xff] %v1052
          %1057 = vst [vmem:[#allocation2 + $0x8] sm:$0xff] %v1054
          %1058 = vst [vmem:[#allocation3] sm:$0xff] %v1053
          %1059 = vst [vmem:[#allocation3 + $0x8] sm:$0xff] %v1055
        $region120: #{tpu_custom_call.1} parent=79 // pred_fallthru
          _
        %p1060 = scmp.lt.s32.totalorder %s48, 0
        %s1061 = ssub.s32 0, %s48
        %s1062 = scalar_select %p1060, %s1061, %s48
        %s1063 = sand.u32 %s1062, 1
        %s1064 = ssub.s32 0, %s1063
        %s1065 = scalar_select %p1060, %s1064, %s1063
        %p1066 = scmp.ne.s32.totalorder %s1065, 0
        %p1067 = scmp.lt.s32.totalorder %s1065, 0
        %p1068 = pnand %p1067, %p1066
        %p1069 = pneg %p1068
        %s1070 = sadd.s32 %s1065, 2
        %s1071 = scalar_select %p1069, %s1070, %s1065
        %p1072 = scmp.eq.s32.totalorder %s1071, 1
        // Predicated region
        $region125: #{tpu_custom_call.1} parent=79 // pred_check
          %p1073 = pneg %p1072
        $region126: #{tpu_custom_call.1} parent=79 // pred_check_branch
          %1075 = sbr.rel (%p1073) target = $region128
        $region127: #{tpu_custom_call.1} parent=79 // pred_region
          %v1076 = vld [vmem:[#allocation2] sm:$0xff]
          %v1077 = vld [vmem:[#allocation2 + $0x8] sm:$0xff]
          %v1078 = vld [vmem:[#allocation3] sm:$0xff]
          %v1079 = vld [vmem:[#allocation3 + $0x8] sm:$0xff]
          %1080 = vst [vmem:[#allocation2] sm:$0xff] %v1078
          %1081 = vst [vmem:[#allocation2 + $0x8] sm:$0xff] %v1079
          %1082 = vst [vmem:[#allocation3] sm:$0xff] %v1076
          %1083 = vst [vmem:[#allocation3 + $0x8] sm:$0xff] %v1077
        $region128: #{tpu_custom_call.1} parent=79 // pred_fallthru
          _
        %v1084 = vld [vmem:[#allocation2] sm:$0xff]
        %v1085 = vld [vmem:[#allocation2 + $0x8] sm:$0xff]
        %v1086 = vpack.c.bf16 %v1085, %v1084
        %v1087 = vld [vmem:[%s787] sm:$0xff]
        %v1088 = vld [vmem:[%s787 + $0x8] sm:$0xff]
        %v1089 = vld [vmem:[%s787 + $0x10] sm:$0xff]
        %v1090 = vld [vmem:[%s787 + $0x18] sm:$0xff]
        %v1091 = vld [vmem:[%s787 + $0x20] sm:$0xff]
        %v1092 = vld [vmem:[%s787 + $0x28] sm:$0xff]
        %v1093 = vld [vmem:[%s787 + $0x30] sm:$0xff]
        %v1094 = vld [vmem:[%s787 + $0x38] sm:$0xff]
        %v1095 = vld [vmem:[%s787 + $0x40] sm:$0xff]
        %v1096 = vld [vmem:[%s787 + $0x48] sm:$0xff]
        %v1097 = vld [vmem:[%s787 + $0x50] sm:$0xff]
        %v1098 = vld [vmem:[%s787 + $0x58] sm:$0xff]
        %v1099 = vld [vmem:[%s787 + $0x60] sm:$0xff]
        %v1100 = vld [vmem:[%s787 + $0x68] sm:$0xff]
        %v1101 = vld [vmem:[%s787 + $0x70] sm:$0xff]
        %v1102 = vld [vmem:[%s787 + $0x78] sm:$0xff]
        %v1103 = vld [vmem:[%s971] sm:$0x3]
        %v1105 = vlaneseq
        %v1106 = vshrl.u32 %v1105, 7
        %v1107 = vsub.s32 0, %v1106
        %v1108 = vrot.slane %v1103, %v1107
        %v1109 = vlaneseq
        %v1110 = vshrl.u32 %v1109, 7
        %v1111 = vsub.s32 1, %v1110
        %v1112 = vrot.slane %v1103, %v1111
        %v1131 = vunpack.c.l.b16 %v1087
        %v1132 = vunpack.c.h.b16 %v1087
        %v1133 = vunpack.c.l.b16 %v1088
        %v1134 = vunpack.c.h.b16 %v1088
        %v1135 = vunpack.c.l.b16 %v1089
        %v1136 = vunpack.c.h.b16 %v1089
        %v1137 = vunpack.c.l.b16 %v1090
        %v1138 = vunpack.c.h.b16 %v1090
        %v1139 = vunpack.c.l.b16 %v1091
        %v1140 = vunpack.c.h.b16 %v1091
        %v1141 = vunpack.c.l.b16 %v1092
        %v1142 = vunpack.c.h.b16 %v1092
        %v1143 = vunpack.c.l.b16 %v1093
        %v1144 = vunpack.c.h.b16 %v1093
        %v1145 = vunpack.c.l.b16 %v1094
        %v1146 = vunpack.c.h.b16 %v1094
        %v1147 = vunpack.c.l.b16 %v1095
        %v1148 = vunpack.c.h.b16 %v1095
        %v1149 = vunpack.c.l.b16 %v1096
        %v1150 = vunpack.c.h.b16 %v1096
        %v1151 = vunpack.c.l.b16 %v1097
        %v1152 = vunpack.c.h.b16 %v1097
        %v1153 = vunpack.c.l.b16 %v1098
        %v1154 = vunpack.c.h.b16 %v1098
        %v1155 = vunpack.c.l.b16 %v1099
        %v1156 = vunpack.c.h.b16 %v1099
        %v1157 = vunpack.c.l.b16 %v1100
        %v1158 = vunpack.c.h.b16 %v1100
        %v1159 = vunpack.c.l.b16 %v1101
        %v1160 = vunpack.c.h.b16 %v1101
        %v1161 = vunpack.c.l.b16 %v1102
        %v1162 = vunpack.c.h.b16 %v1102
        %v1163 = vpack.c.b16 %v1133, %v1131
        %v1164 = vpack.c.b16 %v1134, %v1132
        %v1165 = vpack.c.b16 %v1137, %v1135
        %v1166 = vpack.c.b16 %v1138, %v1136
        %v1167 = vpack.c.b16 %v1141, %v1139
        %v1168 = vpack.c.b16 %v1142, %v1140
        %v1169 = vpack.c.b16 %v1145, %v1143
        %v1170 = vpack.c.b16 %v1146, %v1144
        %v1171 = vpack.c.b16 %v1149, %v1147
        %v1172 = vpack.c.b16 %v1150, %v1148
        %v1173 = vpack.c.b16 %v1153, %v1151
        %v1174 = vpack.c.b16 %v1154, %v1152
        %v1175 = vpack.c.b16 %v1157, %v1155
        %v1176 = vpack.c.b16 %v1158, %v1156
        %v1177 = vpack.c.b16 %v1161, %v1159
        %v1178 = vpack.c.b16 %v1162, %v1160
        %1195 = vmatprep.subr.bf16.mxu0 %v1164
        %1196 = vmatpush1.bf16.msra.mxu0 %v1163
        %1197 = vmatprep.subr.bf16.mxu0 %v1166
        %1198 = vmatpush1.bf16.msra.mxu0 %v1165
        %1199 = vmatprep.subr.bf16.mxu0 %v1168
        %1200 = vmatpush1.bf16.msra.mxu0 %v1167
        %1201 = vmatprep.subr.bf16.mxu0 %v1170
        %1202 = vmatpush1.bf16.msra.mxu0 %v1169
        %1203 = vmatprep.subr.bf16.mxu0 %v1172
        %1204 = vmatpush1.bf16.msra.mxu0 %v1171
        %1205 = vmatprep.subr.bf16.mxu0 %v1174
        %1206 = vmatpush1.bf16.msra.mxu0 %v1173
        %1207 = vmatprep.subr.bf16.mxu0 %v1176
        %1208 = vmatpush1.bf16.msra.mxu0 %v1175
        %1209 = vmatprep.subr.bf16.mxu0 %v1178
        %1210 = vmatpush1.bf16.msra.mxu0 %v1177
        %1211 = vmatprep.subr.bf16.mxu0 0
        %1212 = vmatpush1.bf16.msra.mxu0 0
        %1213 = vmatprep.subr.bf16.mxu0 0
        %1214 = vmatpush1.bf16.msra.mxu0 0
        %1215 = vmatprep.subr.bf16.mxu0 0
        %1216 = vmatpush1.bf16.msra.mxu0 0
        %1217 = vmatprep.subr.bf16.mxu0 0
        %1218 = vmatpush1.bf16.msra.mxu0 0
        %1219 = vmatprep.subr.bf16.mxu0 0
        %1220 = vmatpush1.bf16.msra.mxu0 0
        %1221 = vmatprep.subr.bf16.mxu0 0
        %1222 = vmatpush1.bf16.msra.mxu0 0
        %1223 = vmatprep.subr.bf16.mxu0 0
        %1224 = vmatpush1.bf16.msra.mxu0 0
        %1225 = vmatprep.subr.bf16.mxu0 0
        %1226 = vmatpush1.bf16.msra.mxu0 0
        %1227 = vmatprep.mubr.bf16.mxu0 0
        %1228 = vmatmul.mubr.bf16.gmra.mrb[0].mxu0 %v1086
        %v1229 = vpop.f32.mrb[0].mxu0
        %v1230 = vadd.f32 %v1108, %v1229
        %v1231 = vpop.f32.mrb[0].mxu0
        %v1232 = vadd.f32 %v1112, %v1231
        %v1233 = vpop.f32.mrb[0].mxu0
        %v1234 = vadd.f32 %v1108, %v1233
        %v1235 = vpop.f32.mrb[0].mxu0
        %v1236 = vadd.f32 %v1112, %v1235
        %1237 = vdwg.mxu0
        %vm1238 = vcmp.ge.f32.partialorder %v1230, 0.0
        %vm1239 = vcmp.ge.f32.partialorder %v1232, 0.0
        %vm1240 = vcmp.ge.f32.partialorder %v1234, 0.0
        %vm1241 = vcmp.ge.f32.partialorder %v1236, 0.0
        %v1242 = vmul.f32 %v1230, 0.01
        %v1243 = vmul.f32 %v1232, 0.01
        %v1244 = vmul.f32 %v1234, 0.01
        %v1245 = vmul.f32 %v1236, 0.01
        %v1246 = vsel %vm1238, %v1230, %v1242
        %v1247 = vsel %vm1239, %v1232, %v1243
        %v1248 = vsel %vm1240, %v1234, %v1244
        %v1249 = vsel %vm1241, %v1236, %v1245
        %v1250 = vpack.c.bf16 %v1248, %v1246
        %v1251 = vld [vmem:[%s796] sm:$0xf]
        %v1252 = vld [vmem:[%s796 + $0x4] sm:$0xf]
        %v1253 = vld [vmem:[%s796 + $0x8] sm:$0xf]
        %v1254 = vld [vmem:[%s796 + $0xc] sm:$0xf]
        %v1255 = vld [vmem:[%s796 + $0x10] sm:$0xf]
        %v1256 = vld [vmem:[%s796 + $0x14] sm:$0xf]
        %v1257 = vld [vmem:[%s796 + $0x18] sm:$0xf]
        %v1258 = vld [vmem:[%s796 + $0x1c] sm:$0xf]
        %v1259 = vld [vmem:[%s796 + $0x20] sm:$0xf]
        %v1260 = vld [vmem:[%s796 + $0x24] sm:$0xf]
        %v1261 = vld [vmem:[%s796 + $0x28] sm:$0xf]
        %v1262 = vld [vmem:[%s796 + $0x2c] sm:$0xf]
        %v1263 = vld [vmem:[%s796 + $0x30] sm:$0xf]
        %v1264 = vld [vmem:[%s796 + $0x34] sm:$0xf]
        %v1265 = vld [vmem:[%s796 + $0x38] sm:$0xf]
        %v1266 = vld [vmem:[%s796 + $0x3c] sm:$0xf]
        %v1267 = vld [vmem:[%s978] sm:$0x1]
        %v1269 = vlaneseq
        %v1270 = vshrl.u32 %v1269, 7
        %v1271 = vsub.s32 0, %v1270
        %v1272 = vrot.slane %v1267, %v1271
        %v1290 = vunpack.c.l.b16 %v1251
        %v1291 = vunpack.c.l.b16 %v1252
        %v1292 = vunpack.c.l.b16 %v1253
        %v1293 = vunpack.c.l.b16 %v1254
        %v1294 = vunpack.c.l.b16 %v1255
        %v1295 = vunpack.c.l.b16 %v1256
        %v1296 = vunpack.c.l.b16 %v1257
        %v1297 = vunpack.c.l.b16 %v1258
        %v1298 = vunpack.c.l.b16 %v1259
        %v1299 = vunpack.c.l.b16 %v1260
        %v1300 = vunpack.c.l.b16 %v1261
        %v1301 = vunpack.c.l.b16 %v1262
        %v1302 = vunpack.c.l.b16 %v1263
        %v1303 = vunpack.c.l.b16 %v1264
        %v1304 = vunpack.c.l.b16 %v1265
        %v1305 = vunpack.c.l.b16 %v1266
        %v1306 = vpack.c.b16 %v1291, %v1290
        %v1307 = vpack.c.b16 %v1293, %v1292
        %v1308 = vpack.c.b16 %v1295, %v1294
        %v1309 = vpack.c.b16 %v1297, %v1296
        %v1310 = vpack.c.b16 %v1299, %v1298
        %v1311 = vpack.c.b16 %v1301, %v1300
        %v1312 = vpack.c.b16 %v1303, %v1302
        %v1313 = vpack.c.b16 %v1305, %v1304
        %1322 = vmatprep.subr.bf16.mxu0 0
        %1323 = vmatpush1.bf16.msra.mxu0 %v1306
        %1324 = vmatprep.subr.bf16.mxu0 0
        %1325 = vmatpush1.bf16.msra.mxu0 %v1307
        %1326 = vmatprep.subr.bf16.mxu0 0
        %1327 = vmatpush1.bf16.msra.mxu0 %v1308
        %1328 = vmatprep.subr.bf16.mxu0 0
        %1329 = vmatpush1.bf16.msra.mxu0 %v1309
        %1330 = vmatprep.subr.bf16.mxu0 0
        %1331 = vmatpush1.bf16.msra.mxu0 %v1310
        %1332 = vmatprep.subr.bf16.mxu0 0
        %1333 = vmatpush1.bf16.msra.mxu0 %v1311
        %1334 = vmatprep.subr.bf16.mxu0 0
        %1335 = vmatpush1.bf16.msra.mxu0 %v1312
        %1336 = vmatprep.subr.bf16.mxu0 0
        %1337 = vmatpush1.bf16.msra.mxu0 %v1313
        %1338 = vmatprep.subr.bf16.mxu0 0
        %1339 = vmatpush1.bf16.msra.mxu0 0
        %1340 = vmatprep.subr.bf16.mxu0 0
        %1341 = vmatpush1.bf16.msra.mxu0 0
        %1342 = vmatprep.subr.bf16.mxu0 0
        %1343 = vmatpush1.bf16.msra.mxu0 0
        %1344 = vmatprep.subr.bf16.mxu0 0
        %1345 = vmatpush1.bf16.msra.mxu0 0
        %1346 = vmatprep.subr.bf16.mxu0 0
        %1347 = vmatpush1.bf16.msra.mxu0 0
        %1348 = vmatprep.subr.bf16.mxu0 0
        %1349 = vmatpush1.bf16.msra.mxu0 0
        %1350 = vmatprep.subr.bf16.mxu0 0
        %1351 = vmatpush1.bf16.msra.mxu0 0
        %1352 = vmatprep.subr.bf16.mxu0 0
        %1353 = vmatpush1.bf16.msra.mxu0 0
        %1354 = vmatprep.mubr.bf16.mxu0 0
        %1355 = vmatmul.mubr.bf16.gmra.mrb[0].mxu0 %v1250
        %v1356 = vpop.f32.mrb[0].mxu0
        %v1357 = vadd.f32 %v1272, %v1356
        %v1358 = vpop.f32.mrb[0].mxu0
        %v1359 = vpop.f32.mrb[0].mxu0
        %v1360 = vadd.f32 %v1272, %v1359
        %v1361 = vpop.f32.mrb[0].mxu0
        %1362 = vdwg.mxu0
        %vm1363 = vcmp.ge.f32.partialorder %v1357, 0.0
        %vm1364 = vcmp.ge.f32.partialorder %v1360, 0.0
        %v1365 = vmul.f32 %v1357, 0.01
        %v1366 = vmul.f32 %v1360, 0.01
        %v1367 = vsel %vm1363, %v1357, %v1365
        %v1368 = vsel %vm1364, %v1360, %v1366
        %v1369 = vpack.c.bf16 %v1249, %v1247
        %v1370 = vld [vmem:[%s805] sm:$0xf]
        %v1371 = vld [vmem:[%s805 + $0x4] sm:$0xf]
        %v1372 = vld [vmem:[%s805 + $0x8] sm:$0xf]
        %v1373 = vld [vmem:[%s805 + $0xc] sm:$0xf]
        %v1374 = vld [vmem:[%s805 + $0x10] sm:$0xf]
        %v1375 = vld [vmem:[%s805 + $0x14] sm:$0xf]
        %v1376 = vld [vmem:[%s805 + $0x18] sm:$0xf]
        %v1377 = vld [vmem:[%s805 + $0x1c] sm:$0xf]
        %v1378 = vld [vmem:[%s805 + $0x20] sm:$0xf]
        %v1379 = vld [vmem:[%s805 + $0x24] sm:$0xf]
        %v1380 = vld [vmem:[%s805 + $0x28] sm:$0xf]
        %v1381 = vld [vmem:[%s805 + $0x2c] sm:$0xf]
        %v1382 = vld [vmem:[%s805 + $0x30] sm:$0xf]
        %v1383 = vld [vmem:[%s805 + $0x34] sm:$0xf]
        %v1384 = vld [vmem:[%s805 + $0x38] sm:$0xf]
        %v1385 = vld [vmem:[%s805 + $0x3c] sm:$0xf]
        %v1386 = vld [vmem:[%s985] sm:$0x1]
        %v1388 = vlaneseq
        %v1389 = vshrl.u32 %v1388, 7
        %v1390 = vsub.s32 0, %v1389
        %v1391 = vrot.slane %v1386, %v1390
        %v1409 = vunpack.c.l.b16 %v1370
        %v1410 = vunpack.c.l.b16 %v1371
        %v1411 = vunpack.c.l.b16 %v1372
        %v1412 = vunpack.c.l.b16 %v1373
        %v1413 = vunpack.c.l.b16 %v1374
        %v1414 = vunpack.c.l.b16 %v1375
        %v1415 = vunpack.c.l.b16 %v1376
        %v1416 = vunpack.c.l.b16 %v1377
        %v1417 = vunpack.c.l.b16 %v1378
        %v1418 = vunpack.c.l.b16 %v1379
        %v1419 = vunpack.c.l.b16 %v1380
        %v1420 = vunpack.c.l.b16 %v1381
        %v1421 = vunpack.c.l.b16 %v1382
        %v1422 = vunpack.c.l.b16 %v1383
        %v1423 = vunpack.c.l.b16 %v1384
        %v1424 = vunpack.c.l.b16 %v1385
        %v1425 = vpack.c.b16 %v1410, %v1409
        %v1426 = vpack.c.b16 %v1412, %v1411
        %v1427 = vpack.c.b16 %v1414, %v1413
        %v1428 = vpack.c.b16 %v1416, %v1415
        %v1429 = vpack.c.b16 %v1418, %v1417
        %v1430 = vpack.c.b16 %v1420, %v1419
        %v1431 = vpack.c.b16 %v1422, %v1421
        %v1432 = vpack.c.b16 %v1424, %v1423
        %1441 = vmatprep.subr.bf16.mxu0 0
        %1442 = vmatpush1.bf16.msra.mxu0 %v1425
        %1443 = vmatprep.subr.bf16.mxu0 0
        %1444 = vmatpush1.bf16.msra.mxu0 %v1426
        %1445 = vmatprep.subr.bf16.mxu0 0
        %1446 = vmatpush1.bf16.msra.mxu0 %v1427
        %1447 = vmatprep.subr.bf16.mxu0 0
        %1448 = vmatpush1.bf16.msra.mxu0 %v1428
        %1449 = vmatprep.subr.bf16.mxu0 0
        %1450 = vmatpush1.bf16.msra.mxu0 %v1429
        %1451 = vmatprep.subr.bf16.mxu0 0
        %1452 = vmatpush1.bf16.msra.mxu0 %v1430
        %1453 = vmatprep.subr.bf16.mxu0 0
        %1454 = vmatpush1.bf16.msra.mxu0 %v1431
        %1455 = vmatprep.subr.bf16.mxu0 0
        %1456 = vmatpush1.bf16.msra.mxu0 %v1432
        %1457 = vmatprep.subr.bf16.mxu0 0
        %1458 = vmatpush1.bf16.msra.mxu0 0
        %1459 = vmatprep.subr.bf16.mxu0 0
        %1460 = vmatpush1.bf16.msra.mxu0 0
        %1461 = vmatprep.subr.bf16.mxu0 0
        %1462 = vmatpush1.bf16.msra.mxu0 0
        %1463 = vmatprep.subr.bf16.mxu0 0
        %1464 = vmatpush1.bf16.msra.mxu0 0
        %1465 = vmatprep.subr.bf16.mxu0 0
        %1466 = vmatpush1.bf16.msra.mxu0 0
        %1467 = vmatprep.subr.bf16.mxu0 0
        %1468 = vmatpush1.bf16.msra.mxu0 0
        %1469 = vmatprep.subr.bf16.mxu0 0
        %1470 = vmatpush1.bf16.msra.mxu0 0
        %1471 = vmatprep.subr.bf16.mxu0 0
        %1472 = vmatpush1.bf16.msra.mxu0 0
        %1473 = vmatprep.mubr.bf16.mxu0 0
        %1474 = vmatmul.mubr.bf16.gmra.mrb[0].mxu0 %v1369
        %v1475 = vpop.f32.mrb[0].mxu0
        %v1476 = vadd.f32 %v1391, %v1475
        %v1477 = vpop.f32.mrb[0].mxu0
        %v1478 = vpop.f32.mrb[0].mxu0
        %v1479 = vadd.f32 %v1391, %v1478
        %v1480 = vpop.f32.mrb[0].mxu0
        %1481 = vdwg.mxu0
        %vm1482 = vcmp.ge.f32.partialorder %v1476, 0.0
        %vm1483 = vcmp.ge.f32.partialorder %v1479, 0.0
        %v1484 = vmul.f32 %v1476, 0.01
        %v1485 = vmul.f32 %v1479, 0.01
        %v1486 = vsel %vm1482, %v1476, %v1484
        %v1487 = vsel %vm1483, %v1479, %v1485
        %v1488 = vpack.c.bf16 %v1368, %v1367
        %v1489 = vld [vmem:[%s814] sm:$0xf]
        %v1490 = vld [vmem:[%s814 + $0x4] sm:$0xf]
        %v1491 = vld [vmem:[%s814 + $0x8] sm:$0xf]
        %v1492 = vld [vmem:[%s814 + $0xc] sm:$0xf]
        %v1493 = vld [vmem:[%s814 + $0x10] sm:$0xf]
        %v1494 = vld [vmem:[%s814 + $0x14] sm:$0xf]
        %v1495 = vld [vmem:[%s814 + $0x18] sm:$0xf]
        %v1496 = vld [vmem:[%s814 + $0x1c] sm:$0xf]
        %v1497 = vld [vmem:[%s814 + $0x20] sm:$0xf]
        %v1498 = vld [vmem:[%s814 + $0x24] sm:$0xf]
        %v1499 = vld [vmem:[%s814 + $0x28] sm:$0xf]
        %v1500 = vld [vmem:[%s814 + $0x2c] sm:$0xf]
        %v1501 = vld [vmem:[%s814 + $0x30] sm:$0xf]
        %v1502 = vld [vmem:[%s814 + $0x34] sm:$0xf]
        %v1503 = vld [vmem:[%s814 + $0x38] sm:$0xf]
        %v1504 = vld [vmem:[%s814 + $0x3c] sm:$0xf]
        %v1505 = vld [vmem:[%s992] sm:$0x1]
        %v1507 = vlaneseq
        %v1508 = vshrl.u32 %v1507, 7
        %v1509 = vsub.s32 0, %v1508
        %v1510 = vrot.slane %v1505, %v1509
        %v1528 = vunpack.c.l.b16 %v1489
        %v1529 = vunpack.c.l.b16 %v1490
        %v1530 = vunpack.c.l.b16 %v1491
        %v1531 = vunpack.c.l.b16 %v1492
        %v1532 = vunpack.c.l.b16 %v1493
        %v1533 = vunpack.c.l.b16 %v1494
        %v1534 = vunpack.c.l.b16 %v1495
        %v1535 = vunpack.c.l.b16 %v1496
        %v1536 = vunpack.c.l.b16 %v1497
        %v1537 = vunpack.c.l.b16 %v1498
        %v1538 = vunpack.c.l.b16 %v1499
        %v1539 = vunpack.c.l.b16 %v1500
        %v1540 = vunpack.c.l.b16 %v1501
        %v1541 = vunpack.c.l.b16 %v1502
        %v1542 = vunpack.c.l.b16 %v1503
        %v1543 = vunpack.c.l.b16 %v1504
        %v1544 = vpack.c.b16 %v1529, %v1528
        %v1545 = vpack.c.b16 %v1531, %v1530
        %v1546 = vpack.c.b16 %v1533, %v1532
        %v1547 = vpack.c.b16 %v1535, %v1534
        %v1548 = vpack.c.b16 %v1537, %v1536
        %v1549 = vpack.c.b16 %v1539, %v1538
        %v1550 = vpack.c.b16 %v1541, %v1540
        %v1551 = vpack.c.b16 %v1543, %v1542
        %1560 = vmatprep.subr.bf16.mxu0 0
        %1561 = vmatpush1.bf16.msra.mxu0 %v1544
        %1562 = vmatprep.subr.bf16.mxu0 0
        %1563 = vmatpush1.bf16.msra.mxu0 %v1545
        %1564 = vmatprep.subr.bf16.mxu0 0
        %1565 = vmatpush1.bf16.msra.mxu0 %v1546
        %1566 = vmatprep.subr.bf16.mxu0 0
        %1567 = vmatpush1.bf16.msra.mxu0 %v1547
        %1568 = vmatprep.subr.bf16.mxu0 0
        %1569 = vmatpush1.bf16.msra.mxu0 %v1548
        %1570 = vmatprep.subr.bf16.mxu0 0
        %1571 = vmatpush1.bf16.msra.mxu0 %v1549
        %1572 = vmatprep.subr.bf16.mxu0 0
        %1573 = vmatpush1.bf16.msra.mxu0 %v1550
        %1574 = vmatprep.subr.bf16.mxu0 0
        %1575 = vmatpush1.bf16.msra.mxu0 %v1551
        %1576 = vmatprep.subr.bf16.mxu0 0
        %1577 = vmatpush1.bf16.msra.mxu0 0
        %1578 = vmatprep.subr.bf16.mxu0 0
        %1579 = vmatpush1.bf16.msra.mxu0 0
        %1580 = vmatprep.subr.bf16.mxu0 0
        %1581 = vmatpush1.bf16.msra.mxu0 0
        %1582 = vmatprep.subr.bf16.mxu0 0
        %1583 = vmatpush1.bf16.msra.mxu0 0
        %1584 = vmatprep.subr.bf16.mxu0 0
        %1585 = vmatpush1.bf16.msra.mxu0 0
        %1586 = vmatprep.subr.bf16.mxu0 0
        %1587 = vmatpush1.bf16.msra.mxu0 0
        %1588 = vmatprep.subr.bf16.mxu0 0
        %1589 = vmatpush1.bf16.msra.mxu0 0
        %1590 = vmatprep.subr.bf16.mxu0 0
        %1591 = vmatpush1.bf16.msra.mxu0 0
        %1592 = vmatprep.mubr.bf16.mxu0 0
        %1593 = vmatmul.mubr.bf16.gmra.mrb[0].mxu0 %v1488
        %v1594 = vpop.f32.mrb[0].mxu0
        %v1595 = vadd.f32 %v1510, %v1594
        %v1596 = vpop.f32.mrb[0].mxu0
        %v1597 = vpop.f32.mrb[0].mxu0
        %v1598 = vadd.f32 %v1510, %v1597
        %v1599 = vpop.f32.mrb[0].mxu0
        %1600 = vdwg.mxu0
        %v1601 = vtanh.pop %v1595
        %v1602 = vtanh.pop %v1598
        %v1603 = vpack.c.bf16 %v1487, %v1486
        %v1604 = vld [vmem:[%s823] sm:$0xf]
        %v1605 = vld [vmem:[%s823 + $0x4] sm:$0xf]
        %v1606 = vld [vmem:[%s823 + $0x8] sm:$0xf]
        %v1607 = vld [vmem:[%s823 + $0xc] sm:$0xf]
        %v1608 = vld [vmem:[%s823 + $0x10] sm:$0xf]
        %v1609 = vld [vmem:[%s823 + $0x14] sm:$0xf]
        %v1610 = vld [vmem:[%s823 + $0x18] sm:$0xf]
        %v1611 = vld [vmem:[%s823 + $0x1c] sm:$0xf]
        %v1612 = vld [vmem:[%s823 + $0x20] sm:$0xf]
        %v1613 = vld [vmem:[%s823 + $0x24] sm:$0xf]
        %v1614 = vld [vmem:[%s823 + $0x28] sm:$0xf]
        %v1615 = vld [vmem:[%s823 + $0x2c] sm:$0xf]
        %v1616 = vld [vmem:[%s823 + $0x30] sm:$0xf]
        %v1617 = vld [vmem:[%s823 + $0x34] sm:$0xf]
        %v1618 = vld [vmem:[%s823 + $0x38] sm:$0xf]
        %v1619 = vld [vmem:[%s823 + $0x3c] sm:$0xf]
        %v1620 = vld [vmem:[%s999] sm:$0x1]
        %v1622 = vlaneseq
        %v1623 = vshrl.u32 %v1622, 7
        %v1624 = vsub.s32 0, %v1623
        %v1625 = vrot.slane %v1620, %v1624
        %v1643 = vunpack.c.l.b16 %v1604
        %v1644 = vunpack.c.l.b16 %v1605
        %v1645 = vunpack.c.l.b16 %v1606
        %v1646 = vunpack.c.l.b16 %v1607
        %v1647 = vunpack.c.l.b16 %v1608
        %v1648 = vunpack.c.l.b16 %v1609
        %v1649 = vunpack.c.l.b16 %v1610
        %v1650 = vunpack.c.l.b16 %v1611
        %v1651 = vunpack.c.l.b16 %v1612
        %v1652 = vunpack.c.l.b16 %v1613
        %v1653 = vunpack.c.l.b16 %v1614
        %v1654 = vunpack.c.l.b16 %v1615
        %v1655 = vunpack.c.l.b16 %v1616
        %v1656 = vunpack.c.l.b16 %v1617
        %v1657 = vunpack.c.l.b16 %v1618
        %v1658 = vunpack.c.l.b16 %v1619
        %v1659 = vpack.c.b16 %v1644, %v1643
        %v1660 = vpack.c.b16 %v1646, %v1645
        %v1661 = vpack.c.b16 %v1648, %v1647
        %v1662 = vpack.c.b16 %v1650, %v1649
        %v1663 = vpack.c.b16 %v1652, %v1651
        %v1664 = vpack.c.b16 %v1654, %v1653
        %v1665 = vpack.c.b16 %v1656, %v1655
        %v1666 = vpack.c.b16 %v1658, %v1657
        %1675 = vmatprep.subr.bf16.mxu0 0
        %1676 = vmatpush1.bf16.msra.mxu0 %v1659
        %1677 = vmatprep.subr.bf16.mxu0 0
        %1678 = vmatpush1.bf16.msra.mxu0 %v1660
        %1679 = vmatprep.subr.bf16.mxu0 0
        %1680 = vmatpush1.bf16.msra.mxu0 %v1661
        %1681 = vmatprep.subr.bf16.mxu0 0
        %1682 = vmatpush1.bf16.msra.mxu0 %v1662
        %1683 = vmatprep.subr.bf16.mxu0 0
        %1684 = vmatpush1.bf16.msra.mxu0 %v1663
        %1685 = vmatprep.subr.bf16.mxu0 0
        %1686 = vmatpush1.bf16.msra.mxu0 %v1664
        %1687 = vmatprep.subr.bf16.mxu0 0
        %1688 = vmatpush1.bf16.msra.mxu0 %v1665
        %1689 = vmatprep.subr.bf16.mxu0 0
        %1690 = vmatpush1.bf16.msra.mxu0 %v1666
        %1691 = vmatprep.subr.bf16.mxu0 0
        %1692 = vmatpush1.bf16.msra.mxu0 0
        %1693 = vmatprep.subr.bf16.mxu0 0
        %1694 = vmatpush1.bf16.msra.mxu0 0
        %1695 = vmatprep.subr.bf16.mxu0 0
        %1696 = vmatpush1.bf16.msra.mxu0 0
        %1697 = vmatprep.subr.bf16.mxu0 0
        %1698 = vmatpush1.bf16.msra.mxu0 0
        %1699 = vmatprep.subr.bf16.mxu0 0
        %1700 = vmatpush1.bf16.msra.mxu0 0
        %1701 = vmatprep.subr.bf16.mxu0 0
        %1702 = vmatpush1.bf16.msra.mxu0 0
        %1703 = vmatprep.subr.bf16.mxu0 0
        %1704 = vmatpush1.bf16.msra.mxu0 0
        %1705 = vmatprep.subr.bf16.mxu0 0
        %1706 = vmatpush1.bf16.msra.mxu0 0
        %1707 = vmatprep.mubr.bf16.mxu0 0
        %1708 = vmatmul.mubr.bf16.gmra.mrb[0].mxu0 %v1603
        %v1709 = vpop.f32.mrb[0].mxu0
        %v1710 = vadd.f32 %v1625, %v1709
        %v1711 = vpop.f32.mrb[0].mxu0
        %v1712 = vpop.f32.mrb[0].mxu0
        %v1713 = vadd.f32 %v1625, %v1712
        %v1714 = vpop.f32.mrb[0].mxu0
        %1715 = vdwg.mxu0
        %v1716 = vld [vmem:[#allocation3] sm:$0xff]
        %v1717 = vld [vmem:[#allocation3 + $0x8] sm:$0xff]
        %v1718 = vmul.f32 %v1601, 1.442695
        %v1719 = vpow.pop %v1718
        %v1720 = vmul.f32 %v1602, 1.442695
        %v1721 = vpow.pop %v1720
        %v1722 = vmul.f32 %v1716, %v1719
        %v1723 = vmul.f32 %v1717, %v1721
        %v1724 = vadd.f32 %v1722, %v1710
        %v1725 = vadd.f32 %v1723, %v1713
        %1726 = vst [vmem:[#allocation3] sm:$0xff] %v1724
        %1727 = vst [vmem:[#allocation3 + $0x8] sm:$0xff] %v1725
        %v1728 = vld [vmem:[#allocation4] sm:$0xff]
        %v1729 = vld [vmem:[#allocation4 + $0x8] sm:$0xff]
        %1730 = vadd.xlane.f32.xlu0 %v1601
        %v1731 = vpop.xlane.xlu0 %1730
        %1732 = vadd.xlane.f32.xlu0 %v1602
        %v1733 = vpop.xlane.xlu0 %1732
        %v1734 = vadd.f32 %v1728, %v1731
        %v1735 = vadd.f32 %v1729, %v1733
        %vm1736 = vcmask 7168
        %1737 = vst.msk [vmem:[#allocation4] sm:$0xff] %vm1736, %v1734
        %1738 = vst.msk [vmem:[#allocation4 + $0x8] sm:$0xff] %vm1736, %v1735
        %p1739 = scmp.eq.s32.totalorder %s48, 1
        // Predicated region
        $region129: #{tpu_custom_call.1} parent=79 // pred_check
          %p1740 = pneg %p1739
        $region130: #{tpu_custom_call.1} parent=79 // pred_check_branch
          %1742 = sbr.rel (%p1740) target = $region132
        $region131: #{tpu_custom_call.1} parent=79 // pred_region
          %v1743 = vld [vmem:[#allocation2] sm:$0xff]
          %v1744 = vld [vmem:[#allocation2 + $0x8] sm:$0xff]
          %v1745 = vld [vmem:[%s832] sm:$0xff]
          %v1746 = vld [vmem:[%s832 + $0x8] sm:$0xff]
          %v1747 = vld [vmem:[%s832 + $0x10] sm:$0xff]
          %v1748 = vld [vmem:[%s832 + $0x18] sm:$0xff]
          %v1749 = vld [vmem:[%s832 + $0x20] sm:$0xff]
          %v1750 = vld [vmem:[%s832 + $0x28] sm:$0xff]
          %v1751 = vld [vmem:[%s832 + $0x30] sm:$0xff]
          %v1752 = vld [vmem:[%s832 + $0x38] sm:$0xff]
          %v1753 = vld [vmem:[%s832 + $0x40] sm:$0xff]
          %v1754 = vld [vmem:[%s832 + $0x48] sm:$0xff]
          %v1755 = vld [vmem:[%s832 + $0x50] sm:$0xff]
          %v1756 = vld [vmem:[%s832 + $0x58] sm:$0xff]
          %v1757 = vld [vmem:[%s832 + $0x60] sm:$0xff]
          %v1758 = vld [vmem:[%s832 + $0x68] sm:$0xff]
          %v1759 = vld [vmem:[%s832 + $0x70] sm:$0xff]
          %v1760 = vld [vmem:[%s832 + $0x78] sm:$0xff]
          %v1761 = vld [vmem:[%s832 + $0x80] sm:$0xff]
          %v1762 = vld [vmem:[%s832 + $0x88] sm:$0xff]
          %v1763 = vld [vmem:[%s832 + $0x90] sm:$0xff]
          %v1764 = vld [vmem:[%s832 + $0x98] sm:$0xff]
          %v1765 = vld [vmem:[%s832 + $0xa0] sm:$0xff]
          %v1766 = vld [vmem:[%s832 + $0xa8] sm:$0xff]
          %v1767 = vld [vmem:[%s832 + $0xb0] sm:$0xff]
          %v1768 = vld [vmem:[%s832 + $0xb8] sm:$0xff]
          %v1769 = vld [vmem:[%s832 + $0xc0] sm:$0xff]
          %v1770 = vld [vmem:[%s832 + $0xc8] sm:$0xff]
          %v1771 = vld [vmem:[%s832 + $0xd0] sm:$0xff]
          %v1772 = vld [vmem:[%s832 + $0xd8] sm:$0xff]
          %v1773 = vld [vmem:[%s832 + $0xe0] sm:$0xff]
          %v1774 = vld [vmem:[%s832 + $0xe8] sm:$0xff]
          %v1775 = vld [vmem:[%s832 + $0xf0] sm:$0xff]
          %v1776 = vld [vmem:[%s832 + $0xf8] sm:$0xff]
          %v1777 = vld [vmem:[#allocation3] sm:$0xff]
          %v1778 = vld [vmem:[#allocation3 + $0x8] sm:$0xff]
          %v1779 = vld [vmem:[%s841] sm:$0xff]
          %v1780 = vld [vmem:[%s841 + $0x8] sm:$0xff]
          %v1781 = vld [vmem:[%s841 + $0x10] sm:$0xff]
          %v1782 = vld [vmem:[%s841 + $0x18] sm:$0xff]
          %v1783 = vld [vmem:[%s841 + $0x20] sm:$0xff]
          %v1784 = vld [vmem:[%s841 + $0x28] sm:$0xff]
          %v1785 = vld [vmem:[%s841 + $0x30] sm:$0xff]
          %v1786 = vld [vmem:[%s841 + $0x38] sm:$0xff]
          %v1787 = vld [vmem:[%s841 + $0x40] sm:$0xff]
          %v1788 = vld [vmem:[%s841 + $0x48] sm:$0xff]
          %v1789 = vld [vmem:[%s841 + $0x50] sm:$0xff]
          %v1790 = vld [vmem:[%s841 + $0x58] sm:$0xff]
          %v1791 = vld [vmem:[%s841 + $0x60] sm:$0xff]
          %v1792 = vld [vmem:[%s841 + $0x68] sm:$0xff]
          %v1793 = vld [vmem:[%s841 + $0x70] sm:$0xff]
          %v1794 = vld [vmem:[%s841 + $0x78] sm:$0xff]
          %v1795 = vld [vmem:[%s841 + $0x80] sm:$0xff]
          %v1796 = vld [vmem:[%s841 + $0x88] sm:$0xff]
          %v1797 = vld [vmem:[%s841 + $0x90] sm:$0xff]
          %v1798 = vld [vmem:[%s841 + $0x98] sm:$0xff]
          %v1799 = vld [vmem:[%s841 + $0xa0] sm:$0xff]
          %v1800 = vld [vmem:[%s841 + $0xa8] sm:$0xff]
          %v1801 = vld [vmem:[%s841 + $0xb0] sm:$0xff]
          %v1802 = vld [vmem:[%s841 + $0xb8] sm:$0xff]
          %v1803 = vld [vmem:[%s841 + $0xc0] sm:$0xff]
          %v1804 = vld [vmem:[%s841 + $0xc8] sm:$0xff]
          %v1805 = vld [vmem:[%s841 + $0xd0] sm:$0xff]
          %v1806 = vld [vmem:[%s841 + $0xd8] sm:$0xff]
          %v1807 = vld [vmem:[%s841 + $0xe0] sm:$0xff]
          %v1808 = vld [vmem:[%s841 + $0xe8] sm:$0xff]
          %v1809 = vld [vmem:[%s841 + $0xf0] sm:$0xff]
          %v1810 = vld [vmem:[%s841 + $0xf8] sm:$0xff]
          %v1811 = vand.u32 %v1780, 4294901760
          %1812 = vmatprep.subr.mxu0 %v1811
          %v1813 = vand.u32 %v1779, 4294901760
          %1814 = vmatpush1.msra.mxu0 %v1813
          %v1815 = vand.u32 %v1782, 4294901760
          %1816 = vmatprep.subr.mxu0 %v1815
          %v1817 = vand.u32 %v1781, 4294901760
          %1818 = vmatpush1.msra.mxu0 %v1817
          %v1819 = vand.u32 %v1784, 4294901760
          %1820 = vmatprep.subr.mxu0 %v1819
          %v1821 = vand.u32 %v1783, 4294901760
          %1822 = vmatpush1.msra.mxu0 %v1821
          %v1823 = vand.u32 %v1786, 4294901760
          %1824 = vmatprep.subr.mxu0 %v1823
          %v1825 = vand.u32 %v1785, 4294901760
          %1826 = vmatpush1.msra.mxu0 %v1825
          %v1827 = vand.u32 %v1788, 4294901760
          %1828 = vmatprep.subr.mxu0 %v1827
          %v1829 = vand.u32 %v1787, 4294901760
          %1830 = vmatpush1.msra.mxu0 %v1829
          %v1831 = vand.u32 %v1790, 4294901760
          %1832 = vmatprep.subr.mxu0 %v1831
          %v1833 = vand.u32 %v1789, 4294901760
          %1834 = vmatpush1.msra.mxu0 %v1833
          %v1835 = vand.u32 %v1792, 4294901760
          %1836 = vmatprep.subr.mxu0 %v1835
          %v1837 = vand.u32 %v1791, 4294901760
          %1838 = vmatpush1.msra.mxu0 %v1837
          %v1839 = vand.u32 %v1794, 4294901760
          %1840 = vmatprep.subr.mxu0 %v1839
          %v1841 = vand.u32 %v1793, 4294901760
          %1842 = vmatpush1.msra.mxu0 %v1841
          %v1843 = vand.u32 %v1796, 4294901760
          %1844 = vmatprep.subr.mxu0 %v1843
          %v1845 = vand.u32 %v1795, 4294901760
          %1846 = vmatpush1.msra.mxu0 %v1845
          %v1847 = vand.u32 %v1798, 4294901760
          %1848 = vmatprep.subr.mxu0 %v1847
          %v1849 = vand.u32 %v1797, 4294901760
          %1850 = vmatpush1.msra.mxu0 %v1849
          %v1851 = vand.u32 %v1800, 4294901760
          %1852 = vmatprep.subr.mxu0 %v1851
          %v1853 = vand.u32 %v1799, 4294901760
          %1854 = vmatpush1.msra.mxu0 %v1853
          %v1855 = vand.u32 %v1802, 4294901760
          %1856 = vmatprep.subr.mxu0 %v1855
          %v1857 = vand.u32 %v1801, 4294901760
          %1858 = vmatpush1.msra.mxu0 %v1857
          %v1859 = vand.u32 %v1804, 4294901760
          %1860 = vmatprep.subr.mxu0 %v1859
          %v1861 = vand.u32 %v1803, 4294901760
          %1862 = vmatpush1.msra.mxu0 %v1861
          %v1863 = vand.u32 %v1806, 4294901760
          %1864 = vmatprep.subr.mxu0 %v1863
          %v1865 = vand.u32 %v1805, 4294901760
          %1866 = vmatpush1.msra.mxu0 %v1865
          %v1867 = vand.u32 %v1808, 4294901760
          %1868 = vmatprep.subr.mxu0 %v1867
          %v1869 = vand.u32 %v1807, 4294901760
          %1870 = vmatpush1.msra.mxu0 %v1869
          %v1871 = vand.u32 %v1810, 4294901760
          %1872 = vmatprep.subr.mxu0 %v1871
          %v1873 = vand.u32 %v1809, 4294901760
          %1874 = vmatpush1.msra.mxu0 %v1873
          %1875 = vmatprep.subr.mxu0 0.0
          %1876 = vmatpush1.msra.mxu0 0.0
          %1877 = vmatprep.subr.mxu0 0.0
          %1878 = vmatpush1.msra.mxu0 0.0
          %1879 = vmatprep.subr.mxu0 0.0
          %1880 = vmatpush1.msra.mxu0 0.0
          %1881 = vmatprep.subr.mxu0 0.0
          %1882 = vmatpush1.msra.mxu0 0.0
          %1883 = vmatprep.subr.mxu0 0.0
          %1884 = vmatpush1.msra.mxu0 0.0
          %1885 = vmatprep.subr.mxu0 0.0
          %1886 = vmatpush1.msra.mxu0 0.0
          %1887 = vmatprep.subr.mxu0 0.0
          %1888 = vmatpush1.msra.mxu0 0.0
          %1889 = vmatprep.subr.mxu0 0.0
          %1890 = vmatpush1.msra.mxu0 0.0
          %1891 = vmatprep.subr.mxu0 0.0
          %1892 = vmatpush1.msra.mxu0 0.0
          %1893 = vmatprep.subr.mxu0 0.0
          %1894 = vmatpush1.msra.mxu0 0.0
          %1895 = vmatprep.subr.mxu0 0.0
          %1896 = vmatpush1.msra.mxu0 0.0
          %1897 = vmatprep.subr.mxu0 0.0
          %1898 = vmatpush1.msra.mxu0 0.0
          %1899 = vmatprep.subr.mxu0 0.0
          %1900 = vmatpush1.msra.mxu0 0.0
          %1901 = vmatprep.subr.mxu0 0.0
          %1902 = vmatpush1.msra.mxu0 0.0
          %1903 = vmatprep.subr.mxu0 0.0
          %1904 = vmatpush1.msra.mxu0 0.0
          %1905 = vmatprep.subr.mxu0 0.0
          %1906 = vmatpush1.msra.mxu0 0.0
          %1907 = vmatprep.mubr.f32.mxu0 0.0
          %v1908 = vand.u32 %v1777, 4294901760
          %v1909 = vsub.f32 %v1777, %v1908
          %v1910 = vand.u32 %v1909, 4294901760
          %v1911 = vsub.f32 %v1909, %v1910
          %v1912 = vand.u32 %v1911, 4294901760
          %1913 = vmatmul.mubr.f32.gmra.mrb[0].mxu0 %v1912
          %v1914 = vpop.f32.mrb[0].mxu0
          %v1915 = vadd.f32 0.0, %v1914
          %v1916 = vpop.f32.mrb[0].mxu0
          %v1917 = vadd.f32 0.0, %v1916
          %1918 = vmatprep.mubr.f32.mxu0 0.0
          %v1919 = vand.u32 %v1778, 4294901760
          %v1920 = vsub.f32 %v1778, %v1919
          %v1921 = vand.u32 %v1920, 4294901760
          %v1922 = vsub.f32 %v1920, %v1921
          %v1923 = vand.u32 %v1922, 4294901760
          %1924 = vmatmul.mubr.f32.gmra.mrb[0].mxu0 %v1923
          %v1925 = vpop.f32.mrb[0].mxu0
          %v1926 = vadd.f32 0.0, %v1925
          %v1927 = vpop.f32.mrb[0].mxu0
          %v1928 = vadd.f32 0.0, %v1927
          %1929 = vdwg.mxu0
          %v1930 = vand.u32 %v1780, 4294901760
          %v1931 = vsub.f32 %v1780, %v1930
          %v1932 = vand.u32 %v1931, 4294901760
          %v1933 = vsub.f32 %v1931, %v1932
          %v1934 = vand.u32 %v1933, 4294901760
          %1935 = vmatprep.subr.mxu0 %v1934
          %v1936 = vand.u32 %v1779, 4294901760
          %v1937 = vsub.f32 %v1779, %v1936
          %v1938 = vand.u32 %v1937, 4294901760
          %v1939 = vsub.f32 %v1937, %v1938
          %v1940 = vand.u32 %v1939, 4294901760
          %1941 = vmatpush1.msra.mxu0 %v1940
          %v1942 = vand.u32 %v1782, 4294901760
          %v1943 = vsub.f32 %v1782, %v1942
          %v1944 = vand.u32 %v1943, 4294901760
          %v1945 = vsub.f32 %v1943, %v1944
          %v1946 = vand.u32 %v1945, 4294901760
          %1947 = vmatprep.subr.mxu0 %v1946
          %v1948 = vand.u32 %v1781, 4294901760
          %v1949 = vsub.f32 %v1781, %v1948
          %v1950 = vand.u32 %v1949, 4294901760
          %v1951 = vsub.f32 %v1949, %v1950
          %v1952 = vand.u32 %v1951, 4294901760
          %1953 = vmatpush1.msra.mxu0 %v1952
          %v1954 = vand.u32 %v1784, 4294901760
          %v1955 = vsub.f32 %v1784, %v1954
          %v1956 = vand.u32 %v1955, 4294901760
          %v1957 = vsub.f32 %v1955, %v1956
          %v1958 = vand.u32 %v1957, 4294901760
          %1959 = vmatprep.subr.mxu0 %v1958
          %v1960 = vand.u32 %v1783, 4294901760
          %v1961 = vsub.f32 %v1783, %v1960
          %v1962 = vand.u32 %v1961, 4294901760
          %v1963 = vsub.f32 %v1961, %v1962
          %v1964 = vand.u32 %v1963, 4294901760
          %1965 = vmatpush1.msra.mxu0 %v1964
          %v1966 = vand.u32 %v1786, 4294901760
          %v1967 = vsub.f32 %v1786, %v1966
          %v1968 = vand.u32 %v1967, 4294901760
          %v1969 = vsub.f32 %v1967, %v1968
          %v1970 = vand.u32 %v1969, 4294901760
          %1971 = vmatprep.subr.mxu0 %v1970
          %v1972 = vand.u32 %v1785, 4294901760
          %v1973 = vsub.f32 %v1785, %v1972
          %v1974 = vand.u32 %v1973, 4294901760
          %v1975 = vsub.f32 %v1973, %v1974
          %v1976 = vand.u32 %v1975, 4294901760
          %1977 = vmatpush1.msra.mxu0 %v1976
          %v1978 = vand.u32 %v1788, 4294901760
          %v1979 = vsub.f32 %v1788, %v1978
          %v1980 = vand.u32 %v1979, 4294901760
          %v1981 = vsub.f32 %v1979, %v1980
          %v1982 = vand.u32 %v1981, 4294901760
          %1983 = vmatprep.subr.mxu0 %v1982
          %v1984 = vand.u32 %v1787, 4294901760
          %v1985 = vsub.f32 %v1787, %v1984
          %v1986 = vand.u32 %v1985, 4294901760
          %v1987 = vsub.f32 %v1985, %v1986
          %v1988 = vand.u32 %v1987, 4294901760
          %1989 = vmatpush1.msra.mxu0 %v1988
          %v1990 = vand.u32 %v1790, 4294901760
          %v1991 = vsub.f32 %v1790, %v1990
          %v1992 = vand.u32 %v1991, 4294901760
          %v1993 = vsub.f32 %v1991, %v1992
          %v1994 = vand.u32 %v1993, 4294901760
          %1995 = vmatprep.subr.mxu0 %v1994
          %v1996 = vand.u32 %v1789, 4294901760
          %v1997 = vsub.f32 %v1789, %v1996
          %v1998 = vand.u32 %v1997, 4294901760
          %v1999 = vsub.f32 %v1997, %v1998
          %v2000 = vand.u32 %v1999, 4294901760
          %2001 = vmatpush1.msra.mxu0 %v2000
          %v2002 = vand.u32 %v1792, 4294901760
          %v2003 = vsub.f32 %v1792, %v2002
          %v2004 = vand.u32 %v2003, 4294901760
          %v2005 = vsub.f32 %v2003, %v2004
          %v2006 = vand.u32 %v2005, 4294901760
          %2007 = vmatprep.subr.mxu0 %v2006
          %v2008 = vand.u32 %v1791, 4294901760
          %v2009 = vsub.f32 %v1791, %v2008
          %v2010 = vand.u32 %v2009, 4294901760
          %v2011 = vsub.f32 %v2009, %v2010
          %v2012 = vand.u32 %v2011, 4294901760
          %2013 = vmatpush1.msra.mxu0 %v2012
          %v2014 = vand.u32 %v1794, 4294901760
          %v2015 = vsub.f32 %v1794, %v2014
          %v2016 = vand.u32 %v2015, 4294901760
          %v2017 = vsub.f32 %v2015, %v2016
          %v2018 = vand.u32 %v2017, 4294901760
          %2019 = vmatprep.subr.mxu0 %v2018
          %v2020 = vand.u32 %v1793, 4294901760
          %v2021 = vsub.f32 %v1793, %v2020
          %v2022 = vand.u32 %v2021, 4294901760
          %v2023 = vsub.f32 %v2021, %v2022
          %v2024 = vand.u32 %v2023, 4294901760
          %2025 = vmatpush1.msra.mxu0 %v2024
          %v2026 = vand.u32 %v1796, 4294901760
          %v2027 = vsub.f32 %v1796, %v2026
          %v2028 = vand.u32 %v2027, 4294901760
          %v2029 = vsub.f32 %v2027, %v2028
          %v2030 = vand.u32 %v2029, 4294901760
          %2031 = vmatprep.subr.mxu0 %v2030
          %v2032 = vand.u32 %v1795, 4294901760
          %v2033 = vsub.f32 %v1795, %v2032
          %v2034 = vand.u32 %v2033, 4294901760
          %v2035 = vsub.f32 %v2033, %v2034
          %v2036 = vand.u32 %v2035, 4294901760
          %2037 = vmatpush1.msra.mxu0 %v2036
          %v2038 = vand.u32 %v1798, 4294901760
          %v2039 = vsub.f32 %v1798, %v2038
          %v2040 = vand.u32 %v2039, 4294901760
          %v2041 = vsub.f32 %v2039, %v2040
          %v2042 = vand.u32 %v2041, 4294901760
          %2043 = vmatprep.subr.mxu0 %v2042
          %v2044 = vand.u32 %v1797, 4294901760
          %v2045 = vsub.f32 %v1797, %v2044
          %v2046 = vand.u32 %v2045, 4294901760
          %v2047 = vsub.f32 %v2045, %v2046
          %v2048 = vand.u32 %v2047, 4294901760
          %2049 = vmatpush1.msra.mxu0 %v2048
          %v2050 = vand.u32 %v1800, 4294901760
          %v2051 = vsub.f32 %v1800, %v2050
          %v2052 = vand.u32 %v2051, 4294901760
          %v2053 = vsub.f32 %v2051, %v2052
          %v2054 = vand.u32 %v2053, 4294901760
          %2055 = vmatprep.subr.mxu0 %v2054
          %v2056 = vand.u32 %v1799, 4294901760
          %v2057 = vsub.f32 %v1799, %v2056
          %v2058 = vand.u32 %v2057, 4294901760
          %v2059 = vsub.f32 %v2057, %v2058
          %v2060 = vand.u32 %v2059, 4294901760
          %2061 = vmatpush1.msra.mxu0 %v2060
          %v2062 = vand.u32 %v1802, 4294901760
          %v2063 = vsub.f32 %v1802, %v2062
          %v2064 = vand.u32 %v2063, 4294901760
          %v2065 = vsub.f32 %v2063, %v2064
          %v2066 = vand.u32 %v2065, 4294901760
          %2067 = vmatprep.subr.mxu0 %v2066
          %v2068 = vand.u32 %v1801, 4294901760
          %v2069 = vsub.f32 %v1801, %v2068
          %v2070 = vand.u32 %v2069, 4294901760
          %v2071 = vsub.f32 %v2069, %v2070
          %v2072 = vand.u32 %v2071, 4294901760
          %2073 = vmatpush1.msra.mxu0 %v2072
          %v2074 = vand.u32 %v1804, 4294901760
          %v2075 = vsub.f32 %v1804, %v2074
          %v2076 = vand.u32 %v2075, 4294901760
          %v2077 = vsub.f32 %v2075, %v2076
          %v2078 = vand.u32 %v2077, 4294901760
          %2079 = vmatprep.subr.mxu0 %v2078
          %v2080 = vand.u32 %v1803, 4294901760
          %v2081 = vsub.f32 %v1803, %v2080
          %v2082 = vand.u32 %v2081, 4294901760
          %v2083 = vsub.f32 %v2081, %v2082
          %v2084 = vand.u32 %v2083, 4294901760
          %2085 = vmatpush1.msra.mxu0 %v2084
          %v2086 = vand.u32 %v1806, 4294901760
          %v2087 = vsub.f32 %v1806, %v2086
          %v2088 = vand.u32 %v2087, 4294901760
          %v2089 = vsub.f32 %v2087, %v2088
          %v2090 = vand.u32 %v2089, 4294901760
          %2091 = vmatprep.subr.mxu0 %v2090
          %v2092 = vand.u32 %v1805, 4294901760
          %v2093 = vsub.f32 %v1805, %v2092
          %v2094 = vand.u32 %v2093, 4294901760
          %v2095 = vsub.f32 %v2093, %v2094
          %v2096 = vand.u32 %v2095, 4294901760
          %2097 = vmatpush1.msra.mxu0 %v2096
          %v2098 = vand.u32 %v1808, 4294901760
          %v2099 = vsub.f32 %v1808, %v2098
          %v2100 = vand.u32 %v2099, 4294901760
          %v2101 = vsub.f32 %v2099, %v2100
          %v2102 = vand.u32 %v2101, 4294901760
          %2103 = vmatprep.subr.mxu0 %v2102
          %v2104 = vand.u32 %v1807, 4294901760
          %v2105 = vsub.f32 %v1807, %v2104
          %v2106 = vand.u32 %v2105, 4294901760
          %v2107 = vsub.f32 %v2105, %v2106
          %v2108 = vand.u32 %v2107, 4294901760
          %2109 = vmatpush1.msra.mxu0 %v2108
          %v2110 = vand.u32 %v1810, 4294901760
          %v2111 = vsub.f32 %v1810, %v2110
          %v2112 = vand.u32 %v2111, 4294901760
          %v2113 = vsub.f32 %v2111, %v2112
          %v2114 = vand.u32 %v2113, 4294901760
          %2115 = vmatprep.subr.mxu0 %v2114
          %v2116 = vand.u32 %v1809, 4294901760
          %v2117 = vsub.f32 %v1809, %v2116
          %v2118 = vand.u32 %v2117, 4294901760
          %v2119 = vsub.f32 %v2117, %v2118
          %v2120 = vand.u32 %v2119, 4294901760
          %2121 = vmatpush1.msra.mxu0 %v2120
          %2122 = vmatprep.subr.mxu0 0.0
          %2123 = vmatpush1.msra.mxu0 0.0
          %2124 = vmatprep.subr.mxu0 0.0
          %2125 = vmatpush1.msra.mxu0 0.0
          %2126 = vmatprep.subr.mxu0 0.0
          %2127 = vmatpush1.msra.mxu0 0.0
          %2128 = vmatprep.subr.mxu0 0.0
          %2129 = vmatpush1.msra.mxu0 0.0
          %2130 = vmatprep.subr.mxu0 0.0
          %2131 = vmatpush1.msra.mxu0 0.0
          %2132 = vmatprep.subr.mxu0 0.0
          %2133 = vmatpush1.msra.mxu0 0.0
          %2134 = vmatprep.subr.mxu0 0.0
          %2135 = vmatpush1.msra.mxu0 0.0
          %2136 = vmatprep.subr.mxu0 0.0
          %2137 = vmatpush1.msra.mxu0 0.0
          %2138 = vmatprep.subr.mxu0 0.0
          %2139 = vmatpush1.msra.mxu0 0.0
          %2140 = vmatprep.subr.mxu0 0.0
          %2141 = vmatpush1.msra.mxu0 0.0
          %2142 = vmatprep.subr.mxu0 0.0
          %2143 = vmatpush1.msra.mxu0 0.0
          %2144 = vmatprep.subr.mxu0 0.0
          %2145 = vmatpush1.msra.mxu0 0.0
          %2146 = vmatprep.subr.mxu0 0.0
          %2147 = vmatpush1.msra.mxu0 0.0
          %2148 = vmatprep.subr.mxu0 0.0
          %2149 = vmatpush1.msra.mxu0 0.0
          %2150 = vmatprep.subr.mxu0 0.0
          %2151 = vmatpush1.msra.mxu0 0.0
          %2152 = vmatprep.subr.mxu0 0.0
          %2153 = vmatpush1.msra.mxu0 0.0
          %2154 = vmatprep.mubr.f32.mxu0 0.0
          %v2155 = vand.u32 %v1777, 4294901760
          %2156 = vmatmul.mubr.f32.gmra.mrb[0].mxu0 %v2155
          %v2157 = vpop.f32.mrb[0].mxu0
          %v2158 = vadd.f32 %v1915, %v2157
          %v2159 = vpop.f32.mrb[0].mxu0
          %v2160 = vadd.f32 %v1917, %v2159
          %2161 = vmatprep.mubr.f32.mxu0 0.0
          %v2162 = vand.u32 %v1778, 4294901760
          %2163 = vmatmul.mubr.f32.gmra.mrb[0].mxu0 %v2162
          %v2164 = vpop.f32.mrb[0].mxu0
          %v2165 = vadd.f32 %v1926, %v2164
          %v2166 = vpop.f32.mrb[0].mxu0
          %v2167 = vadd.f32 %v1928, %v2166
          %2168 = vdwg.mxu0
          %v2169 = vand.u32 %v1780, 4294901760
          %v2170 = vsub.f32 %v1780, %v2169
          %2171 = vmatprep.subr.mxu0 %v2170
          %v2172 = vand.u32 %v1779, 4294901760
          %v2173 = vsub.f32 %v1779, %v2172
          %2174 = vmatpush1.msra.mxu0 %v2173
          %v2175 = vand.u32 %v1782, 4294901760
          %v2176 = vsub.f32 %v1782, %v2175
          %2177 = vmatprep.subr.mxu0 %v2176
          %v2178 = vand.u32 %v1781, 4294901760
          %v2179 = vsub.f32 %v1781, %v2178
          %2180 = vmatpush1.msra.mxu0 %v2179
          %v2181 = vand.u32 %v1784, 4294901760
          %v2182 = vsub.f32 %v1784, %v2181
          %2183 = vmatprep.subr.mxu0 %v2182
          %v2184 = vand.u32 %v1783, 4294901760
          %v2185 = vsub.f32 %v1783, %v2184
          %2186 = vmatpush1.msra.mxu0 %v2185
          %v2187 = vand.u32 %v1786, 4294901760
          %v2188 = vsub.f32 %v1786, %v2187
          %2189 = vmatprep.subr.mxu0 %v2188
          %v2190 = vand.u32 %v1785, 4294901760
          %v2191 = vsub.f32 %v1785, %v2190
          %2192 = vmatpush1.msra.mxu0 %v2191
          %v2193 = vand.u32 %v1788, 4294901760
          %v2194 = vsub.f32 %v1788, %v2193
          %2195 = vmatprep.subr.mxu0 %v2194
          %v2196 = vand.u32 %v1787, 4294901760
          %v2197 = vsub.f32 %v1787, %v2196
          %2198 = vmatpush1.msra.mxu0 %v2197
          %v2199 = vand.u32 %v1790, 4294901760
          %v2200 = vsub.f32 %v1790, %v2199
          %2201 = vmatprep.subr.mxu0 %v2200
          %v2202 = vand.u32 %v1789, 4294901760
          %v2203 = vsub.f32 %v1789, %v2202
          %2204 = vmatpush1.msra.mxu0 %v2203
          %v2205 = vand.u32 %v1792, 4294901760
          %v2206 = vsub.f32 %v1792, %v2205
          %2207 = vmatprep.subr.mxu0 %v2206
          %v2208 = vand.u32 %v1791, 4294901760
          %v2209 = vsub.f32 %v1791, %v2208
          %2210 = vmatpush1.msra.mxu0 %v2209
          %v2211 = vand.u32 %v1794, 4294901760
          %v2212 = vsub.f32 %v1794, %v2211
          %2213 = vmatprep.subr.mxu0 %v2212
          %v2214 = vand.u32 %v1793, 4294901760
          %v2215 = vsub.f32 %v1793, %v2214
          %2216 = vmatpush1.msra.mxu0 %v2215
          %v2217 = vand.u32 %v1796, 4294901760
          %v2218 = vsub.f32 %v1796, %v2217
          %2219 = vmatprep.subr.mxu0 %v2218
          %v2220 = vand.u32 %v1795, 4294901760
          %v2221 = vsub.f32 %v1795, %v2220
          %2222 = vmatpush1.msra.mxu0 %v2221
          %v2223 = vand.u32 %v1798, 4294901760
          %v2224 = vsub.f32 %v1798, %v2223
          %2225 = vmatprep.subr.mxu0 %v2224
          %v2226 = vand.u32 %v1797, 4294901760
          %v2227 = vsub.f32 %v1797, %v2226
          %2228 = vmatpush1.msra.mxu0 %v2227
          %v2229 = vand.u32 %v1800, 4294901760
          %v2230 = vsub.f32 %v1800, %v2229
          %2231 = vmatprep.subr.mxu0 %v2230
          %v2232 = vand.u32 %v1799, 4294901760
          %v2233 = vsub.f32 %v1799, %v2232
          %2234 = vmatpush1.msra.mxu0 %v2233
          %v2235 = vand.u32 %v1802, 4294901760
          %v2236 = vsub.f32 %v1802, %v2235
          %2237 = vmatprep.subr.mxu0 %v2236
          %v2238 = vand.u32 %v1801, 4294901760
          %v2239 = vsub.f32 %v1801, %v2238
          %2240 = vmatpush1.msra.mxu0 %v2239
          %v2241 = vand.u32 %v1804, 4294901760
          %v2242 = vsub.f32 %v1804, %v2241
          %2243 = vmatprep.subr.mxu0 %v2242
          %v2244 = vand.u32 %v1803, 4294901760
          %v2245 = vsub.f32 %v1803, %v2244
          %2246 = vmatpush1.msra.mxu0 %v2245
          %v2247 = vand.u32 %v1806, 4294901760
          %v2248 = vsub.f32 %v1806, %v2247
          %2249 = vmatprep.subr.mxu0 %v2248
          %v2250 = vand.u32 %v1805, 4294901760
          %v2251 = vsub.f32 %v1805, %v2250
          %2252 = vmatpush1.msra.mxu0 %v2251
          %v2253 = vand.u32 %v1808, 4294901760
          %v2254 = vsub.f32 %v1808, %v2253
          %2255 = vmatprep.subr.mxu0 %v2254
          %v2256 = vand.u32 %v1807, 4294901760
          %v2257 = vsub.f32 %v1807, %v2256
          %2258 = vmatpush1.msra.mxu0 %v2257
          %v2259 = vand.u32 %v1810, 4294901760
          %v2260 = vsub.f32 %v1810, %v2259
          %2261 = vmatprep.subr.mxu0 %v2260
          %v2262 = vand.u32 %v1809, 4294901760
          %v2263 = vsub.f32 %v1809, %v2262
          %2264 = vmatpush1.msra.mxu0 %v2263
          %2265 = vmatprep.subr.mxu0 0.0
          %2266 = vmatpush1.msra.mxu0 0.0
          %2267 = vmatprep.subr.mxu0 0.0
          %2268 = vmatpush1.msra.mxu0 0.0
          %2269 = vmatprep.subr.mxu0 0.0
          %2270 = vmatpush1.msra.mxu0 0.0
          %2271 = vmatprep.subr.mxu0 0.0
          %2272 = vmatpush1.msra.mxu0 0.0
          %2273 = vmatprep.subr.mxu0 0.0
          %2274 = vmatpush1.msra.mxu0 0.0
          %2275 = vmatprep.subr.mxu0 0.0
          %2276 = vmatpush1.msra.mxu0 0.0
          %2277 = vmatprep.subr.mxu0 0.0
          %2278 = vmatpush1.msra.mxu0 0.0
          %2279 = vmatprep.subr.mxu0 0.0
          %2280 = vmatpush1.msra.mxu0 0.0
          %2281 = vmatprep.subr.mxu0 0.0
          %2282 = vmatpush1.msra.mxu0 0.0
          %2283 = vmatprep.subr.mxu0 0.0
          %2284 = vmatpush1.msra.mxu0 0.0
          %2285 = vmatprep.subr.mxu0 0.0
          %2286 = vmatpush1.msra.mxu0 0.0
          %2287 = vmatprep.subr.mxu0 0.0
          %2288 = vmatpush1.msra.mxu0 0.0
          %2289 = vmatprep.subr.mxu0 0.0
          %2290 = vmatpush1.msra.mxu0 0.0
          %2291 = vmatprep.subr.mxu0 0.0
          %2292 = vmatpush1.msra.mxu0 0.0
          %2293 = vmatprep.subr.mxu0 0.0
          %2294 = vmatpush1.msra.mxu0 0.0
          %2295 = vmatprep.subr.mxu0 0.0
          %2296 = vmatpush1.msra.mxu0 0.0
          %2297 = vmatprep.mubr.f32.mxu0 0.0
          %v2298 = vand.u32 %v1777, 4294901760
          %v2299 = vsub.f32 %v1777, %v2298
          %2300 = vmatmul.mubr.f32.gmra.mrb[0].mxu0 %v2299
          %v2301 = vpop.f32.mrb[0].mxu0
          %v2302 = vadd.f32 %v2158, %v2301
          %v2303 = vpop.f32.mrb[0].mxu0
          %v2304 = vadd.f32 %v2160, %v2303
          %2305 = vmatprep.mubr.f32.mxu0 0.0
          %v2306 = vand.u32 %v1778, 4294901760
          %v2307 = vsub.f32 %v1778, %v2306
          %2308 = vmatmul.mubr.f32.gmra.mrb[0].mxu0 %v2307
          %v2309 = vpop.f32.mrb[0].mxu0
          %v2310 = vadd.f32 %v2165, %v2309
          %v2311 = vpop.f32.mrb[0].mxu0
          %v2312 = vadd.f32 %v2167, %v2311
          %2313 = vdwg.mxu0
          %v2314 = vand.u32 %v1780, 4294901760
          %2315 = vmatprep.subr.mxu0 %v2314
          %v2316 = vand.u32 %v1779, 4294901760
          %2317 = vmatpush1.msra.mxu0 %v2316
          %v2318 = vand.u32 %v1782, 4294901760
          %2319 = vmatprep.subr.mxu0 %v2318
          %v2320 = vand.u32 %v1781, 4294901760
          %2321 = vmatpush1.msra.mxu0 %v2320
          %v2322 = vand.u32 %v1784, 4294901760
          %2323 = vmatprep.subr.mxu0 %v2322
          %v2324 = vand.u32 %v1783, 4294901760
          %2325 = vmatpush1.msra.mxu0 %v2324
          %v2326 = vand.u32 %v1786, 4294901760
          %2327 = vmatprep.subr.mxu0 %v2326
          %v2328 = vand.u32 %v1785, 4294901760
          %2329 = vmatpush1.msra.mxu0 %v2328
          %v2330 = vand.u32 %v1788, 4294901760
          %2331 = vmatprep.subr.mxu0 %v2330
          %v2332 = vand.u32 %v1787, 4294901760
          %2333 = vmatpush1.msra.mxu0 %v2332
          %v2334 = vand.u32 %v1790, 4294901760
          %2335 = vmatprep.subr.mxu0 %v2334
          %v2336 = vand.u32 %v1789, 4294901760
          %2337 = vmatpush1.msra.mxu0 %v2336
          %v2338 = vand.u32 %v1792, 4294901760
          %2339 = vmatprep.subr.mxu0 %v2338
          %v2340 = vand.u32 %v1791, 4294901760
          %2341 = vmatpush1.msra.mxu0 %v2340
          %v2342 = vand.u32 %v1794, 4294901760
          %2343 = vmatprep.subr.mxu0 %v2342
          %v2344 = vand.u32 %v1793, 4294901760
          %2345 = vmatpush1.msra.mxu0 %v2344
          %v2346 = vand.u32 %v1796, 4294901760
          %2347 = vmatprep.subr.mxu0 %v2346
          %v2348 = vand.u32 %v1795, 4294901760
          %2349 = vmatpush1.msra.mxu0 %v2348
          %v2350 = vand.u32 %v1798, 4294901760
          %2351 = vmatprep.subr.mxu0 %v2350
          %v2352 = vand.u32 %v1797, 4294901760
          %2353 = vmatpush1.msra.mxu0 %v2352
          %v2354 = vand.u32 %v1800, 4294901760
          %2355 = vmatprep.subr.mxu0 %v2354
          %v2356 = vand.u32 %v1799, 4294901760
          %2357 = vmatpush1.msra.mxu0 %v2356
          %v2358 = vand.u32 %v1802, 4294901760
          %2359 = vmatprep.subr.mxu0 %v2358
          %v2360 = vand.u32 %v1801, 4294901760
          %2361 = vmatpush1.msra.mxu0 %v2360
          %v2362 = vand.u32 %v1804, 4294901760
          %2363 = vmatprep.subr.mxu0 %v2362
          %v2364 = vand.u32 %v1803, 4294901760
          %2365 = vmatpush1.msra.mxu0 %v2364
          %v2366 = vand.u32 %v1806, 4294901760
          %2367 = vmatprep.subr.mxu0 %v2366
          %v2368 = vand.u32 %v1805, 4294901760
          %2369 = vmatpush1.msra.mxu0 %v2368
          %v2370 = vand.u32 %v1808, 4294901760
          %2371 = vmatprep.subr.mxu0 %v2370
          %v2372 = vand.u32 %v1807, 4294901760
          %2373 = vmatpush1.msra.mxu0 %v2372
          %v2374 = vand.u32 %v1810, 4294901760
          %2375 = vmatprep.subr.mxu0 %v2374
          %v2376 = vand.u32 %v1809, 4294901760
          %2377 = vmatpush1.msra.mxu0 %v2376
          %2378 = vmatprep.subr.mxu0 0.0
          %2379 = vmatpush1.msra.mxu0 0.0
          %2380 = vmatprep.subr.mxu0 0.0
          %2381 = vmatpush1.msra.mxu0 0.0
          %2382 = vmatprep.subr.mxu0 0.0
          %2383 = vmatpush1.msra.mxu0 0.0
          %2384 = vmatprep.subr.mxu0 0.0
          %2385 = vmatpush1.msra.mxu0 0.0
          %2386 = vmatprep.subr.mxu0 0.0
          %2387 = vmatpush1.msra.mxu0 0.0
          %2388 = vmatprep.subr.mxu0 0.0
          %2389 = vmatpush1.msra.mxu0 0.0
          %2390 = vmatprep.subr.mxu0 0.0
          %2391 = vmatpush1.msra.mxu0 0.0
          %2392 = vmatprep.subr.mxu0 0.0
          %2393 = vmatpush1.msra.mxu0 0.0
          %2394 = vmatprep.subr.mxu0 0.0
          %2395 = vmatpush1.msra.mxu0 0.0
          %2396 = vmatprep.subr.mxu0 0.0
          %2397 = vmatpush1.msra.mxu0 0.0
          %2398 = vmatprep.subr.mxu0 0.0
          %2399 = vmatpush1.msra.mxu0 0.0
          %2400 = vmatprep.subr.mxu0 0.0
          %2401 = vmatpush1.msra.mxu0 0.0
          %2402 = vmatprep.subr.mxu0 0.0
          %2403 = vmatpush1.msra.mxu0 0.0
          %2404 = vmatprep.subr.mxu0 0.0
          %2405 = vmatpush1.msra.mxu0 0.0
          %2406 = vmatprep.subr.mxu0 0.0
          %2407 = vmatpush1.msra.mxu0 0.0
          %2408 = vmatprep.subr.mxu0 0.0
          %2409 = vmatpush1.msra.mxu0 0.0
          %2410 = vmatprep.mubr.f32.mxu0 0.0
          %v2411 = vand.u32 %v1777, 4294901760
          %v2412 = vsub.f32 %v1777, %v2411
          %v2413 = vand.u32 %v2412, 4294901760
          %2414 = vmatmul.mubr.f32.gmra.mrb[0].mxu0 %v2413
          %v2415 = vpop.f32.mrb[0].mxu0
          %v2416 = vadd.f32 %v2302, %v2415
          %v2417 = vpop.f32.mrb[0].mxu0
          %v2418 = vadd.f32 %v2304, %v2417
          %2419 = vmatprep.mubr.f32.mxu0 0.0
          %v2420 = vand.u32 %v1778, 4294901760
          %v2421 = vsub.f32 %v1778, %v2420
          %v2422 = vand.u32 %v2421, 4294901760
          %2423 = vmatmul.mubr.f32.gmra.mrb[0].mxu0 %v2422
          %v2424 = vpop.f32.mrb[0].mxu0
          %v2425 = vadd.f32 %v2310, %v2424
          %v2426 = vpop.f32.mrb[0].mxu0
          %v2427 = vadd.f32 %v2312, %v2426
          %2428 = vdwg.mxu0
          %v2429 = vand.u32 %v1780, 4294901760
          %v2430 = vsub.f32 %v1780, %v2429
          %v2431 = vand.u32 %v2430, 4294901760
          %2432 = vmatprep.subr.mxu0 %v2431
          %v2433 = vand.u32 %v1779, 4294901760
          %v2434 = vsub.f32 %v1779, %v2433
          %v2435 = vand.u32 %v2434, 4294901760
          %2436 = vmatpush1.msra.mxu0 %v2435
          %v2437 = vand.u32 %v1782, 4294901760
          %v2438 = vsub.f32 %v1782, %v2437
          %v2439 = vand.u32 %v2438, 4294901760
          %2440 = vmatprep.subr.mxu0 %v2439
          %v2441 = vand.u32 %v1781, 4294901760
          %v2442 = vsub.f32 %v1781, %v2441
          %v2443 = vand.u32 %v2442, 4294901760
          %2444 = vmatpush1.msra.mxu0 %v2443
          %v2445 = vand.u32 %v1784, 4294901760
          %v2446 = vsub.f32 %v1784, %v2445
          %v2447 = vand.u32 %v2446, 4294901760
          %2448 = vmatprep.subr.mxu0 %v2447
          %v2449 = vand.u32 %v1783, 4294901760
          %v2450 = vsub.f32 %v1783, %v2449
          %v2451 = vand.u32 %v2450, 4294901760
          %2452 = vmatpush1.msra.mxu0 %v2451
          %v2453 = vand.u32 %v1786, 4294901760
          %v2454 = vsub.f32 %v1786, %v2453
          %v2455 = vand.u32 %v2454, 4294901760
          %2456 = vmatprep.subr.mxu0 %v2455
          %v2457 = vand.u32 %v1785, 4294901760
          %v2458 = vsub.f32 %v1785, %v2457
          %v2459 = vand.u32 %v2458, 4294901760
          %2460 = vmatpush1.msra.mxu0 %v2459
          %v2461 = vand.u32 %v1788, 4294901760
          %v2462 = vsub.f32 %v1788, %v2461
          %v2463 = vand.u32 %v2462, 4294901760
          %2464 = vmatprep.subr.mxu0 %v2463
          %v2465 = vand.u32 %v1787, 4294901760
          %v2466 = vsub.f32 %v1787, %v2465
          %v2467 = vand.u32 %v2466, 4294901760
          %2468 = vmatpush1.msra.mxu0 %v2467
          %v2469 = vand.u32 %v1790, 4294901760
          %v2470 = vsub.f32 %v1790, %v2469
          %v2471 = vand.u32 %v2470, 4294901760
          %2472 = vmatprep.subr.mxu0 %v2471
          %v2473 = vand.u32 %v1789, 4294901760
          %v2474 = vsub.f32 %v1789, %v2473
          %v2475 = vand.u32 %v2474, 4294901760
          %2476 = vmatpush1.msra.mxu0 %v2475
          %v2477 = vand.u32 %v1792, 4294901760
          %v2478 = vsub.f32 %v1792, %v2477
          %v2479 = vand.u32 %v2478, 4294901760
          %2480 = vmatprep.subr.mxu0 %v2479
          %v2481 = vand.u32 %v1791, 4294901760
          %v2482 = vsub.f32 %v1791, %v2481
          %v2483 = vand.u32 %v2482, 4294901760
          %2484 = vmatpush1.msra.mxu0 %v2483
          %v2485 = vand.u32 %v1794, 4294901760
          %v2486 = vsub.f32 %v1794, %v2485
          %v2487 = vand.u32 %v2486, 4294901760
          %2488 = vmatprep.subr.mxu0 %v2487
          %v2489 = vand.u32 %v1793, 4294901760
          %v2490 = vsub.f32 %v1793, %v2489
          %v2491 = vand.u32 %v2490, 4294901760
          %2492 = vmatpush1.msra.mxu0 %v2491
          %v2493 = vand.u32 %v1796, 4294901760
          %v2494 = vsub.f32 %v1796, %v2493
          %v2495 = vand.u32 %v2494, 4294901760
          %2496 = vmatprep.subr.mxu0 %v2495
          %v2497 = vand.u32 %v1795, 4294901760
          %v2498 = vsub.f32 %v1795, %v2497
          %v2499 = vand.u32 %v2498, 4294901760
          %2500 = vmatpush1.msra.mxu0 %v2499
          %v2501 = vand.u32 %v1798, 4294901760
          %v2502 = vsub.f32 %v1798, %v2501
          %v2503 = vand.u32 %v2502, 4294901760
          %2504 = vmatprep.subr.mxu0 %v2503
          %v2505 = vand.u32 %v1797, 4294901760
          %v2506 = vsub.f32 %v1797, %v2505
          %v2507 = vand.u32 %v2506, 4294901760
          %2508 = vmatpush1.msra.mxu0 %v2507
          %v2509 = vand.u32 %v1800, 4294901760
          %v2510 = vsub.f32 %v1800, %v2509
          %v2511 = vand.u32 %v2510, 4294901760
          %2512 = vmatprep.subr.mxu0 %v2511
          %v2513 = vand.u32 %v1799, 4294901760
          %v2514 = vsub.f32 %v1799, %v2513
          %v2515 = vand.u32 %v2514, 4294901760
          %2516 = vmatpush1.msra.mxu0 %v2515
          %v2517 = vand.u32 %v1802, 4294901760
          %v2518 = vsub.f32 %v1802, %v2517
          %v2519 = vand.u32 %v2518, 4294901760
          %2520 = vmatprep.subr.mxu0 %v2519
          %v2521 = vand.u32 %v1801, 4294901760
          %v2522 = vsub.f32 %v1801, %v2521
          %v2523 = vand.u32 %v2522, 4294901760
          %2524 = vmatpush1.msra.mxu0 %v2523
          %v2525 = vand.u32 %v1804, 4294901760
          %v2526 = vsub.f32 %v1804, %v2525
          %v2527 = vand.u32 %v2526, 4294901760
          %2528 = vmatprep.subr.mxu0 %v2527
          %v2529 = vand.u32 %v1803, 4294901760
          %v2530 = vsub.f32 %v1803, %v2529
          %v2531 = vand.u32 %v2530, 4294901760
          %2532 = vmatpush1.msra.mxu0 %v2531
          %v2533 = vand.u32 %v1806, 4294901760
          %v2534 = vsub.f32 %v1806, %v2533
          %v2535 = vand.u32 %v2534, 4294901760
          %2536 = vmatprep.subr.mxu0 %v2535
          %v2537 = vand.u32 %v1805, 4294901760
          %v2538 = vsub.f32 %v1805, %v2537
          %v2539 = vand.u32 %v2538, 4294901760
          %2540 = vmatpush1.msra.mxu0 %v2539
          %v2541 = vand.u32 %v1808, 4294901760
          %v2542 = vsub.f32 %v1808, %v2541
          %v2543 = vand.u32 %v2542, 4294901760
          %2544 = vmatprep.subr.mxu0 %v2543
          %v2545 = vand.u32 %v1807, 4294901760
          %v2546 = vsub.f32 %v1807, %v2545
          %v2547 = vand.u32 %v2546, 4294901760
          %2548 = vmatpush1.msra.mxu0 %v2547
          %v2549 = vand.u32 %v1810, 4294901760
          %v2550 = vsub.f32 %v1810, %v2549
          %v2551 = vand.u32 %v2550, 4294901760
          %2552 = vmatprep.subr.mxu0 %v2551
          %v2553 = vand.u32 %v1809, 4294901760
          %v2554 = vsub.f32 %v1809, %v2553
          %v2555 = vand.u32 %v2554, 4294901760
          %2556 = vmatpush1.msra.mxu0 %v2555
          %2557 = vmatprep.subr.mxu0 0.0
          %2558 = vmatpush1.msra.mxu0 0.0
          %2559 = vmatprep.subr.mxu0 0.0
          %2560 = vmatpush1.msra.mxu0 0.0
          %2561 = vmatprep.subr.mxu0 0.0
          %2562 = vmatpush1.msra.mxu0 0.0
          %2563 = vmatprep.subr.mxu0 0.0
          %2564 = vmatpush1.msra.mxu0 0.0
          %2565 = vmatprep.subr.mxu0 0.0
          %2566 = vmatpush1.msra.mxu0 0.0
          %2567 = vmatprep.subr.mxu0 0.0
          %2568 = vmatpush1.msra.mxu0 0.0
          %2569 = vmatprep.subr.mxu0 0.0
          %2570 = vmatpush1.msra.mxu0 0.0
          %2571 = vmatprep.subr.mxu0 0.0
          %2572 = vmatpush1.msra.mxu0 0.0
          %2573 = vmatprep.subr.mxu0 0.0
          %2574 = vmatpush1.msra.mxu0 0.0
          %2575 = vmatprep.subr.mxu0 0.0
          %2576 = vmatpush1.msra.mxu0 0.0
          %2577 = vmatprep.subr.mxu0 0.0
          %2578 = vmatpush1.msra.mxu0 0.0
          %2579 = vmatprep.subr.mxu0 0.0
          %2580 = vmatpush1.msra.mxu0 0.0
          %2581 = vmatprep.subr.mxu0 0.0
          %2582 = vmatpush1.msra.mxu0 0.0
          %2583 = vmatprep.subr.mxu0 0.0
          %2584 = vmatpush1.msra.mxu0 0.0
          %2585 = vmatprep.subr.mxu0 0.0
          %2586 = vmatpush1.msra.mxu0 0.0
          %2587 = vmatprep.subr.mxu0 0.0
          %2588 = vmatpush1.msra.mxu0 0.0
          %2589 = vmatprep.mubr.f32.mxu0 0.0
          %v2590 = vand.u32 %v1777, 4294901760
          %2591 = vmatmul.mubr.f32.gmra.mrb[0].mxu0 %v2590
          %v2592 = vpop.f32.mrb[0].mxu0
          %v2593 = vadd.f32 %v2416, %v2592
          %v2594 = vpop.f32.mrb[0].mxu0
          %v2595 = vadd.f32 %v2418, %v2594
          %2596 = vmatprep.mubr.f32.mxu0 0.0
          %v2597 = vand.u32 %v1778, 4294901760
          %2598 = vmatmul.mubr.f32.gmra.mrb[0].mxu0 %v2597
          %v2599 = vpop.f32.mrb[0].mxu0
          %v2600 = vadd.f32 %v2425, %v2599
          %v2601 = vpop.f32.mrb[0].mxu0
          %v2602 = vadd.f32 %v2427, %v2601
          %2603 = vdwg.mxu0
          %v2604 = vand.u32 %v1780, 4294901760
          %2605 = vmatprep.subr.mxu0 %v2604
          %v2606 = vand.u32 %v1779, 4294901760
          %2607 = vmatpush1.msra.mxu0 %v2606
          %v2608 = vand.u32 %v1782, 4294901760
          %2609 = vmatprep.subr.mxu0 %v2608
          %v2610 = vand.u32 %v1781, 4294901760
          %2611 = vmatpush1.msra.mxu0 %v2610
          %v2612 = vand.u32 %v1784, 4294901760
          %2613 = vmatprep.subr.mxu0 %v2612
          %v2614 = vand.u32 %v1783, 4294901760
          %2615 = vmatpush1.msra.mxu0 %v2614
          %v2616 = vand.u32 %v1786, 4294901760
          %2617 = vmatprep.subr.mxu0 %v2616
          %v2618 = vand.u32 %v1785, 4294901760
          %2619 = vmatpush1.msra.mxu0 %v2618
          %v2620 = vand.u32 %v1788, 4294901760
          %2621 = vmatprep.subr.mxu0 %v2620
          %v2622 = vand.u32 %v1787, 4294901760
          %2623 = vmatpush1.msra.mxu0 %v2622
          %v2624 = vand.u32 %v1790, 4294901760
          %2625 = vmatprep.subr.mxu0 %v2624
          %v2626 = vand.u32 %v1789, 4294901760
          %2627 = vmatpush1.msra.mxu0 %v2626
          %v2628 = vand.u32 %v1792, 4294901760
          %2629 = vmatprep.subr.mxu0 %v2628
          %v2630 = vand.u32 %v1791, 4294901760
          %2631 = vmatpush1.msra.mxu0 %v2630
          %v2632 = vand.u32 %v1794, 4294901760
          %2633 = vmatprep.subr.mxu0 %v2632
          %v2634 = vand.u32 %v1793, 4294901760
          %2635 = vmatpush1.msra.mxu0 %v2634
          %v2636 = vand.u32 %v1796, 4294901760
          %2637 = vmatprep.subr.mxu0 %v2636
          %v2638 = vand.u32 %v1795, 4294901760
          %2639 = vmatpush1.msra.mxu0 %v2638
          %v2640 = vand.u32 %v1798, 4294901760
          %2641 = vmatprep.subr.mxu0 %v2640
          %v2642 = vand.u32 %v1797, 4294901760
          %2643 = vmatpush1.msra.mxu0 %v2642
          %v2644 = vand.u32 %v1800, 4294901760
          %2645 = vmatprep.subr.mxu0 %v2644
          %v2646 = vand.u32 %v1799, 4294901760
          %2647 = vmatpush1.msra.mxu0 %v2646
          %v2648 = vand.u32 %v1802, 4294901760
          %2649 = vmatprep.subr.mxu0 %v2648
          %v2650 = vand.u32 %v1801, 4294901760
          %2651 = vmatpush1.msra.mxu0 %v2650
          %v2652 = vand.u32 %v1804, 4294901760
          %2653 = vmatprep.subr.mxu0 %v2652
          %v2654 = vand.u32 %v1803, 4294901760
          %2655 = vmatpush1.msra.mxu0 %v2654
          %v2656 = vand.u32 %v1806, 4294901760
          %2657 = vmatprep.subr.mxu0 %v2656
          %v2658 = vand.u32 %v1805, 4294901760
          %2659 = vmatpush1.msra.mxu0 %v2658
          %v2660 = vand.u32 %v1808, 4294901760
          %2661 = vmatprep.subr.mxu0 %v2660
          %v2662 = vand.u32 %v1807, 4294901760
          %2663 = vmatpush1.msra.mxu0 %v2662
          %v2664 = vand.u32 %v1810, 4294901760
          %2665 = vmatprep.subr.mxu0 %v2664
          %v2666 = vand.u32 %v1809, 4294901760
          %2667 = vmatpush1.msra.mxu0 %v2666
          %2668 = vmatprep.subr.mxu0 0.0
          %2669 = vmatpush1.msra.mxu0 0.0
          %2670 = vmatprep.subr.mxu0 0.0
          %2671 = vmatpush1.msra.mxu0 0.0
          %2672 = vmatprep.subr.mxu0 0.0
          %2673 = vmatpush1.msra.mxu0 0.0
          %2674 = vmatprep.subr.mxu0 0.0
          %2675 = vmatpush1.msra.mxu0 0.0
          %2676 = vmatprep.subr.mxu0 0.0
          %2677 = vmatpush1.msra.mxu0 0.0
          %2678 = vmatprep.subr.mxu0 0.0
          %2679 = vmatpush1.msra.mxu0 0.0
          %2680 = vmatprep.subr.mxu0 0.0
          %2681 = vmatpush1.msra.mxu0 0.0
          %2682 = vmatprep.subr.mxu0 0.0
          %2683 = vmatpush1.msra.mxu0 0.0
          %2684 = vmatprep.subr.mxu0 0.0
          %2685 = vmatpush1.msra.mxu0 0.0
          %2686 = vmatprep.subr.mxu0 0.0
          %2687 = vmatpush1.msra.mxu0 0.0
          %2688 = vmatprep.subr.mxu0 0.0
          %2689 = vmatpush1.msra.mxu0 0.0
          %2690 = vmatprep.subr.mxu0 0.0
          %2691 = vmatpush1.msra.mxu0 0.0
          %2692 = vmatprep.subr.mxu0 0.0
          %2693 = vmatpush1.msra.mxu0 0.0
          %2694 = vmatprep.subr.mxu0 0.0
          %2695 = vmatpush1.msra.mxu0 0.0
          %2696 = vmatprep.subr.mxu0 0.0
          %2697 = vmatpush1.msra.mxu0 0.0
          %2698 = vmatprep.subr.mxu0 0.0
          %2699 = vmatpush1.msra.mxu0 0.0
          %2700 = vmatprep.mubr.f32.mxu0 0.0
          %v2701 = vand.u32 %v1777, 4294901760
          %2702 = vmatmul.mubr.f32.gmra.mrb[0].mxu0 %v2701
          %v2703 = vpop.f32.mrb[0].mxu0
          %v2704 = vadd.f32 %v2593, %v2703
          %v2705 = vpop.f32.mrb[0].mxu0
          %v2706 = vadd.f32 %v2595, %v2705
          %2707 = vmatprep.mubr.f32.mxu0 0.0
          %v2708 = vand.u32 %v1778, 4294901760
          %2709 = vmatmul.mubr.f32.gmra.mrb[0].mxu0 %v2708
          %v2710 = vpop.f32.mrb[0].mxu0
          %v2711 = vadd.f32 %v2600, %v2710
          %v2712 = vpop.f32.mrb[0].mxu0
          %v2713 = vadd.f32 %v2602, %v2712
          %2714 = vdwg.mxu0
          %v2715 = vand.u32 %v1746, 4294901760
          %2716 = vmatprep.subr.mxu0 %v2715
          %v2717 = vand.u32 %v1745, 4294901760
          %2718 = vmatpush1.msra.mxu0 %v2717
          %v2719 = vand.u32 %v1748, 4294901760
          %2720 = vmatprep.subr.mxu0 %v2719
          %v2721 = vand.u32 %v1747, 4294901760
          %2722 = vmatpush1.msra.mxu0 %v2721
          %v2723 = vand.u32 %v1750, 4294901760
          %2724 = vmatprep.subr.mxu0 %v2723
          %v2725 = vand.u32 %v1749, 4294901760
          %2726 = vmatpush1.msra.mxu0 %v2725
          %v2727 = vand.u32 %v1752, 4294901760
          %2728 = vmatprep.subr.mxu0 %v2727
          %v2729 = vand.u32 %v1751, 4294901760
          %2730 = vmatpush1.msra.mxu0 %v2729
          %v2731 = vand.u32 %v1754, 4294901760
          %2732 = vmatprep.subr.mxu0 %v2731
          %v2733 = vand.u32 %v1753, 4294901760
          %2734 = vmatpush1.msra.mxu0 %v2733
          %v2735 = vand.u32 %v1756, 4294901760
          %2736 = vmatprep.subr.mxu0 %v2735
          %v2737 = vand.u32 %v1755, 4294901760
          %2738 = vmatpush1.msra.mxu0 %v2737
          %v2739 = vand.u32 %v1758, 4294901760
          %2740 = vmatprep.subr.mxu0 %v2739
          %v2741 = vand.u32 %v1757, 4294901760
          %2742 = vmatpush1.msra.mxu0 %v2741
          %v2743 = vand.u32 %v1760, 4294901760
          %2744 = vmatprep.subr.mxu0 %v2743
          %v2745 = vand.u32 %v1759, 4294901760
          %2746 = vmatpush1.msra.mxu0 %v2745
          %v2747 = vand.u32 %v1762, 4294901760
          %2748 = vmatprep.subr.mxu0 %v2747
          %v2749 = vand.u32 %v1761, 4294901760
          %2750 = vmatpush1.msra.mxu0 %v2749
          %v2751 = vand.u32 %v1764, 4294901760
          %2752 = vmatprep.subr.mxu0 %v2751
          %v2753 = vand.u32 %v1763, 4294901760
          %2754 = vmatpush1.msra.mxu0 %v2753
          %v2755 = vand.u32 %v1766, 4294901760
          %2756 = vmatprep.subr.mxu0 %v2755
          %v2757 = vand.u32 %v1765, 4294901760
          %2758 = vmatpush1.msra.mxu0 %v2757
          %v2759 = vand.u32 %v1768, 4294901760
          %2760 = vmatprep.subr.mxu0 %v2759
          %v2761 = vand.u32 %v1767, 4294901760
          %2762 = vmatpush1.msra.mxu0 %v2761
          %v2763 = vand.u32 %v1770, 4294901760
          %2764 = vmatprep.subr.mxu0 %v2763
          %v2765 = vand.u32 %v1769, 4294901760
          %2766 = vmatpush1.msra.mxu0 %v2765
          %v2767 = vand.u32 %v1772, 4294901760
          %2768 = vmatprep.subr.mxu0 %v2767
          %v2769 = vand.u32 %v1771, 4294901760
          %2770 = vmatpush1.msra.mxu0 %v2769
          %v2771 = vand.u32 %v1774, 4294901760
          %2772 = vmatprep.subr.mxu0 %v2771
          %v2773 = vand.u32 %v1773, 4294901760
          %2774 = vmatpush1.msra.mxu0 %v2773
          %v2775 = vand.u32 %v1776, 4294901760
          %2776 = vmatprep.subr.mxu0 %v2775
          %v2777 = vand.u32 %v1775, 4294901760
          %2778 = vmatpush1.msra.mxu0 %v2777
          %2779 = vmatprep.subr.mxu0 0.0
          %2780 = vmatpush1.msra.mxu0 0.0
          %2781 = vmatprep.subr.mxu0 0.0
          %2782 = vmatpush1.msra.mxu0 0.0
          %2783 = vmatprep.subr.mxu0 0.0
          %2784 = vmatpush1.msra.mxu0 0.0
          %2785 = vmatprep.subr.mxu0 0.0
          %2786 = vmatpush1.msra.mxu0 0.0
          %2787 = vmatprep.subr.mxu0 0.0
          %2788 = vmatpush1.msra.mxu0 0.0
          %2789 = vmatprep.subr.mxu0 0.0
          %2790 = vmatpush1.msra.mxu0 0.0
          %2791 = vmatprep.subr.mxu0 0.0
          %2792 = vmatpush1.msra.mxu0 0.0
          %2793 = vmatprep.subr.mxu0 0.0
          %2794 = vmatpush1.msra.mxu0 0.0
          %2795 = vmatprep.subr.mxu0 0.0
          %2796 = vmatpush1.msra.mxu0 0.0
          %2797 = vmatprep.subr.mxu0 0.0
          %2798 = vmatpush1.msra.mxu0 0.0
          %2799 = vmatprep.subr.mxu0 0.0
          %2800 = vmatpush1.msra.mxu0 0.0
          %2801 = vmatprep.subr.mxu0 0.0
          %2802 = vmatpush1.msra.mxu0 0.0
          %2803 = vmatprep.subr.mxu0 0.0
          %2804 = vmatpush1.msra.mxu0 0.0
          %2805 = vmatprep.subr.mxu0 0.0
          %2806 = vmatpush1.msra.mxu0 0.0
          %2807 = vmatprep.subr.mxu0 0.0
          %2808 = vmatpush1.msra.mxu0 0.0
          %2809 = vmatprep.subr.mxu0 0.0
          %2810 = vmatpush1.msra.mxu0 0.0
          %2811 = vmatprep.mubr.f32.mxu0 0.0
          %v2812 = vand.u32 %v1743, 4294901760
          %v2813 = vsub.f32 %v1743, %v2812
          %v2814 = vand.u32 %v2813, 4294901760
          %v2815 = vsub.f32 %v2813, %v2814
          %v2816 = vand.u32 %v2815, 4294901760
          %2817 = vmatmul.mubr.f32.gmra.mrb[0].mxu0 %v2816
          %v2818 = vpop.f32.mrb[0].mxu0
          %v2819 = vadd.f32 %v2704, %v2818
          %v2820 = vpop.f32.mrb[0].mxu0
          %v2821 = vadd.f32 %v2706, %v2820
          %2822 = vmatprep.mubr.f32.mxu0 0.0
          %v2823 = vand.u32 %v1744, 4294901760
          %v2824 = vsub.f32 %v1744, %v2823
          %v2825 = vand.u32 %v2824, 4294901760
          %v2826 = vsub.f32 %v2824, %v2825
          %v2827 = vand.u32 %v2826, 4294901760
          %2828 = vmatmul.mubr.f32.gmra.mrb[0].mxu0 %v2827
          %v2829 = vpop.f32.mrb[0].mxu0
          %v2830 = vadd.f32 %v2711, %v2829
          %v2831 = vpop.f32.mrb[0].mxu0
          %v2832 = vadd.f32 %v2713, %v2831
          %2833 = vdwg.mxu0
          %v2834 = vand.u32 %v1746, 4294901760
          %v2835 = vsub.f32 %v1746, %v2834
          %v2836 = vand.u32 %v2835, 4294901760
          %v2837 = vsub.f32 %v2835, %v2836
          %v2838 = vand.u32 %v2837, 4294901760
          %2839 = vmatprep.subr.mxu0 %v2838
          %v2840 = vand.u32 %v1745, 4294901760
          %v2841 = vsub.f32 %v1745, %v2840
          %v2842 = vand.u32 %v2841, 4294901760
          %v2843 = vsub.f32 %v2841, %v2842
          %v2844 = vand.u32 %v2843, 4294901760
          %2845 = vmatpush1.msra.mxu0 %v2844
          %v2846 = vand.u32 %v1748, 4294901760
          %v2847 = vsub.f32 %v1748, %v2846
          %v2848 = vand.u32 %v2847, 4294901760
          %v2849 = vsub.f32 %v2847, %v2848
          %v2850 = vand.u32 %v2849, 4294901760
          %2851 = vmatprep.subr.mxu0 %v2850
          %v2852 = vand.u32 %v1747, 4294901760
          %v2853 = vsub.f32 %v1747, %v2852
          %v2854 = vand.u32 %v2853, 4294901760
          %v2855 = vsub.f32 %v2853, %v2854
          %v2856 = vand.u32 %v2855, 4294901760
          %2857 = vmatpush1.msra.mxu0 %v2856
          %v2858 = vand.u32 %v1750, 4294901760
          %v2859 = vsub.f32 %v1750, %v2858
          %v2860 = vand.u32 %v2859, 4294901760
          %v2861 = vsub.f32 %v2859, %v2860
          %v2862 = vand.u32 %v2861, 4294901760
          %2863 = vmatprep.subr.mxu0 %v2862
          %v2864 = vand.u32 %v1749, 4294901760
          %v2865 = vsub.f32 %v1749, %v2864
          %v2866 = vand.u32 %v2865, 4294901760
          %v2867 = vsub.f32 %v2865, %v2866
          %v2868 = vand.u32 %v2867, 4294901760
          %2869 = vmatpush1.msra.mxu0 %v2868
          %v2870 = vand.u32 %v1752, 4294901760
          %v2871 = vsub.f32 %v1752, %v2870
          %v2872 = vand.u32 %v2871, 4294901760
          %v2873 = vsub.f32 %v2871, %v2872
          %v2874 = vand.u32 %v2873, 4294901760
          %2875 = vmatprep.subr.mxu0 %v2874
          %v2876 = vand.u32 %v1751, 4294901760
          %v2877 = vsub.f32 %v1751, %v2876
          %v2878 = vand.u32 %v2877, 4294901760
          %v2879 = vsub.f32 %v2877, %v2878
          %v2880 = vand.u32 %v2879, 4294901760
          %2881 = vmatpush1.msra.mxu0 %v2880
          %v2882 = vand.u32 %v1754, 4294901760
          %v2883 = vsub.f32 %v1754, %v2882
          %v2884 = vand.u32 %v2883, 4294901760
          %v2885 = vsub.f32 %v2883, %v2884
          %v2886 = vand.u32 %v2885, 4294901760
          %2887 = vmatprep.subr.mxu0 %v2886
          %v2888 = vand.u32 %v1753, 4294901760
          %v2889 = vsub.f32 %v1753, %v2888
          %v2890 = vand.u32 %v2889, 4294901760
          %v2891 = vsub.f32 %v2889, %v2890
          %v2892 = vand.u32 %v2891, 4294901760
          %2893 = vmatpush1.msra.mxu0 %v2892
          %v2894 = vand.u32 %v1756, 4294901760
          %v2895 = vsub.f32 %v1756, %v2894
          %v2896 = vand.u32 %v2895, 4294901760
          %v2897 = vsub.f32 %v2895, %v2896
          %v2898 = vand.u32 %v2897, 4294901760
          %2899 = vmatprep.subr.mxu0 %v2898
          %v2900 = vand.u32 %v1755, 4294901760
          %v2901 = vsub.f32 %v1755, %v2900
          %v2902 = vand.u32 %v2901, 4294901760
          %v2903 = vsub.f32 %v2901, %v2902
          %v2904 = vand.u32 %v2903, 4294901760
          %2905 = vmatpush1.msra.mxu0 %v2904
          %v2906 = vand.u32 %v1758, 4294901760
          %v2907 = vsub.f32 %v1758, %v2906
          %v2908 = vand.u32 %v2907, 4294901760
          %v2909 = vsub.f32 %v2907, %v2908
          %v2910 = vand.u32 %v2909, 4294901760
          %2911 = vmatprep.subr.mxu0 %v2910
          %v2912 = vand.u32 %v1757, 4294901760
          %v2913 = vsub.f32 %v1757, %v2912
          %v2914 = vand.u32 %v2913, 4294901760
          %v2915 = vsub.f32 %v2913, %v2914
          %v2916 = vand.u32 %v2915, 4294901760
          %2917 = vmatpush1.msra.mxu0 %v2916
          %v2918 = vand.u32 %v1760, 4294901760
          %v2919 = vsub.f32 %v1760, %v2918
          %v2920 = vand.u32 %v2919, 4294901760
          %v2921 = vsub.f32 %v2919, %v2920
          %v2922 = vand.u32 %v2921, 4294901760
          %2923 = vmatprep.subr.mxu0 %v2922
          %v2924 = vand.u32 %v1759, 4294901760
          %v2925 = vsub.f32 %v1759, %v2924
          %v2926 = vand.u32 %v2925, 4294901760
          %v2927 = vsub.f32 %v2925, %v2926
          %v2928 = vand.u32 %v2927, 4294901760
          %2929 = vmatpush1.msra.mxu0 %v2928
          %v2930 = vand.u32 %v1762, 4294901760
          %v2931 = vsub.f32 %v1762, %v2930
          %v2932 = vand.u32 %v2931, 4294901760
          %v2933 = vsub.f32 %v2931, %v2932
          %v2934 = vand.u32 %v2933, 4294901760
          %2935 = vmatprep.subr.mxu0 %v2934
          %v2936 = vand.u32 %v1761, 4294901760
          %v2937 = vsub.f32 %v1761, %v2936
          %v2938 = vand.u32 %v2937, 4294901760
          %v2939 = vsub.f32 %v2937, %v2938
          %v2940 = vand.u32 %v2939, 4294901760
          %2941 = vmatpush1.msra.mxu0 %v2940
          %v2942 = vand.u32 %v1764, 4294901760
          %v2943 = vsub.f32 %v1764, %v2942
          %v2944 = vand.u32 %v2943, 4294901760
          %v2945 = vsub.f32 %v2943, %v2944
          %v2946 = vand.u32 %v2945, 4294901760
          %2947 = vmatprep.subr.mxu0 %v2946
          %v2948 = vand.u32 %v1763, 4294901760
          %v2949 = vsub.f32 %v1763, %v2948
          %v2950 = vand.u32 %v2949, 4294901760
          %v2951 = vsub.f32 %v2949, %v2950
          %v2952 = vand.u32 %v2951, 4294901760
          %2953 = vmatpush1.msra.mxu0 %v2952
          %v2954 = vand.u32 %v1766, 4294901760
          %v2955 = vsub.f32 %v1766, %v2954
          %v2956 = vand.u32 %v2955, 4294901760
          %v2957 = vsub.f32 %v2955, %v2956
          %v2958 = vand.u32 %v2957, 4294901760
          %2959 = vmatprep.subr.mxu0 %v2958
          %v2960 = vand.u32 %v1765, 4294901760
          %v2961 = vsub.f32 %v1765, %v2960
          %v2962 = vand.u32 %v2961, 4294901760
          %v2963 = vsub.f32 %v2961, %v2962
          %v2964 = vand.u32 %v2963, 4294901760
          %2965 = vmatpush1.msra.mxu0 %v2964
          %v2966 = vand.u32 %v1768, 4294901760
          %v2967 = vsub.f32 %v1768, %v2966
          %v2968 = vand.u32 %v2967, 4294901760
          %v2969 = vsub.f32 %v2967, %v2968
          %v2970 = vand.u32 %v2969, 4294901760
          %2971 = vmatprep.subr.mxu0 %v2970
          %v2972 = vand.u32 %v1767, 4294901760
          %v2973 = vsub.f32 %v1767, %v2972
          %v2974 = vand.u32 %v2973, 4294901760
          %v2975 = vsub.f32 %v2973, %v2974
          %v2976 = vand.u32 %v2975, 4294901760
          %2977 = vmatpush1.msra.mxu0 %v2976
          %v2978 = vand.u32 %v1770, 4294901760
          %v2979 = vsub.f32 %v1770, %v2978
          %v2980 = vand.u32 %v2979, 4294901760
          %v2981 = vsub.f32 %v2979, %v2980
          %v2982 = vand.u32 %v2981, 4294901760
          %2983 = vmatprep.subr.mxu0 %v2982
          %v2984 = vand.u32 %v1769, 4294901760
          %v2985 = vsub.f32 %v1769, %v2984
          %v2986 = vand.u32 %v2985, 4294901760
          %v2987 = vsub.f32 %v2985, %v2986
          %v2988 = vand.u32 %v2987, 4294901760
          %2989 = vmatpush1.msra.mxu0 %v2988
          %v2990 = vand.u32 %v1772, 4294901760
          %v2991 = vsub.f32 %v1772, %v2990
          %v2992 = vand.u32 %v2991, 4294901760
          %v2993 = vsub.f32 %v2991, %v2992
          %v2994 = vand.u32 %v2993, 4294901760
          %2995 = vmatprep.subr.mxu0 %v2994
          %v2996 = vand.u32 %v1771, 4294901760
          %v2997 = vsub.f32 %v1771, %v2996
          %v2998 = vand.u32 %v2997, 4294901760
          %v2999 = vsub.f32 %v2997, %v2998
          %v3000 = vand.u32 %v2999, 4294901760
          %3001 = vmatpush1.msra.mxu0 %v3000
          %v3002 = vand.u32 %v1774, 4294901760
          %v3003 = vsub.f32 %v1774, %v3002
          %v3004 = vand.u32 %v3003, 4294901760
          %v3005 = vsub.f32 %v3003, %v3004
          %v3006 = vand.u32 %v3005, 4294901760
          %3007 = vmatprep.subr.mxu0 %v3006
          %v3008 = vand.u32 %v1773, 4294901760
          %v3009 = vsub.f32 %v1773, %v3008
          %v3010 = vand.u32 %v3009, 4294901760
          %v3011 = vsub.f32 %v3009, %v3010
          %v3012 = vand.u32 %v3011, 4294901760
          %3013 = vmatpush1.msra.mxu0 %v3012
          %v3014 = vand.u32 %v1776, 4294901760
          %v3015 = vsub.f32 %v1776, %v3014
          %v3016 = vand.u32 %v3015, 4294901760
          %v3017 = vsub.f32 %v3015, %v3016
          %v3018 = vand.u32 %v3017, 4294901760
          %3019 = vmatprep.subr.mxu0 %v3018
          %v3020 = vand.u32 %v1775, 4294901760
          %v3021 = vsub.f32 %v1775, %v3020
          %v3022 = vand.u32 %v3021, 4294901760
          %v3023 = vsub.f32 %v3021, %v3022
          %v3024 = vand.u32 %v3023, 4294901760
          %3025 = vmatpush1.msra.mxu0 %v3024
          %3026 = vmatprep.subr.mxu0 0.0
          %3027 = vmatpush1.msra.mxu0 0.0
          %3028 = vmatprep.subr.mxu0 0.0
          %3029 = vmatpush1.msra.mxu0 0.0
          %3030 = vmatprep.subr.mxu0 0.0
          %3031 = vmatpush1.msra.mxu0 0.0
          %3032 = vmatprep.subr.mxu0 0.0
          %3033 = vmatpush1.msra.mxu0 0.0
          %3034 = vmatprep.subr.mxu0 0.0
          %3035 = vmatpush1.msra.mxu0 0.0
          %3036 = vmatprep.subr.mxu0 0.0
          %3037 = vmatpush1.msra.mxu0 0.0
          %3038 = vmatprep.subr.mxu0 0.0
          %3039 = vmatpush1.msra.mxu0 0.0
          %3040 = vmatprep.subr.mxu0 0.0
          %3041 = vmatpush1.msra.mxu0 0.0
          %3042 = vmatprep.subr.mxu0 0.0
          %3043 = vmatpush1.msra.mxu0 0.0
          %3044 = vmatprep.subr.mxu0 0.0
          %3045 = vmatpush1.msra.mxu0 0.0
          %3046 = vmatprep.subr.mxu0 0.0
          %3047 = vmatpush1.msra.mxu0 0.0
          %3048 = vmatprep.subr.mxu0 0.0
          %3049 = vmatpush1.msra.mxu0 0.0
          %3050 = vmatprep.subr.mxu0 0.0
          %3051 = vmatpush1.msra.mxu0 0.0
          %3052 = vmatprep.subr.mxu0 0.0
          %3053 = vmatpush1.msra.mxu0 0.0
          %3054 = vmatprep.subr.mxu0 0.0
          %3055 = vmatpush1.msra.mxu0 0.0
          %3056 = vmatprep.subr.mxu0 0.0
          %3057 = vmatpush1.msra.mxu0 0.0
          %3058 = vmatprep.mubr.f32.mxu0 0.0
          %v3059 = vand.u32 %v1743, 4294901760
          %3060 = vmatmul.mubr.f32.gmra.mrb[0].mxu0 %v3059
          %v3061 = vpop.f32.mrb[0].mxu0
          %v3062 = vadd.f32 %v2819, %v3061
          %v3063 = vpop.f32.mrb[0].mxu0
          %v3064 = vadd.f32 %v2821, %v3063
          %3065 = vmatprep.mubr.f32.mxu0 0.0
          %v3066 = vand.u32 %v1744, 4294901760
          %3067 = vmatmul.mubr.f32.gmra.mrb[0].mxu0 %v3066
          %v3068 = vpop.f32.mrb[0].mxu0
          %v3069 = vadd.f32 %v2830, %v3068
          %v3070 = vpop.f32.mrb[0].mxu0
          %v3071 = vadd.f32 %v2832, %v3070
          %3072 = vdwg.mxu0
          %v3073 = vand.u32 %v1746, 4294901760
          %v3074 = vsub.f32 %v1746, %v3073
          %3075 = vmatprep.subr.mxu0 %v3074
          %v3076 = vand.u32 %v1745, 4294901760
          %v3077 = vsub.f32 %v1745, %v3076
          %3078 = vmatpush1.msra.mxu0 %v3077
          %v3079 = vand.u32 %v1748, 4294901760
          %v3080 = vsub.f32 %v1748, %v3079
          %3081 = vmatprep.subr.mxu0 %v3080
          %v3082 = vand.u32 %v1747, 4294901760
          %v3083 = vsub.f32 %v1747, %v3082
          %3084 = vmatpush1.msra.mxu0 %v3083
          %v3085 = vand.u32 %v1750, 4294901760
          %v3086 = vsub.f32 %v1750, %v3085
          %3087 = vmatprep.subr.mxu0 %v3086
          %v3088 = vand.u32 %v1749, 4294901760
          %v3089 = vsub.f32 %v1749, %v3088
          %3090 = vmatpush1.msra.mxu0 %v3089
          %v3091 = vand.u32 %v1752, 4294901760
          %v3092 = vsub.f32 %v1752, %v3091
          %3093 = vmatprep.subr.mxu0 %v3092
          %v3094 = vand.u32 %v1751, 4294901760
          %v3095 = vsub.f32 %v1751, %v3094
          %3096 = vmatpush1.msra.mxu0 %v3095
          %v3097 = vand.u32 %v1754, 4294901760
          %v3098 = vsub.f32 %v1754, %v3097
          %3099 = vmatprep.subr.mxu0 %v3098
          %v3100 = vand.u32 %v1753, 4294901760
          %v3101 = vsub.f32 %v1753, %v3100
          %3102 = vmatpush1.msra.mxu0 %v3101
          %v3103 = vand.u32 %v1756, 4294901760
          %v3104 = vsub.f32 %v1756, %v3103
          %3105 = vmatprep.subr.mxu0 %v3104
          %v3106 = vand.u32 %v1755, 4294901760
          %v3107 = vsub.f32 %v1755, %v3106
          %3108 = vmatpush1.msra.mxu0 %v3107
          %v3109 = vand.u32 %v1758, 4294901760
          %v3110 = vsub.f32 %v1758, %v3109
          %3111 = vmatprep.subr.mxu0 %v3110
          %v3112 = vand.u32 %v1757, 4294901760
          %v3113 = vsub.f32 %v1757, %v3112
          %3114 = vmatpush1.msra.mxu0 %v3113
          %v3115 = vand.u32 %v1760, 4294901760
          %v3116 = vsub.f32 %v1760, %v3115
          %3117 = vmatprep.subr.mxu0 %v3116
          %v3118 = vand.u32 %v1759, 4294901760
          %v3119 = vsub.f32 %v1759, %v3118
          %3120 = vmatpush1.msra.mxu0 %v3119
          %v3121 = vand.u32 %v1762, 4294901760
          %v3122 = vsub.f32 %v1762, %v3121
          %3123 = vmatprep.subr.mxu0 %v3122
          %v3124 = vand.u32 %v1761, 4294901760
          %v3125 = vsub.f32 %v1761, %v3124
          %3126 = vmatpush1.msra.mxu0 %v3125
          %v3127 = vand.u32 %v1764, 4294901760
          %v3128 = vsub.f32 %v1764, %v3127
          %3129 = vmatprep.subr.mxu0 %v3128
          %v3130 = vand.u32 %v1763, 4294901760
          %v3131 = vsub.f32 %v1763, %v3130
          %3132 = vmatpush1.msra.mxu0 %v3131
          %v3133 = vand.u32 %v1766, 4294901760
          %v3134 = vsub.f32 %v1766, %v3133
          %3135 = vmatprep.subr.mxu0 %v3134
          %v3136 = vand.u32 %v1765, 4294901760
          %v3137 = vsub.f32 %v1765, %v3136
          %3138 = vmatpush1.msra.mxu0 %v3137
          %v3139 = vand.u32 %v1768, 4294901760
          %v3140 = vsub.f32 %v1768, %v3139
          %3141 = vmatprep.subr.mxu0 %v3140
          %v3142 = vand.u32 %v1767, 4294901760
          %v3143 = vsub.f32 %v1767, %v3142
          %3144 = vmatpush1.msra.mxu0 %v3143
          %v3145 = vand.u32 %v1770, 4294901760
          %v3146 = vsub.f32 %v1770, %v3145
          %3147 = vmatprep.subr.mxu0 %v3146
          %v3148 = vand.u32 %v1769, 4294901760
          %v3149 = vsub.f32 %v1769, %v3148
          %3150 = vmatpush1.msra.mxu0 %v3149
          %v3151 = vand.u32 %v1772, 4294901760
          %v3152 = vsub.f32 %v1772, %v3151
          %3153 = vmatprep.subr.mxu0 %v3152
          %v3154 = vand.u32 %v1771, 4294901760
          %v3155 = vsub.f32 %v1771, %v3154
          %3156 = vmatpush1.msra.mxu0 %v3155
          %v3157 = vand.u32 %v1774, 4294901760
          %v3158 = vsub.f32 %v1774, %v3157
          %3159 = vmatprep.subr.mxu0 %v3158
          %v3160 = vand.u32 %v1773, 4294901760
          %v3161 = vsub.f32 %v1773, %v3160
          %3162 = vmatpush1.msra.mxu0 %v3161
          %v3163 = vand.u32 %v1776, 4294901760
          %v3164 = vsub.f32 %v1776, %v3163
          %3165 = vmatprep.subr.mxu0 %v3164
          %v3166 = vand.u32 %v1775, 4294901760
          %v3167 = vsub.f32 %v1775, %v3166
          %3168 = vmatpush1.msra.mxu0 %v3167
          %3169 = vmatprep.subr.mxu0 0.0
          %3170 = vmatpush1.msra.mxu0 0.0
          %3171 = vmatprep.subr.mxu0 0.0
          %3172 = vmatpush1.msra.mxu0 0.0
          %3173 = vmatprep.subr.mxu0 0.0
          %3174 = vmatpush1.msra.mxu0 0.0
          %3175 = vmatprep.subr.mxu0 0.0
          %3176 = vmatpush1.msra.mxu0 0.0
          %3177 = vmatprep.subr.mxu0 0.0
          %3178 = vmatpush1.msra.mxu0 0.0
          %3179 = vmatprep.subr.mxu0 0.0
          %3180 = vmatpush1.msra.mxu0 0.0
          %3181 = vmatprep.subr.mxu0 0.0
          %3182 = vmatpush1.msra.mxu0 0.0
          %3183 = vmatprep.subr.mxu0 0.0
          %3184 = vmatpush1.msra.mxu0 0.0
          %3185 = vmatprep.subr.mxu0 0.0
          %3186 = vmatpush1.msra.mxu0 0.0
          %3187 = vmatprep.subr.mxu0 0.0
          %3188 = vmatpush1.msra.mxu0 0.0
          %3189 = vmatprep.subr.mxu0 0.0
          %3190 = vmatpush1.msra.mxu0 0.0
          %3191 = vmatprep.subr.mxu0 0.0
          %3192 = vmatpush1.msra.mxu0 0.0
          %3193 = vmatprep.subr.mxu0 0.0
          %3194 = vmatpush1.msra.mxu0 0.0
          %3195 = vmatprep.subr.mxu0 0.0
          %3196 = vmatpush1.msra.mxu0 0.0
          %3197 = vmatprep.subr.mxu0 0.0
          %3198 = vmatpush1.msra.mxu0 0.0
          %3199 = vmatprep.subr.mxu0 0.0
          %3200 = vmatpush1.msra.mxu0 0.0
          %3201 = vmatprep.mubr.f32.mxu0 0.0
          %v3202 = vand.u32 %v1743, 4294901760
          %v3203 = vsub.f32 %v1743, %v3202
          %3204 = vmatmul.mubr.f32.gmra.mrb[0].mxu0 %v3203
          %v3205 = vpop.f32.mrb[0].mxu0
          %v3206 = vadd.f32 %v3062, %v3205
          %v3207 = vpop.f32.mrb[0].mxu0
          %v3208 = vadd.f32 %v3064, %v3207
          %3209 = vmatprep.mubr.f32.mxu0 0.0
          %v3210 = vand.u32 %v1744, 4294901760
          %v3211 = vsub.f32 %v1744, %v3210
          %3212 = vmatmul.mubr.f32.gmra.mrb[0].mxu0 %v3211
          %v3213 = vpop.f32.mrb[0].mxu0
          %v3214 = vadd.f32 %v3069, %v3213
          %v3215 = vpop.f32.mrb[0].mxu0
          %v3216 = vadd.f32 %v3071, %v3215
          %3217 = vdwg.mxu0
          %v3218 = vand.u32 %v1746, 4294901760
          %3219 = vmatprep.subr.mxu0 %v3218
          %v3220 = vand.u32 %v1745, 4294901760
          %3221 = vmatpush1.msra.mxu0 %v3220
          %v3222 = vand.u32 %v1748, 4294901760
          %3223 = vmatprep.subr.mxu0 %v3222
          %v3224 = vand.u32 %v1747, 4294901760
          %3225 = vmatpush1.msra.mxu0 %v3224
          %v3226 = vand.u32 %v1750, 4294901760
          %3227 = vmatprep.subr.mxu0 %v3226
          %v3228 = vand.u32 %v1749, 4294901760
          %3229 = vmatpush1.msra.mxu0 %v3228
          %v3230 = vand.u32 %v1752, 4294901760
          %3231 = vmatprep.subr.mxu0 %v3230
          %v3232 = vand.u32 %v1751, 4294901760
          %3233 = vmatpush1.msra.mxu0 %v3232
          %v3234 = vand.u32 %v1754, 4294901760
          %3235 = vmatprep.subr.mxu0 %v3234
          %v3236 = vand.u32 %v1753, 4294901760
          %3237 = vmatpush1.msra.mxu0 %v3236
          %v3238 = vand.u32 %v1756, 4294901760
          %3239 = vmatprep.subr.mxu0 %v3238
          %v3240 = vand.u32 %v1755, 4294901760
          %3241 = vmatpush1.msra.mxu0 %v3240
          %v3242 = vand.u32 %v1758, 4294901760
          %3243 = vmatprep.subr.mxu0 %v3242
          %v3244 = vand.u32 %v1757, 4294901760
          %3245 = vmatpush1.msra.mxu0 %v3244
          %v3246 = vand.u32 %v1760, 4294901760
          %3247 = vmatprep.subr.mxu0 %v3246
          %v3248 = vand.u32 %v1759, 4294901760
          %3249 = vmatpush1.msra.mxu0 %v3248
          %v3250 = vand.u32 %v1762, 4294901760
          %3251 = vmatprep.subr.mxu0 %v3250
          %v3252 = vand.u32 %v1761, 4294901760
          %3253 = vmatpush1.msra.mxu0 %v3252
          %v3254 = vand.u32 %v1764, 4294901760
          %3255 = vmatprep.subr.mxu0 %v3254
          %v3256 = vand.u32 %v1763, 4294901760
          %3257 = vmatpush1.msra.mxu0 %v3256
          %v3258 = vand.u32 %v1766, 4294901760
          %3259 = vmatprep.subr.mxu0 %v3258
          %v3260 = vand.u32 %v1765, 4294901760
          %3261 = vmatpush1.msra.mxu0 %v3260
          %v3262 = vand.u32 %v1768, 4294901760
          %3263 = vmatprep.subr.mxu0 %v3262
          %v3264 = vand.u32 %v1767, 4294901760
          %3265 = vmatpush1.msra.mxu0 %v3264
          %v3266 = vand.u32 %v1770, 4294901760
          %3267 = vmatprep.subr.mxu0 %v3266
          %v3268 = vand.u32 %v1769, 4294901760
          %3269 = vmatpush1.msra.mxu0 %v3268
          %v3270 = vand.u32 %v1772, 4294901760
          %3271 = vmatprep.subr.mxu0 %v3270
          %v3272 = vand.u32 %v1771, 4294901760
          %3273 = vmatpush1.msra.mxu0 %v3272
          %v3274 = vand.u32 %v1774, 4294901760
          %3275 = vmatprep.subr.mxu0 %v3274
          %v3276 = vand.u32 %v1773, 4294901760
          %3277 = vmatpush1.msra.mxu0 %v3276
          %v3278 = vand.u32 %v1776, 4294901760
          %3279 = vmatprep.subr.mxu0 %v3278
          %v3280 = vand.u32 %v1775, 4294901760
          %3281 = vmatpush1.msra.mxu0 %v3280
          %3282 = vmatprep.subr.mxu0 0.0
          %3283 = vmatpush1.msra.mxu0 0.0
          %3284 = vmatprep.subr.mxu0 0.0
          %3285 = vmatpush1.msra.mxu0 0.0
          %3286 = vmatprep.subr.mxu0 0.0
          %3287 = vmatpush1.msra.mxu0 0.0
          %3288 = vmatprep.subr.mxu0 0.0
          %3289 = vmatpush1.msra.mxu0 0.0
          %3290 = vmatprep.subr.mxu0 0.0
          %3291 = vmatpush1.msra.mxu0 0.0
          %3292 = vmatprep.subr.mxu0 0.0
          %3293 = vmatpush1.msra.mxu0 0.0
          %3294 = vmatprep.subr.mxu0 0.0
          %3295 = vmatpush1.msra.mxu0 0.0
          %3296 = vmatprep.subr.mxu0 0.0
          %3297 = vmatpush1.msra.mxu0 0.0
          %3298 = vmatprep.subr.mxu0 0.0
          %3299 = vmatpush1.msra.mxu0 0.0
          %3300 = vmatprep.subr.mxu0 0.0
          %3301 = vmatpush1.msra.mxu0 0.0
          %3302 = vmatprep.subr.mxu0 0.0
          %3303 = vmatpush1.msra.mxu0 0.0
          %3304 = vmatprep.subr.mxu0 0.0
          %3305 = vmatpush1.msra.mxu0 0.0
          %3306 = vmatprep.subr.mxu0 0.0
          %3307 = vmatpush1.msra.mxu0 0.0
          %3308 = vmatprep.subr.mxu0 0.0
          %3309 = vmatpush1.msra.mxu0 0.0
          %3310 = vmatprep.subr.mxu0 0.0
          %3311 = vmatpush1.msra.mxu0 0.0
          %3312 = vmatprep.subr.mxu0 0.0
          %3313 = vmatpush1.msra.mxu0 0.0
          %3314 = vmatprep.mubr.f32.mxu0 0.0
          %v3315 = vand.u32 %v1743, 4294901760
          %v3316 = vsub.f32 %v1743, %v3315
          %v3317 = vand.u32 %v3316, 4294901760
          %3318 = vmatmul.mubr.f32.gmra.mrb[0].mxu0 %v3317
          %v3319 = vpop.f32.mrb[0].mxu0
          %v3320 = vadd.f32 %v3206, %v3319
          %v3321 = vpop.f32.mrb[0].mxu0
          %v3322 = vadd.f32 %v3208, %v3321
          %3323 = vmatprep.mubr.f32.mxu0 0.0
          %v3324 = vand.u32 %v1744, 4294901760
          %v3325 = vsub.f32 %v1744, %v3324
          %v3326 = vand.u32 %v3325, 4294901760
          %3327 = vmatmul.mubr.f32.gmra.mrb[0].mxu0 %v3326
          %v3328 = vpop.f32.mrb[0].mxu0
          %v3329 = vadd.f32 %v3214, %v3328
          %v3330 = vpop.f32.mrb[0].mxu0
          %v3331 = vadd.f32 %v3216, %v3330
          %3332 = vdwg.mxu0
          %v3333 = vand.u32 %v1746, 4294901760
          %v3334 = vsub.f32 %v1746, %v3333
          %v3335 = vand.u32 %v3334, 4294901760
          %3336 = vmatprep.subr.mxu0 %v3335
          %v3337 = vand.u32 %v1745, 4294901760
          %v3338 = vsub.f32 %v1745, %v3337
          %v3339 = vand.u32 %v3338, 4294901760
          %3340 = vmatpush1.msra.mxu0 %v3339
          %v3341 = vand.u32 %v1748, 4294901760
          %v3342 = vsub.f32 %v1748, %v3341
          %v3343 = vand.u32 %v3342, 4294901760
          %3344 = vmatprep.subr.mxu0 %v3343
          %v3345 = vand.u32 %v1747, 4294901760
          %v3346 = vsub.f32 %v1747, %v3345
          %v3347 = vand.u32 %v3346, 4294901760
          %3348 = vmatpush1.msra.mxu0 %v3347
          %v3349 = vand.u32 %v1750, 4294901760
          %v3350 = vsub.f32 %v1750, %v3349
          %v3351 = vand.u32 %v3350, 4294901760
          %3352 = vmatprep.subr.mxu0 %v3351
          %v3353 = vand.u32 %v1749, 4294901760
          %v3354 = vsub.f32 %v1749, %v3353
          %v3355 = vand.u32 %v3354, 4294901760
          %3356 = vmatpush1.msra.mxu0 %v3355
          %v3357 = vand.u32 %v1752, 4294901760
          %v3358 = vsub.f32 %v1752, %v3357
          %v3359 = vand.u32 %v3358, 4294901760
          %3360 = vmatprep.subr.mxu0 %v3359
          %v3361 = vand.u32 %v1751, 4294901760
          %v3362 = vsub.f32 %v1751, %v3361
          %v3363 = vand.u32 %v3362, 4294901760
          %3364 = vmatpush1.msra.mxu0 %v3363
          %v3365 = vand.u32 %v1754, 4294901760
          %v3366 = vsub.f32 %v1754, %v3365
          %v3367 = vand.u32 %v3366, 4294901760
          %3368 = vmatprep.subr.mxu0 %v3367
          %v3369 = vand.u32 %v1753, 4294901760
          %v3370 = vsub.f32 %v1753, %v3369
          %v3371 = vand.u32 %v3370, 4294901760
          %3372 = vmatpush1.msra.mxu0 %v3371
          %v3373 = vand.u32 %v1756, 4294901760
          %v3374 = vsub.f32 %v1756, %v3373
          %v3375 = vand.u32 %v3374, 4294901760
          %3376 = vmatprep.subr.mxu0 %v3375
          %v3377 = vand.u32 %v1755, 4294901760
          %v3378 = vsub.f32 %v1755, %v3377
          %v3379 = vand.u32 %v3378, 4294901760
          %3380 = vmatpush1.msra.mxu0 %v3379
          %v3381 = vand.u32 %v1758, 4294901760
          %v3382 = vsub.f32 %v1758, %v3381
          %v3383 = vand.u32 %v3382, 4294901760
          %3384 = vmatprep.subr.mxu0 %v3383
          %v3385 = vand.u32 %v1757, 4294901760
          %v3386 = vsub.f32 %v1757, %v3385
          %v3387 = vand.u32 %v3386, 4294901760
          %3388 = vmatpush1.msra.mxu0 %v3387
          %v3389 = vand.u32 %v1760, 4294901760
          %v3390 = vsub.f32 %v1760, %v3389
          %v3391 = vand.u32 %v3390, 4294901760
          %3392 = vmatprep.subr.mxu0 %v3391
          %v3393 = vand.u32 %v1759, 4294901760
          %v3394 = vsub.f32 %v1759, %v3393
          %v3395 = vand.u32 %v3394, 4294901760
          %3396 = vmatpush1.msra.mxu0 %v3395
          %v3397 = vand.u32 %v1762, 4294901760
          %v3398 = vsub.f32 %v1762, %v3397
          %v3399 = vand.u32 %v3398, 4294901760
          %3400 = vmatprep.subr.mxu0 %v3399
          %v3401 = vand.u32 %v1761, 4294901760
          %v3402 = vsub.f32 %v1761, %v3401
          %v3403 = vand.u32 %v3402, 4294901760
          %3404 = vmatpush1.msra.mxu0 %v3403
          %v3405 = vand.u32 %v1764, 4294901760
          %v3406 = vsub.f32 %v1764, %v3405
          %v3407 = vand.u32 %v3406, 4294901760
          %3408 = vmatprep.subr.mxu0 %v3407
          %v3409 = vand.u32 %v1763, 4294901760
          %v3410 = vsub.f32 %v1763, %v3409
          %v3411 = vand.u32 %v3410, 4294901760
          %3412 = vmatpush1.msra.mxu0 %v3411
          %v3413 = vand.u32 %v1766, 4294901760
          %v3414 = vsub.f32 %v1766, %v3413
          %v3415 = vand.u32 %v3414, 4294901760
          %3416 = vmatprep.subr.mxu0 %v3415
          %v3417 = vand.u32 %v1765, 4294901760
          %v3418 = vsub.f32 %v1765, %v3417
          %v3419 = vand.u32 %v3418, 4294901760
          %3420 = vmatpush1.msra.mxu0 %v3419
          %v3421 = vand.u32 %v1768, 4294901760
          %v3422 = vsub.f32 %v1768, %v3421
          %v3423 = vand.u32 %v3422, 4294901760
          %3424 = vmatprep.subr.mxu0 %v3423
          %v3425 = vand.u32 %v1767, 4294901760
          %v3426 = vsub.f32 %v1767, %v3425
          %v3427 = vand.u32 %v3426, 4294901760
          %3428 = vmatpush1.msra.mxu0 %v3427
          %v3429 = vand.u32 %v1770, 4294901760
          %v3430 = vsub.f32 %v1770, %v3429
          %v3431 = vand.u32 %v3430, 4294901760
          %3432 = vmatprep.subr.mxu0 %v3431
          %v3433 = vand.u32 %v1769, 4294901760
          %v3434 = vsub.f32 %v1769, %v3433
          %v3435 = vand.u32 %v3434, 4294901760
          %3436 = vmatpush1.msra.mxu0 %v3435
          %v3437 = vand.u32 %v1772, 4294901760
          %v3438 = vsub.f32 %v1772, %v3437
          %v3439 = vand.u32 %v3438, 4294901760
          %3440 = vmatprep.subr.mxu0 %v3439
          %v3441 = vand.u32 %v1771, 4294901760
          %v3442 = vsub.f32 %v1771, %v3441
          %v3443 = vand.u32 %v3442, 4294901760
          %3444 = vmatpush1.msra.mxu0 %v3443
          %v3445 = vand.u32 %v1774, 4294901760
          %v3446 = vsub.f32 %v1774, %v3445
          %v3447 = vand.u32 %v3446, 4294901760
          %3448 = vmatprep.subr.mxu0 %v3447
          %v3449 = vand.u32 %v1773, 4294901760
          %v3450 = vsub.f32 %v1773, %v3449
          %v3451 = vand.u32 %v3450, 4294901760
          %3452 = vmatpush1.msra.mxu0 %v3451
          %v3453 = vand.u32 %v1776, 4294901760
          %v3454 = vsub.f32 %v1776, %v3453
          %v3455 = vand.u32 %v3454, 4294901760
          %3456 = vmatprep.subr.mxu0 %v3455
          %v3457 = vand.u32 %v1775, 4294901760
          %v3458 = vsub.f32 %v1775, %v3457
          %v3459 = vand.u32 %v3458, 4294901760
          %3460 = vmatpush1.msra.mxu0 %v3459
          %3461 = vmatprep.subr.mxu0 0.0
          %3462 = vmatpush1.msra.mxu0 0.0
          %3463 = vmatprep.subr.mxu0 0.0
          %3464 = vmatpush1.msra.mxu0 0.0
          %3465 = vmatprep.subr.mxu0 0.0
          %3466 = vmatpush1.msra.mxu0 0.0
          %3467 = vmatprep.subr.mxu0 0.0
          %3468 = vmatpush1.msra.mxu0 0.0
          %3469 = vmatprep.subr.mxu0 0.0
          %3470 = vmatpush1.msra.mxu0 0.0
          %3471 = vmatprep.subr.mxu0 0.0
          %3472 = vmatpush1.msra.mxu0 0.0
          %3473 = vmatprep.subr.mxu0 0.0
          %3474 = vmatpush1.msra.mxu0 0.0
          %3475 = vmatprep.subr.mxu0 0.0
          %3476 = vmatpush1.msra.mxu0 0.0
          %3477 = vmatprep.subr.mxu0 0.0
          %3478 = vmatpush1.msra.mxu0 0.0
          %3479 = vmatprep.subr.mxu0 0.0
          %3480 = vmatpush1.msra.mxu0 0.0
          %3481 = vmatprep.subr.mxu0 0.0
          %3482 = vmatpush1.msra.mxu0 0.0
          %3483 = vmatprep.subr.mxu0 0.0
          %3484 = vmatpush1.msra.mxu0 0.0
          %3485 = vmatprep.subr.mxu0 0.0
          %3486 = vmatpush1.msra.mxu0 0.0
          %3487 = vmatprep.subr.mxu0 0.0
          %3488 = vmatpush1.msra.mxu0 0.0
          %3489 = vmatprep.subr.mxu0 0.0
          %3490 = vmatpush1.msra.mxu0 0.0
          %3491 = vmatprep.subr.mxu0 0.0
          %3492 = vmatpush1.msra.mxu0 0.0
          %3493 = vmatprep.mubr.f32.mxu0 0.0
          %v3494 = vand.u32 %v1743, 4294901760
          %3495 = vmatmul.mubr.f32.gmra.mrb[0].mxu0 %v3494
          %v3496 = vpop.f32.mrb[0].mxu0
          %v3497 = vadd.f32 %v3320, %v3496
          %v3498 = vpop.f32.mrb[0].mxu0
          %v3499 = vadd.f32 %v3322, %v3498
          %3500 = vmatprep.mubr.f32.mxu0 0.0
          %v3501 = vand.u32 %v1744, 4294901760
          %3502 = vmatmul.mubr.f32.gmra.mrb[0].mxu0 %v3501
          %v3503 = vpop.f32.mrb[0].mxu0
          %v3504 = vadd.f32 %v3329, %v3503
          %v3505 = vpop.f32.mrb[0].mxu0
          %v3506 = vadd.f32 %v3331, %v3505
          %3507 = vdwg.mxu0
          %v3508 = vand.u32 %v1746, 4294901760
          %3509 = vmatprep.subr.mxu0 %v3508
          %v3510 = vand.u32 %v1745, 4294901760
          %3511 = vmatpush1.msra.mxu0 %v3510
          %v3512 = vand.u32 %v1748, 4294901760
          %3513 = vmatprep.subr.mxu0 %v3512
          %v3514 = vand.u32 %v1747, 4294901760
          %3515 = vmatpush1.msra.mxu0 %v3514
          %v3516 = vand.u32 %v1750, 4294901760
          %3517 = vmatprep.subr.mxu0 %v3516
          %v3518 = vand.u32 %v1749, 4294901760
          %3519 = vmatpush1.msra.mxu0 %v3518
          %v3520 = vand.u32 %v1752, 4294901760
          %3521 = vmatprep.subr.mxu0 %v3520
          %v3522 = vand.u32 %v1751, 4294901760
          %3523 = vmatpush1.msra.mxu0 %v3522
          %v3524 = vand.u32 %v1754, 4294901760
          %3525 = vmatprep.subr.mxu0 %v3524
          %v3526 = vand.u32 %v1753, 4294901760
          %3527 = vmatpush1.msra.mxu0 %v3526
          %v3528 = vand.u32 %v1756, 4294901760
          %3529 = vmatprep.subr.mxu0 %v3528
          %v3530 = vand.u32 %v1755, 4294901760
          %3531 = vmatpush1.msra.mxu0 %v3530
          %v3532 = vand.u32 %v1758, 4294901760
          %3533 = vmatprep.subr.mxu0 %v3532
          %v3534 = vand.u32 %v1757, 4294901760
          %3535 = vmatpush1.msra.mxu0 %v3534
          %v3536 = vand.u32 %v1760, 4294901760
          %3537 = vmatprep.subr.mxu0 %v3536
          %v3538 = vand.u32 %v1759, 4294901760
          %3539 = vmatpush1.msra.mxu0 %v3538
          %v3540 = vand.u32 %v1762, 4294901760
          %3541 = vmatprep.subr.mxu0 %v3540
          %v3542 = vand.u32 %v1761, 4294901760
          %3543 = vmatpush1.msra.mxu0 %v3542
          %v3544 = vand.u32 %v1764, 4294901760
          %3545 = vmatprep.subr.mxu0 %v3544
          %v3546 = vand.u32 %v1763, 4294901760
          %3547 = vmatpush1.msra.mxu0 %v3546
          %v3548 = vand.u32 %v1766, 4294901760
          %3549 = vmatprep.subr.mxu0 %v3548
          %v3550 = vand.u32 %v1765, 4294901760
          %3551 = vmatpush1.msra.mxu0 %v3550
          %v3552 = vand.u32 %v1768, 4294901760
          %3553 = vmatprep.subr.mxu0 %v3552
          %v3554 = vand.u32 %v1767, 4294901760
          %3555 = vmatpush1.msra.mxu0 %v3554
          %v3556 = vand.u32 %v1770, 4294901760
          %3557 = vmatprep.subr.mxu0 %v3556
          %v3558 = vand.u32 %v1769, 4294901760
          %3559 = vmatpush1.msra.mxu0 %v3558
          %v3560 = vand.u32 %v1772, 4294901760
          %3561 = vmatprep.subr.mxu0 %v3560
          %v3562 = vand.u32 %v1771, 4294901760
          %3563 = vmatpush1.msra.mxu0 %v3562
          %v3564 = vand.u32 %v1774, 4294901760
          %3565 = vmatprep.subr.mxu0 %v3564
          %v3566 = vand.u32 %v1773, 4294901760
          %3567 = vmatpush1.msra.mxu0 %v3566
          %v3568 = vand.u32 %v1776, 4294901760
          %3569 = vmatprep.subr.mxu0 %v3568
          %v3570 = vand.u32 %v1775, 4294901760
          %3571 = vmatpush1.msra.mxu0 %v3570
          %3572 = vmatprep.subr.mxu0 0.0
          %3573 = vmatpush1.msra.mxu0 0.0
          %3574 = vmatprep.subr.mxu0 0.0
          %3575 = vmatpush1.msra.mxu0 0.0
          %3576 = vmatprep.subr.mxu0 0.0
          %3577 = vmatpush1.msra.mxu0 0.0
          %3578 = vmatprep.subr.mxu0 0.0
          %3579 = vmatpush1.msra.mxu0 0.0
          %3580 = vmatprep.subr.mxu0 0.0
          %3581 = vmatpush1.msra.mxu0 0.0
          %3582 = vmatprep.subr.mxu0 0.0
          %3583 = vmatpush1.msra.mxu0 0.0
          %3584 = vmatprep.subr.mxu0 0.0
          %3585 = vmatpush1.msra.mxu0 0.0
          %3586 = vmatprep.subr.mxu0 0.0
          %3587 = vmatpush1.msra.mxu0 0.0
          %3588 = vmatprep.subr.mxu0 0.0
          %3589 = vmatpush1.msra.mxu0 0.0
          %3590 = vmatprep.subr.mxu0 0.0
          %3591 = vmatpush1.msra.mxu0 0.0
          %3592 = vmatprep.subr.mxu0 0.0
          %3593 = vmatpush1.msra.mxu0 0.0
          %3594 = vmatprep.subr.mxu0 0.0
          %3595 = vmatpush1.msra.mxu0 0.0
          %3596 = vmatprep.subr.mxu0 0.0
          %3597 = vmatpush1.msra.mxu0 0.0
          %3598 = vmatprep.subr.mxu0 0.0
          %3599 = vmatpush1.msra.mxu0 0.0
          %3600 = vmatprep.subr.mxu0 0.0
          %3601 = vmatpush1.msra.mxu0 0.0
          %3602 = vmatprep.subr.mxu0 0.0
          %3603 = vmatpush1.msra.mxu0 0.0
          %3604 = vmatprep.mubr.f32.mxu0 0.0
          %v3605 = vand.u32 %v1743, 4294901760
          %3606 = vmatmul.mubr.f32.gmra.mrb[0].mxu0 %v3605
          %v3607 = vpop.f32.mrb[0].mxu0
          %v3608 = vadd.f32 %v3497, %v3607
          %v3609 = vpop.f32.mrb[0].mxu0
          %v3610 = vadd.f32 %v3499, %v3609
          %3611 = vmatprep.mubr.f32.mxu0 0.0
          %v3612 = vand.u32 %v1744, 4294901760
          %3613 = vmatmul.mubr.f32.gmra.mrb[0].mxu0 %v3612
          %v3614 = vpop.f32.mrb[0].mxu0
          %v3615 = vadd.f32 %v3504, %v3614
          %v3616 = vpop.f32.mrb[0].mxu0
          %v3617 = vadd.f32 %v3506, %v3616
          %3618 = vdwg.mxu0
          %3619 = vst [vmem:[#allocation20] sm:$0xff] %v3608
          %3620 = vst [vmem:[#allocation20 + $0x8] sm:$0xff] %v3610
          %3621 = vst [vmem:[#allocation20 + $0x10] sm:$0xff] %v3615
          %3622 = vst [vmem:[#allocation20 + $0x18] sm:$0xff] %v3617
          %p3623 = scmp.eq.s32.totalorder %s47, 1
          // Predicated region
          $region133: #{tpu_custom_call.1} parent=131 // pred_check
            %p3624 = pneg %p3623
          $region134: #{tpu_custom_call.1} parent=131 // pred_check_branch
            %3626 = sbr.rel (%p3624) target = $region136
          $region135: #{tpu_custom_call.1} parent=131 // pred_region
            %v3627 = vmul.f32 %v3608, %v3608
            %v3628 = vmul.f32 %v3610, %v3610
            %v3629 = vadd.f32 %v3627, %v3628
            %3630 = vadd.xlane.f32.xlu0 %v3629
            %v3631 = vpop.xlane.xlu0 %3630
            %v3632 = vmul.f32 %v3631, 0.5
            %v3633 = vmul.f32 %v3608, 0.975
            %v3634 = vsub.f32 %v3615, %v3633
            %v3635 = vmul.f32 %v3634, %v3634
            %3636 = vadd.xlane.f32.xlu0 %v3635
            %v3637 = vpop.xlane.xlu0 %3636
            %v3638 = vmul.f32 %v3637, 10.126582
            %v3639 = vmul.f32 %v3617, %v3617
            %3640 = vadd.xlane.f32.xlu0 %v3639
            %v3641 = vpop.xlane.xlu0 %3640
            %v3642 = vmul.f32 %v3641, 0.5
            %v3643 = vadd.f32 %v3632, %v3638
            %v3644 = vadd.f32 %v3643, %v3642
            %v3645 = vrot.slane %v3644, 4
            %v3646 = vadd.f32 %v3644, %v3645
            %v3647 = vrot.slane %v3646, 2
            %v3648 = vadd.f32 %v3646, %v3647
            %v3649 = vrot.slane %v3648, 1
            %v3650 = vadd.f32 %v3648, %v3649
            %v3651 = vld [vmem:[#allocation4] sm:$0xff]
            %v3652 = vld [vmem:[#allocation4 + $0x8] sm:$0xff]
            %v3653 = vsel %vm1736, %v3651, 0.0
            %v3654 = vsel %vm1736, %v3652, 0.0
            %v3655 = vadd.f32 %v3653, %v3654
            %v3656 = vrot.slane %v3655, 4
            %v3657 = vadd.f32 %v3655, %v3656
            %v3658 = vrot.slane %v3657, 2
            %v3659 = vadd.f32 %v3657, %v3658
            %v3660 = vrot.slane %v3659, 1
            %v3661 = vadd.f32 %v3659, %v3660
            %v3662 = vsub.f32 %v3650, %v3661
            %v3663 = vmul.f32 %v3662, 0.125
            %vm3664 = vcmask 0
            %3665 = vst.msk [vmem:[#allocation21] sm:$0x1] %vm3664, %v3663
          $region136: #{tpu_custom_call.1} parent=131 // pred_fallthru
            _
        $region132: #{tpu_custom_call.1} parent=79 // pred_fallthru
          _
        // Predicated region
        $region137: #{tpu_custom_call.1} parent=79 // pred_check
          %p3666 = pneg %p473
        $region138: #{tpu_custom_call.1} parent=79 // pred_check_branch
          %3668 = sbr.rel (%p3666) target = $region140
        $region139: #{tpu_custom_call.1} parent=79 // pred_region
          %s3670 = ssub.s32 512, 512
          %3671 = vsyncadd [#allocation7], %s3670
          %s3672 = sshll.u32 [#allocation20], 4
          %s3673 = int_to_ptr.vmem [resolvable:$true] %s3672
          %3678 = dma.vmem_to_hbm [thread:$0]  %s3673, 512, %s15, [#allocation7], 256, 256, 16
        $region140: #{tpu_custom_call.1} parent=79 // pred_fallthru
          _
        // Predicated region
        $region141: #{tpu_custom_call.1} parent=79 // pred_check
          %p3679 = pneg %p494
        $region142: #{tpu_custom_call.1} parent=79 // pred_check_branch
          %3681 = sbr.rel (%p3679) target = $region144
        $region143: #{tpu_custom_call.1} parent=79 // pred_region
          %s3683 = ssub.s32 16, 16
          %3684 = vsyncadd [#allocation22], %s3683
          %s3686 = sshll.u32 [#allocation21], 4
          %s3687 = int_to_ptr.vmem [resolvable:$true] %s3686
          %3689 = dma.vmem_to_hbm [thread:$0]  %s3687, 16, %s16, [#allocation22]
        $region144: #{tpu_custom_call.1} parent=79 // pred_fallthru
          _
        // Predicated region
        $region145: #{tpu_custom_call.1} parent=79 // pred_check
          %p3690 = pneg %p473
        $region146: #{tpu_custom_call.1} parent=79 // pred_check_branch
          %3692 = sbr.rel (%p3690) target = $region148
        $region147: #{tpu_custom_call.1} parent=79 // pred_region
          %3693 = dma.done [#allocation7], 512
        $region148: #{tpu_custom_call.1} parent=79 // pred_fallthru
          _
        // Predicated region
        $region149: #{tpu_custom_call.1} parent=79 // pred_check
          %p3694 = pneg %p494
        $region150: #{tpu_custom_call.1} parent=79 // pred_check_branch
          %3696 = sbr.rel (%p3694) target = $region152
        $region151: #{tpu_custom_call.1} parent=79 // pred_region
          %3697 = dma.done [#allocation22], 16
        $region152: #{tpu_custom_call.1} parent=79 // pred_fallthru
          _
      $region80: #{tpu_custom_call.1} parent=5 // pred_fallthru
        _
      %p3698 = scmp.le.s32.totalorder 2, %s38
      // Predicated region
      $region153: #{tpu_custom_call.1} parent=5 // pred_check
        %p3699 = pneg %p3698
      $region154: #{tpu_custom_call.1} parent=5 // pred_check_branch
        %3701 = sbr.rel (%p3699) target = $region156
      $region155: #{tpu_custom_call.1} parent=5 // pred_region
        %s3702 = ssub.s32 %s38, 2
      $region156: #{tpu_custom_call.1} parent=5 // pred_fallthru
        _
    $region6: #{tpu_custom_call.1} parent=1 // loop_footer
      %s42 = sadd.s32 1, %s38
    $region7: #{tpu_custom_call.1} parent=1 // loop_footer_branch
      %37 = sbr.rel target = $region3
    $region8: #{tpu_custom_call.1} parent=1 // loop_exit
      _
    %3703 = vsyncpa [#allocation6], 1
    %s3704 = scalar_lea.sflag [#allocation6], 1
    %3705 = vsyncpa %s3704, 1
    %3706 = vsyncpa [#allocation9], 1
    %s3707 = scalar_lea.sflag [#allocation9], 1
    %3708 = vsyncpa %s3707, 1
    %3709 = vsyncpa [#allocation12], 1
    %s3710 = scalar_lea.sflag [#allocation12], 1
    %3711 = vsyncpa %s3710, 1
    %3712 = vsyncpa [#allocation15], 1
    %s3713 = scalar_lea.sflag [#allocation15], 1
    %3714 = vsyncpa %s3713, 1
    %3715 = vsyncpa [#allocation18], 1
    %s3716 = scalar_lea.sflag [#allocation18], 1
    %3717 = vsyncpa %s3716, 1
    %3718 = vsyncpa [#allocation7], 1
    %s3719 = scalar_lea.sflag [#allocation7], 1
    %3720 = vsyncpa %s3719, 1
    %3721 = vsyncpa [#allocation22], 1

</llo_original>
